<compile_context>
chip_gen: v5e
topology: v5e:2x2
jax: 0.10.0
libtpu: 0.0.40
codegen_flags: <defaults>
</compile_context>

<pallas_src>
import functools

import numpy as np
import jax
import jax.numpy as jnp
from jax import lax
from jax.experimental import pallas as pl
from jax.experimental.pallas import tpu as pltpu


def _round_up(x, m):
    return ((x + m - 1) // m) * m


def _weights_widek(wt, co_p, ci_p, dtype):
    """[Co, Ci, 3,3,3] -> [Co_p, 27*Ci_p] (tap-major, channel-minor along K)."""
    co, ci = wt.shape[0], wt.shape[1]
    wt = jnp.transpose(wt.astype(jnp.float32), (0, 2, 3, 4, 1))   # [co,3,3,3,ci]
    wt = jnp.pad(wt, ((0, co_p - co), (0, 0), (0, 0), (0, 0), (0, ci_p - ci)))
    return wt.reshape(co_p, 27 * ci_p).astype(dtype)


def _weights_pertap(wt, co_p, ci_p, dtype):
    """[Co, Ci, 3,3,3] -> [27, Co_p, Ci_p] (one matrix per tap)."""
    co, ci = wt.shape[0], wt.shape[1]
    wt = jnp.transpose(wt.astype(jnp.float32), (2, 3, 4, 0, 1))   # [3,3,3,co,ci]
    wt = jnp.pad(wt, ((0, 0), (0, 0), (0, 0), (0, co_p - co), (0, ci_p - ci)))
    return wt.reshape(27, co_p, ci_p).astype(dtype)


def _make_kernel(cin_p, cmid_p, cout_p, lpad, xl, margin, offsets,
                 compute_dtype, accumulate):
    """Kernel body for one image: conv1 + ReLU -> conv2 + ReLU, all in VMEM."""
    f32 = jnp.float32

    def zero_margins(a_ref):
        # The margin strips of the staged conv1 activation must read as zero
        # for the flat-shift trick; the interior is fully overwritten below.
        # Zeroing only the margins (instead of the whole buffer) cuts these
        # stores ~5x; done every step so it stays correct under megacore
        # sharding of the "parallel" batch axis (v7x), where a core may never
        # execute program_id 0.  The margins are never written anywhere else.
        a_ref[:, :margin] = jnp.zeros((cmid_p, margin), compute_dtype)
        a_ref[:, margin + lpad:] = jnp.zeros(
            (cmid_p, xl - margin - lpad), compute_dtype)

    if not accumulate:
        # Small-channel path: materialized im2col + one wide-K MXU matmul per
        # conv.  A single im2col scratch is reused by both convs.
        def kernel(x_ref, w1_ref, b1_ref, w2_ref, b2_ref, mask_ref, o_ref,
                   p_ref, a_ref):
            zero_margins(a_ref)

            # ---------------- conv1 ----------------
            xv = x_ref[0]                                  # [cin_p, xl]
            for t, off in enumerate(offsets):              # static 27-tap loop
                s = margin + off
                p_ref[t * cin_p:(t + 1) * cin_p, :] = xv[:, s:s + lpad]
            y1 = jnp.dot(w1_ref[...], p_ref[:27 * cin_p, :],
                         preferred_element_type=f32)       # [cmid_p, lpad] f32
            # Bias + ReLU + halo/tail mask in f32 (VPU), then cast for conv2.
            y1 = jnp.maximum(y1 + b1_ref[...], 0.0) * mask_ref[...]
            a_ref[:, margin:margin + lpad] = y1.astype(compute_dtype)

            # ---------------- conv2 ----------------
            av = a_ref[...]                                # [cmid_p, xl]
            for t, off in enumerate(offsets):
                s = margin + off
                p_ref[t * cmid_p:(t + 1) * cmid_p, :] = av[:, s:s + lpad]
            y2 = jnp.dot(w2_ref[...], p_ref[:27 * cmid_p, :],
                         preferred_element_type=f32)       # [cout_p, lpad]
            o_ref[0] = jnp.maximum(y2 + b2_ref[...], 0.0).astype(o_ref.dtype)
    else:
        # Large-channel path: no materialized im2col.  27 accumulated matmuls
        # over lane-shifted views, into one shared f32 accumulator scratch.
        def kernel(x_ref, w1_ref, b1_ref, w2_ref, b2_ref, mask_ref, o_ref,
                   acc_ref, a_ref):
            zero_margins(a_ref)

            # ---------------- conv1 ----------------
            xv = x_ref[0]                                  # [cin_p, xl]
            acc_ref[:cmid_p, :] = jnp.zeros((cmid_p, lpad), f32)
            for t, off in enumerate(offsets):
                s = margin + off
                acc_ref[:cmid_p, :] += jnp.dot(
                    w1_ref[t], xv[:, s:s + lpad], preferred_element_type=f32)
            y1 = jnp.maximum(acc_ref[:cmid_p, :] + b1_ref[...], 0.0)
            y1 = y1 * mask_ref[...]
            a_ref[:, margin:margin + lpad] = y1.astype(compute_dtype)

            # ---------------- conv2 ----------------
            av = a_ref[...]                                # [cmid_p, xl]
            acc_ref[:cout_p, :] = jnp.zeros((cout_p, lpad), f32)
            for t, off in enumerate(offsets):
                s = margin + off
                acc_ref[:cout_p, :] += jnp.dot(
                    w2_ref[t], av[:, s:s + lpad], preferred_element_type=f32)
            o_ref[0] = jnp.maximum(acc_ref[:cout_p, :] + b2_ref[...],
                                   0.0).astype(o_ref.dtype)

    return kernel


def double_conv_block(x, params, *, compute_dtype=jnp.bfloat16,
                      accumulate_taps=None):
    """Forward of _DoubleConvBlock (dropout=None path). x: [N, Cin, D, H, W]."""
    n, cin, d, h, w = x.shape
    w1, b1 = params["w1"], params["b1"]        # [Cmid, Cin, 3,3,3], [Cmid]
    w2, b2 = params["w2"], params["b2"]        # [Cout, Cmid, 3,3,3], [Cout]
    cmid, cout = w1.shape[0], w2.shape[0]

    f32 = jnp.float32
    cdt = np.dtype(compute_dtype)
    # Channels that ride the sublane axis of compute-dtype buffers are padded
    # to the packed-sublane multiple (8 for f32, 16 for bf16) so every slab
    # store in the kernel is tile-aligned.
    sub = 8 * (4 // cdt.itemsize)
    cin_p = _round_up(cin, sub)
    cmid_p = _round_up(cmid, sub)
    cout_p = _round_up(cout, 8)                # output / f32 accumulator rows

    dp, hp, wp = d + 2, h + 2, w + 2
    vol = dp * hp * wp                          # padded-grid volume
    lpad = _round_up(vol, 128)                  # lane-dense compute/store width
    margin = _round_up(hp * wp + wp + 1, 128)   # >= max |tap shift| in flat space
    xl = _round_up(lpad + 2 * margin, 128)

    # Tap offsets in the flattened (Dp, Hp, Wp) space; kd-major, kw-minor.
    offsets = [(kd - 1) * hp * wp + (kh - 1) * wp + (kw - 1)
               for kd in range(3) for kh in range(3) for kw in range(3)]

    if accumulate_taps is None:
        # Materialized im2col (one wide-K matmul per conv) only pays off at
        # small channel counts; at UNet channel counts the 27x scratch blowup
        # does not fit VMEM and per-tap K is already MXU-efficient.
        accumulate_taps = max(cin_p, cmid_p) >= 64

    # Flat, zero-padded input in compute dtype: channel pad -> spatial pad=1 ->
    # flatten -> lane margins.  (bf16 halves both the HBM DMA and VMEM bytes.)
    xp = jnp.pad(x.astype(f32),
                 ((0, 0), (0, cin_p - cin), (1, 1), (1, 1), (1, 1)))
    xflat = jnp.pad(xp.reshape(n, cin_p, vol),
                    ((0, 0), (0, 0), (margin, xl - vol - margin))).astype(cdt)

    if accumulate_taps:
        w1k = _weights_pertap(w1, cmid_p, cin_p, cdt)
        w2k = _weights_pertap(w2, cout_p, cmid_p, cdt)
        w1_spec = pl.BlockSpec((27, cmid_p, cin_p), lambda i: (0, 0, 0))
        w2_spec = pl.BlockSpec((27, cout_p, cmid_p), lambda i: (0, 0, 0))
        scratch = [pltpu.VMEM((max(cmid_p, cout_p), lpad), f32),  # shared f32 acc
                   pltpu.VMEM((cmid_p, xl), cdt)]                 # conv1 act (VMEM only)
        scratch_bytes = (max(cmid_p, cout_p) * lpad * 4
                         + cmid_p * xl * cdt.itemsize)
    else:
        w1k = _weights_widek(w1, cmid_p, cin_p, cdt)
        w2k = _weights_widek(w2, cout_p, cmid_p, cdt)
        w1_spec = pl.BlockSpec((cmid_p, 27 * cin_p), lambda i: (0, 0))
        w2_spec = pl.BlockSpec((cout_p, 27 * cmid_p), lambda i: (0, 0))
        scratch = [pltpu.VMEM((27 * max(cin_p, cmid_p), lpad), cdt),  # shared im2col
                   pltpu.VMEM((cmid_p, xl), cdt)]                     # conv1 act
        scratch_bytes = (27 * max(cin_p, cmid_p) * lpad * cdt.itemsize
                         + cmid_p * xl * cdt.itemsize)

    b1m = jnp.pad(b1.astype(f32), (0, cmid_p - cmid)).reshape(cmid_p, 1)
    b2m = jnp.pad(b2.astype(f32), (0, cout_p - cout)).reshape(cout_p, 1)

    # Interior mask: 1 on real voxels of the padded grid, 0 on halo ring + tail.
    mask = jnp.zeros((dp, hp, wp), f32).at[1:d + 1, 1:h + 1, 1:w + 1].set(1.0)
    mask = jnp.pad(mask.reshape(vol), (0, lpad - vol)).reshape(1, lpad)

    # VMEM budget derived from actual resident bytes (double-buffered blocks +
    # scratches), clamped to be safe on v7x's 64 MiB physical VMEM.
    block_bytes = 2 * (cin_p * xl * cdt.itemsize
                       + cout_p * lpad * x.dtype.itemsize
                       + int(w1k.size) * cdt.itemsize
                       + int(w2k.size) * cdt.itemsize
                       + (cmid_p + cout_p + lpad) * 4)
    vmem_limit = int(min(max(2 * (scratch_bytes + block_bytes), 32 << 20),
                         56 << 20))

    kernel = _make_kernel(cin_p, cmid_p, cout_p, lpad, xl, margin, offsets,
                          cdt, accumulate_taps)

    out_flat = pl.pallas_call(
        kernel,
        out_shape=jax.ShapeDtypeStruct((n, cout_p, lpad), x.dtype),
        grid_spec=pltpu.PrefetchScalarGridSpec(
            num_scalar_prefetch=0,
            grid=(n,),
            in_specs=[
                pl.BlockSpec((1, cin_p, xl), lambda i: (i, 0, 0)),
                w1_spec,
                pl.BlockSpec((cmid_p, 1), lambda i: (0, 0)),
                w2_spec,
                pl.BlockSpec((cout_p, 1), lambda i: (0, 0)),
                pl.BlockSpec((1, lpad), lambda i: (0, 0)),
            ],
            out_specs=pl.BlockSpec((1, cout_p, lpad), lambda i: (i, 0, 0)),
            scratch_shapes=scratch),
        compiler_params=pltpu.CompilerParams(
            dimension_semantics=("parallel",),  # batch across TCs on v7x
            vmem_limit_bytes=vmem_limit),
    )(xflat, w1k, b1m, w2k, b2m, mask)

    # Drop padded channels / lane tail, un-flatten, cut the halo -> NCDHW.
    out = out_flat[:, :cout, :vol].reshape(n, cout, dp, hp, wp)
    # TODO(synk): nn.Dropout3d (training-mode channel dropout) not implemented;
    # the module default dropout=None and eval-mode dropout are both identity.
    return out[:, :, 1:-1, 1:-1, 1:-1]


def _reference(x, params):
    """Pure-JAX reference (lax.conv, NCDHW, f32) for verification."""
    def conv(y, wt, b):
        y = lax.conv_general_dilated(
            y, wt, window_strides=(1, 1, 1),
            padding=((1, 1), (1, 1), (1, 1)),
            dimension_numbers=("NCDHW", "OIDHW", "NCDHW"))
        return jax.nn.relu(y + b.reshape(1, -1, 1, 1, 1))

    y = conv(x, params["w1"], params["b1"])
    return conv(y, params["w2"], params["b2"])


if __name__ == "__main__":
    # Small shapes consistent with the module: batch=2, in_channels=4,
    # out_channels=8, spatial D=H=W=8.
    N, CIN, COUT = 2, 4, 8
    D = H = W = 8

    key = jax.random.PRNGKey(0)
    kx, kw1, kb1, kw2, kb2 = jax.random.split(key, 5)

    x = jax.random.normal(kx, (N, CIN, D, H, W), dtype=jnp.float32)
    # Conv3d parameters in PyTorch layout: weight [Cout, Cin, 3, 3, 3], bias [Cout].
    params = {
        "w1": jax.random.normal(kw1, (COUT, CIN, 3, 3, 3), jnp.float32) * 0.1,
        "b1": jax.random.normal(kb1, (COUT,), jnp.float32) * 0.1,
        "w2": jax.random.normal(kw2, (COUT, COUT, 3, 3, 3), jnp.float32) * 0.1,
        "b2": jax.random.normal(kb2, (COUT,), jnp.float32) * 0.1,
    }

    ref = jax.block_until_ready(_reference(x, params))

    # 1) Exact-parity f32 wide-K im2col path: tight tolerance.
    f32_fn = jax.jit(functools.partial(double_conv_block,
                                       compute_dtype=jnp.float32))
    out = jax.block_until_ready(f32_fn(x, params))
    assert out.shape == (N, COUT, D, H, W), out.shape
    assert jnp.allclose(out, ref, atol=1e-3, rtol=1e-3), \
        float(jnp.max(jnp.abs(out - ref)))

    # 2) f32 per-tap-accumulation path (the large-channel strategy): tight tol.
    acc_fn = jax.jit(functools.partial(double_conv_block,
                                       compute_dtype=jnp.float32,
                                       accumulate_taps=True))
    out_acc = jax.block_until_ready(acc_fn(x, params))
    assert jnp.allclose(out_acc, ref, atol=1e-3, rtol=1e-3), \
        float(jnp.max(jnp.abs(out_acc - ref)))

    # 3) Default bf16-operand / f32-accumulation path: bf16-level tolerance.
    out_bf16 = jax.block_until_ready(jax.jit(double_conv_block)(x, params))
    assert jnp.allclose(out_bf16, ref, atol=6e-2, rtol=6e-2), \
        float(jnp.max(jnp.abs(out_bf16 - ref)))

    print("KERNEL_OK")
</pallas_src>

<mosaic_0001>
module attributes {stable_mosaic.version = 11 : i64} {
  func.func @kernel(%arg0: i32, %arg1: memref<1x8x1280xf32, #tpu.memory_space<vmem>>, %arg2: memref<8x216xf32, #tpu.memory_space<vmem>>, %arg3: memref<8x1xf32, #tpu.memory_space<vmem>>, %arg4: memref<8x216xf32, #tpu.memory_space<vmem>>, %arg5: memref<8x1xf32, #tpu.memory_space<vmem>>, %arg6: memref<1x1024xf32, #tpu.memory_space<vmem>>, %arg7: memref<1x8x1024xf32, #tpu.memory_space<vmem>>, %arg8: memref<216x1024xf32, #tpu.memory_space<vmem>>, %arg9: memref<8x1280xf32, #tpu.memory_space<vmem>>) attributes {dimension_semantics = [#tpu.dimension_semantics<parallel>], iteration_bounds = array<i64: 2>, scalar_prefetch = 0 : i64, scratch_operands = 2 : i64, tpu.core_type = #tpu.core_type<tc>, window_params = [{transform_indices = @transform_0, window_bounds = array<i64: 1, 8, 1280>}, {pipeline_mode = #tpu.pipeline_mode<synchronous>, transform_indices = @transform_1, window_bounds = array<i64: 8, 216>}, {pipeline_mode = #tpu.pipeline_mode<synchronous>, transform_indices = @transform_2, window_bounds = array<i64: 8, 1>}, {pipeline_mode = #tpu.pipeline_mode<synchronous>, transform_indices = @transform_3, window_bounds = array<i64: 8, 216>}, {pipeline_mode = #tpu.pipeline_mode<synchronous>, transform_indices = @transform_4, window_bounds = array<i64: 8, 1>}, {pipeline_mode = #tpu.pipeline_mode<synchronous>, transform_indices = @transform_5, window_bounds = array<i64: 1, 1024>}, {transform_indices = @transform_6, window_bounds = array<i64: 1, 8, 1024>}]} {
    %cst = arith.constant 0.000000e+00 : f32
    %0 = vector.broadcast %cst : f32 to vector<8x128xf32>
    %c0 = arith.constant 0 : index
    %c0_0 = arith.constant 0 : index
    %1 = vector.load %arg9[%c0, %c0_0] : memref<8x1280xf32, #tpu.memory_space<vmem>>, vector<8x128xf32>
    tpu.vector_store %arg9[%c0, %c0_0], %0 {strides = array<i32>} : memref<8x1280xf32, #tpu.memory_space<vmem>>, vector<8x128xf32>,
    %cst_1 = arith.constant 0.000000e+00 : f32
    %2 = vector.broadcast %cst_1 : f32 to vector<8x128xf32>
    %c0_2 = arith.constant 0 : index
    %c1152 = arith.constant 1152 : index
    %3 = vector.load %arg9[%c0_2, %c1152] : memref<8x1280xf32, #tpu.memory_space<vmem>>, vector<8x128xf32>
    tpu.vector_store %arg9[%c0_2, %c1152], %2 {strides = array<i32>} : memref<8x1280xf32, #tpu.memory_space<vmem>>, vector<8x128xf32>,
    %c0_3 = arith.constant 0 : index
    %c0_4 = arith.constant 0 : index
    %c0_5 = arith.constant 0 : index
    %4 = vector.load %arg1[%c0_3, %c0_4, %c0_5] : memref<1x8x1280xf32, #tpu.memory_space<vmem>>, vector<1x8x1280xf32>
    %5 = vector.shape_cast %4 : vector<1x8x1280xf32> to vector<8x1280xf32>
    %6 = vector.extract_strided_slice %5 {offsets = [0, 17], sizes = [8, 1024], strides = [1, 1]} : vector<8x1280xf32> to vector<8x1024xf32>
    %c0_6 = arith.constant 0 : index
    %c0_7 = arith.constant 0 : index
    %7 = vector.load %arg8[%c0_6, %c0_7] : memref<216x1024xf32, #tpu.memory_space<vmem>>, vector<8x1024xf32>
    tpu.vector_store %arg8[%c0_6, %c0_7], %6 {strides = array<i32>} : memref<216x1024xf32, #tpu.memory_space<vmem>>, vector<8x1024xf32>,
    %8 = vector.extract_strided_slice %5 {offsets = [0, 18], sizes = [8, 1024], strides = [1, 1]} : vector<8x1280xf32> to vector<8x1024xf32>
    %c8 = arith.constant 8 : index
    %c0_8 = arith.constant 0 : index
    %9 = vector.load %arg8[%c8, %c0_8] : memref<216x1024xf32, #tpu.memory_space<vmem>>, vector<8x1024xf32>
    tpu.vector_store %arg8[%c8, %c0_8], %8 {strides = array<i32>} : memref<216x1024xf32, #tpu.memory_space<vmem>>, vector<8x1024xf32>,
    %10 = vector.extract_strided_slice %5 {offsets = [0, 19], sizes = [8, 1024], strides = [1, 1]} : vector<8x1280xf32> to vector<8x1024xf32>
    %c16 = arith.constant 16 : index
    %c0_9 = arith.constant 0 : index
    %11 = vector.load %arg8[%c16, %c0_9] : memref<216x1024xf32, #tpu.memory_space<vmem>>, vector<8x1024xf32>
    tpu.vector_store %arg8[%c16, %c0_9], %10 {strides = array<i32>} : memref<216x1024xf32, #tpu.memory_space<vmem>>, vector<8x1024xf32>,
    %12 = vector.extract_strided_slice %5 {offsets = [0, 27], sizes = [8, 1024], strides = [1, 1]} : vector<8x1280xf32> to vector<8x1024xf32>
    %c24 = arith.constant 24 : index
    %c0_10 = arith.constant 0 : index
    %13 = vector.load %arg8[%c24, %c0_10] : memref<216x1024xf32, #tpu.memory_space<vmem>>, vector<8x1024xf32>
    tpu.vector_store %arg8[%c24, %c0_10], %12 {strides = array<i32>} : memref<216x1024xf32, #tpu.memory_space<vmem>>, vector<8x1024xf32>,
    %14 = vector.extract_strided_slice %5 {offsets = [0, 28], sizes = [8, 1024], strides = [1, 1]} : vector<8x1280xf32> to vector<8x1024xf32>
    %c32 = arith.constant 32 : index
    %c0_11 = arith.constant 0 : index
    %15 = vector.load %arg8[%c32, %c0_11] : memref<216x1024xf32, #tpu.memory_space<vmem>>, vector<8x1024xf32>
    tpu.vector_store %arg8[%c32, %c0_11], %14 {strides = array<i32>} : memref<216x1024xf32, #tpu.memory_space<vmem>>, vector<8x1024xf32>,
    %16 = vector.extract_strided_slice %5 {offsets = [0, 29], sizes = [8, 1024], strides = [1, 1]} : vector<8x1280xf32> to vector<8x1024xf32>
    %c40 = arith.constant 40 : index
    %c0_12 = arith.constant 0 : index
    %17 = vector.load %arg8[%c40, %c0_12] : memref<216x1024xf32, #tpu.memory_space<vmem>>, vector<8x1024xf32>
    tpu.vector_store %arg8[%c40, %c0_12], %16 {strides = array<i32>} : memref<216x1024xf32, #tpu.memory_space<vmem>>, vector<8x1024xf32>,
    %18 = vector.extract_strided_slice %5 {offsets = [0, 37], sizes = [8, 1024], strides = [1, 1]} : vector<8x1280xf32> to vector<8x1024xf32>
    %c48 = arith.constant 48 : index
    %c0_13 = arith.constant 0 : index
    %19 = vector.load %arg8[%c48, %c0_13] : memref<216x1024xf32, #tpu.memory_space<vmem>>, vector<8x1024xf32>
    tpu.vector_store %arg8[%c48, %c0_13], %18 {strides = array<i32>} : memref<216x1024xf32, #tpu.memory_space<vmem>>, vector<8x1024xf32>,
    %20 = vector.extract_strided_slice %5 {offsets = [0, 38], sizes = [8, 1024], strides = [1, 1]} : vector<8x1280xf32> to vector<8x1024xf32>
    %c56 = arith.constant 56 : index
    %c0_14 = arith.constant 0 : index
    %21 = vector.load %arg8[%c56, %c0_14] : memref<216x1024xf32, #tpu.memory_space<vmem>>, vector<8x1024xf32>
    tpu.vector_store %arg8[%c56, %c0_14], %20 {strides = array<i32>} : memref<216x1024xf32, #tpu.memory_space<vmem>>, vector<8x1024xf32>,
    %22 = vector.extract_strided_slice %5 {offsets = [0, 39], sizes = [8, 1024], strides = [1, 1]} : vector<8x1280xf32> to vector<8x1024xf32>
    %c64 = arith.constant 64 : index
    %c0_15 = arith.constant 0 : index
    %23 = vector.load %arg8[%c64, %c0_15] : memref<216x1024xf32, #tpu.memory_space<vmem>>, vector<8x1024xf32>
    tpu.vector_store %arg8[%c64, %c0_15], %22 {strides = array<i32>} : memref<216x1024xf32, #tpu.memory_space<vmem>>, vector<8x1024xf32>,
    %24 = vector.extract_strided_slice %5 {offsets = [0, 117], sizes = [8, 1024], strides = [1, 1]} : vector<8x1280xf32> to vector<8x1024xf32>
    %c72 = arith.constant 72 : index
    %c0_16 = arith.constant 0 : index
    %25 = vector.load %arg8[%c72, %c0_16] : memref<216x1024xf32, #tpu.memory_space<vmem>>, vector<8x1024xf32>
    tpu.vector_store %arg8[%c72, %c0_16], %24 {strides = array<i32>} : memref<216x1024xf32, #tpu.memory_space<vmem>>, vector<8x1024xf32>,
    %26 = vector.extract_strided_slice %5 {offsets = [0, 118], sizes = [8, 1024], strides = [1, 1]} : vector<8x1280xf32> to vector<8x1024xf32>
    %c80 = arith.constant 80 : index
    %c0_17 = arith.constant 0 : index
    %27 = vector.load %arg8[%c80, %c0_17] : memref<216x1024xf32, #tpu.memory_space<vmem>>, vector<8x1024xf32>
    tpu.vector_store %arg8[%c80, %c0_17], %26 {strides = array<i32>} : memref<216x1024xf32, #tpu.memory_space<vmem>>, vector<8x1024xf32>,
    %28 = vector.extract_strided_slice %5 {offsets = [0, 119], sizes = [8, 1024], strides = [1, 1]} : vector<8x1280xf32> to vector<8x1024xf32>
    %c88 = arith.constant 88 : index
    %c0_18 = arith.constant 0 : index
    %29 = vector.load %arg8[%c88, %c0_18] : memref<216x1024xf32, #tpu.memory_space<vmem>>, vector<8x1024xf32>
    tpu.vector_store %arg8[%c88, %c0_18], %28 {strides = array<i32>} : memref<216x1024xf32, #tpu.memory_space<vmem>>, vector<8x1024xf32>,
    %30 = vector.extract_strided_slice %5 {offsets = [0, 127], sizes = [8, 1024], strides = [1, 1]} : vector<8x1280xf32> to vector<8x1024xf32>
    %c96 = arith.constant 96 : index
    %c0_19 = arith.constant 0 : index
    %31 = vector.load %arg8[%c96, %c0_19] : memref<216x1024xf32, #tpu.memory_space<vmem>>, vector<8x1024xf32>
    tpu.vector_store %arg8[%c96, %c0_19], %30 {strides = array<i32>} : memref<216x1024xf32, #tpu.memory_space<vmem>>, vector<8x1024xf32>,
    %32 = vector.extract_strided_slice %5 {offsets = [0, 128], sizes = [8, 1024], strides = [1, 1]} : vector<8x1280xf32> to vector<8x1024xf32>
    %c104 = arith.constant 104 : index
    %c0_20 = arith.constant 0 : index
    %33 = vector.load %arg8[%c104, %c0_20] : memref<216x1024xf32, #tpu.memory_space<vmem>>, vector<8x1024xf32>
    tpu.vector_store %arg8[%c104, %c0_20], %32 {strides = array<i32>} : memref<216x1024xf32, #tpu.memory_space<vmem>>, vector<8x1024xf32>,
    %34 = vector.extract_strided_slice %5 {offsets = [0, 129], sizes = [8, 1024], strides = [1, 1]} : vector<8x1280xf32> to vector<8x1024xf32>
    %c112 = arith.constant 112 : index
    %c0_21 = arith.constant 0 : index
    %35 = vector.load %arg8[%c112, %c0_21] : memref<216x1024xf32, #tpu.memory_space<vmem>>, vector<8x1024xf32>
    tpu.vector_store %arg8[%c112, %c0_21], %34 {strides = array<i32>} : memref<216x1024xf32, #tpu.memory_space<vmem>>, vector<8x1024xf32>,
    %36 = vector.extract_strided_slice %5 {offsets = [0, 137], sizes = [8, 1024], strides = [1, 1]} : vector<8x1280xf32> to vector<8x1024xf32>
    %c120 = arith.constant 120 : index
    %c0_22 = arith.constant 0 : index
    %37 = vector.load %arg8[%c120, %c0_22] : memref<216x1024xf32, #tpu.memory_space<vmem>>, vector<8x1024xf32>
    tpu.vector_store %arg8[%c120, %c0_22], %36 {strides = array<i32>} : memref<216x1024xf32, #tpu.memory_space<vmem>>, vector<8x1024xf32>,
    %38 = vector.extract_strided_slice %5 {offsets = [0, 138], sizes = [8, 1024], strides = [1, 1]} : vector<8x1280xf32> to vector<8x1024xf32>
    %c128 = arith.constant 128 : index
    %c0_23 = arith.constant 0 : index
    %39 = vector.load %arg8[%c128, %c0_23] : memref<216x1024xf32, #tpu.memory_space<vmem>>, vector<8x1024xf32>
    tpu.vector_store %arg8[%c128, %c0_23], %38 {strides = array<i32>} : memref<216x1024xf32, #tpu.memory_space<vmem>>, vector<8x1024xf32>,
    %40 = vector.extract_strided_slice %5 {offsets = [0, 139], sizes = [8, 1024], strides = [1, 1]} : vector<8x1280xf32> to vector<8x1024xf32>
    %c136 = arith.constant 136 : index
    %c0_24 = arith.constant 0 : index
    %41 = vector.load %arg8[%c136, %c0_24] : memref<216x1024xf32, #tpu.memory_space<vmem>>, vector<8x1024xf32>
    tpu.vector_store %arg8[%c136, %c0_24], %40 {strides = array<i32>} : memref<216x1024xf32, #tpu.memory_space<vmem>>, vector<8x1024xf32>,
    %42 = vector.extract_strided_slice %5 {offsets = [0, 217], sizes = [8, 1024], strides = [1, 1]} : vector<8x1280xf32> to vector<8x1024xf32>
    %c144 = arith.constant 144 : index
    %c0_25 = arith.constant 0 : index
    %43 = vector.load %arg8[%c144, %c0_25] : memref<216x1024xf32, #tpu.memory_space<vmem>>, vector<8x1024xf32>
    tpu.vector_store %arg8[%c144, %c0_25], %42 {strides = array<i32>} : memref<216x1024xf32, #tpu.memory_space<vmem>>, vector<8x1024xf32>,
    %44 = vector.extract_strided_slice %5 {offsets = [0, 218], sizes = [8, 1024], strides = [1, 1]} : vector<8x1280xf32> to vector<8x1024xf32>
    %c152 = arith.constant 152 : index
    %c0_26 = arith.constant 0 : index
    %45 = vector.load %arg8[%c152, %c0_26] : memref<216x1024xf32, #tpu.memory_space<vmem>>, vector<8x1024xf32>
    tpu.vector_store %arg8[%c152, %c0_26], %44 {strides = array<i32>} : memref<216x1024xf32, #tpu.memory_space<vmem>>, vector<8x1024xf32>,
    %46 = vector.extract_strided_slice %5 {offsets = [0, 219], sizes = [8, 1024], strides = [1, 1]} : vector<8x1280xf32> to vector<8x1024xf32>
    %c160 = arith.constant 160 : index
    %c0_27 = arith.constant 0 : index
    %47 = vector.load %arg8[%c160, %c0_27] : memref<216x1024xf32, #tpu.memory_space<vmem>>, vector<8x1024xf32>
    tpu.vector_store %arg8[%c160, %c0_27], %46 {strides = array<i32>} : memref<216x1024xf32, #tpu.memory_space<vmem>>, vector<8x1024xf32>,
    %48 = vector.extract_strided_slice %5 {offsets = [0, 227], sizes = [8, 1024], strides = [1, 1]} : vector<8x1280xf32> to vector<8x1024xf32>
    %c168 = arith.constant 168 : index
    %c0_28 = arith.constant 0 : index
    %49 = vector.load %arg8[%c168, %c0_28] : memref<216x1024xf32, #tpu.memory_space<vmem>>, vector<8x1024xf32>
    tpu.vector_store %arg8[%c168, %c0_28], %48 {strides = array<i32>} : memref<216x1024xf32, #tpu.memory_space<vmem>>, vector<8x1024xf32>,
    %50 = vector.extract_strided_slice %5 {offsets = [0, 228], sizes = [8, 1024], strides = [1, 1]} : vector<8x1280xf32> to vector<8x1024xf32>
    %c176 = arith.constant 176 : index
    %c0_29 = arith.constant 0 : index
    %51 = vector.load %arg8[%c176, %c0_29] : memref<216x1024xf32, #tpu.memory_space<vmem>>, vector<8x1024xf32>
    tpu.vector_store %arg8[%c176, %c0_29], %50 {strides = array<i32>} : memref<216x1024xf32, #tpu.memory_space<vmem>>, vector<8x1024xf32>,
    %52 = vector.extract_strided_slice %5 {offsets = [0, 229], sizes = [8, 1024], strides = [1, 1]} : vector<8x1280xf32> to vector<8x1024xf32>
    %c184 = arith.constant 184 : index
    %c0_30 = arith.constant 0 : index
    %53 = vector.load %arg8[%c184, %c0_30] : memref<216x1024xf32, #tpu.memory_space<vmem>>, vector<8x1024xf32>
    tpu.vector_store %arg8[%c184, %c0_30], %52 {strides = array<i32>} : memref<216x1024xf32, #tpu.memory_space<vmem>>, vector<8x1024xf32>,
    %54 = vector.extract_strided_slice %5 {offsets = [0, 237], sizes = [8, 1024], strides = [1, 1]} : vector<8x1280xf32> to vector<8x1024xf32>
    %c192 = arith.constant 192 : index
    %c0_31 = arith.constant 0 : index
    %55 = vector.load %arg8[%c192, %c0_31] : memref<216x1024xf32, #tpu.memory_space<vmem>>, vector<8x1024xf32>
    tpu.vector_store %arg8[%c192, %c0_31], %54 {strides = array<i32>} : memref<216x1024xf32, #tpu.memory_space<vmem>>, vector<8x1024xf32>,
    %56 = vector.extract_strided_slice %5 {offsets = [0, 238], sizes = [8, 1024], strides = [1, 1]} : vector<8x1280xf32> to vector<8x1024xf32>
    %c200 = arith.constant 200 : index
    %c0_32 = arith.constant 0 : index
    %57 = vector.load %arg8[%c200, %c0_32] : memref<216x1024xf32, #tpu.memory_space<vmem>>, vector<8x1024xf32>
    tpu.vector_store %arg8[%c200, %c0_32], %56 {strides = array<i32>} : memref<216x1024xf32, #tpu.memory_space<vmem>>, vector<8x1024xf32>,
    %58 = vector.extract_strided_slice %5 {offsets = [0, 239], sizes = [8, 1024], strides = [1, 1]} : vector<8x1280xf32> to vector<8x1024xf32>
    %c208 = arith.constant 208 : index
    %c0_33 = arith.constant 0 : index
    %59 = vector.load %arg8[%c208, %c0_33] : memref<216x1024xf32, #tpu.memory_space<vmem>>, vector<8x1024xf32>
    tpu.vector_store %arg8[%c208, %c0_33], %58 {strides = array<i32>} : memref<216x1024xf32, #tpu.memory_space<vmem>>, vector<8x1024xf32>,
    %c0_34 = arith.constant 0 : index
    %c0_35 = arith.constant 0 : index
    %60 = vector.load %arg2[%c0_34, %c0_35] : memref<8x216xf32, #tpu.memory_space<vmem>>, vector<8x216xf32>
    %c0_36 = arith.constant 0 : index
    %c0_37 = arith.constant 0 : index
    %61 = vector.load %arg8[%c0_36, %c0_37] : memref<216x1024xf32, #tpu.memory_space<vmem>>, vector<216x1024xf32>
    %cst_38 = arith.constant dense<0.000000e+00> : vector<8x1024xf32>
    %62 = tpu.matmul %60, %61, %cst_38 {dimension_numbers = #tpu.dot_dimension_numbers<[1], [0], [0], [1], [0, 0, 1, 1], [], []>} : vector<8x216xf32>, vector<216x1024xf32>, vector<8x1024xf32> -> vector<8x1024xf32>
    %c0_39 = arith.constant 0 : index
    %c0_40 = arith.constant 0 : index
    %63 = vector.load %arg3[%c0_39, %c0_40] : memref<8x1xf32, #tpu.memory_space<vmem>>, vector<8x1xf32>
    %64 = vector.broadcast %63 : vector<8x1xf32> to vector<8x1024xf32>
    %65 = arith.addf %62, %64 : vector<8x1024xf32>
    %cst_41 = arith.constant 0.000000e+00 : f32
    %66 = vector.broadcast %cst_41 : f32 to vector<8x1024xf32>
    %67 = arith.maximumf %65, %66 : vector<8x1024xf32>
    %c0_42 = arith.constant 0 : index
    %c0_43 = arith.constant 0 : index
    %68 = vector.load %arg6[%c0_42, %c0_43] : memref<1x1024xf32, #tpu.memory_space<vmem>>, vector<1x1024xf32>
    %69 = vector.broadcast %68 : vector<1x1024xf32> to vector<8x1024xf32>
    %70 = arith.mulf %67, %69 : vector<8x1024xf32>
    %c0_44 = arith.constant 0 : index
    %c128_45 = arith.constant 128 : index
    %71 = vector.load %arg9[%c0_44, %c128_45] : memref<8x1280xf32, #tpu.memory_space<vmem>>, vector<8x1024xf32>
    tpu.vector_store %arg9[%c0_44, %c128_45], %70 {strides = array<i32>} : memref<8x1280xf32, #tpu.memory_space<vmem>>, vector<8x1024xf32>,
    %c0_46 = arith.constant 0 : index
    %c0_47 = arith.constant 0 : index
    %72 = vector.load %arg9[%c0_46, %c0_47] : memref<8x1280xf32, #tpu.memory_space<vmem>>, vector<8x1280xf32>
    %73 = vector.extract_strided_slice %72 {offsets = [0, 17], sizes = [8, 1024], strides = [1, 1]} : vector<8x1280xf32> to vector<8x1024xf32>
    %c0_48 = arith.constant 0 : index
    %c0_49 = arith.constant 0 : index
    %74 = vector.load %arg8[%c0_48, %c0_49] : memref<216x1024xf32, #tpu.memory_space<vmem>>, vector<8x1024xf32>
    tpu.vector_store %arg8[%c0_48, %c0_49], %73 {strides = array<i32>} : memref<216x1024xf32, #tpu.memory_space<vmem>>, vector<8x1024xf32>,
    %75 = vector.extract_strided_slice %72 {offsets = [0, 18], sizes = [8, 1024], strides = [1, 1]} : vector<8x1280xf32> to vector<8x1024xf32>
    %c8_50 = arith.constant 8 : index
    %c0_51 = arith.constant 0 : index
    %76 = vector.load %arg8[%c8_50, %c0_51] : memref<216x1024xf32, #tpu.memory_space<vmem>>, vector<8x1024xf32>
    tpu.vector_store %arg8[%c8_50, %c0_51], %75 {strides = array<i32>} : memref<216x1024xf32, #tpu.memory_space<vmem>>, vector<8x1024xf32>,
    %77 = vector.extract_strided_slice %72 {offsets = [0, 19], sizes = [8, 1024], strides = [1, 1]} : vector<8x1280xf32> to vector<8x1024xf32>
    %c16_52 = arith.constant 16 : index
    %c0_53 = arith.constant 0 : index
    %78 = vector.load %arg8[%c16_52, %c0_53] : memref<216x1024xf32, #tpu.memory_space<vmem>>, vector<8x1024xf32>
    tpu.vector_store %arg8[%c16_52, %c0_53], %77 {strides = array<i32>} : memref<216x1024xf32, #tpu.memory_space<vmem>>, vector<8x1024xf32>,
    %79 = vector.extract_strided_slice %72 {offsets = [0, 27], sizes = [8, 1024], strides = [1, 1]} : vector<8x1280xf32> to vector<8x1024xf32>
    %c24_54 = arith.constant 24 : index
    %c0_55 = arith.constant 0 : index
    %80 = vector.load %arg8[%c24_54, %c0_55] : memref<216x1024xf32, #tpu.memory_space<vmem>>, vector<8x1024xf32>
    tpu.vector_store %arg8[%c24_54, %c0_55], %79 {strides = array<i32>} : memref<216x1024xf32, #tpu.memory_space<vmem>>, vector<8x1024xf32>,
    %81 = vector.extract_strided_slice %72 {offsets = [0, 28], sizes = [8, 1024], strides = [1, 1]} : vector<8x1280xf32> to vector<8x1024xf32>
    %c32_56 = arith.constant 32 : index
    %c0_57 = arith.constant 0 : index
    %82 = vector.load %arg8[%c32_56, %c0_57] : memref<216x1024xf32, #tpu.memory_space<vmem>>, vector<8x1024xf32>
    tpu.vector_store %arg8[%c32_56, %c0_57], %81 {strides = array<i32>} : memref<216x1024xf32, #tpu.memory_space<vmem>>, vector<8x1024xf32>,
    %83 = vector.extract_strided_slice %72 {offsets = [0, 29], sizes = [8, 1024], strides = [1, 1]} : vector<8x1280xf32> to vector<8x1024xf32>
    %c40_58 = arith.constant 40 : index
    %c0_59 = arith.constant 0 : index
    %84 = vector.load %arg8[%c40_58, %c0_59] : memref<216x1024xf32, #tpu.memory_space<vmem>>, vector<8x1024xf32>
    tpu.vector_store %arg8[%c40_58, %c0_59], %83 {strides = array<i32>} : memref<216x1024xf32, #tpu.memory_space<vmem>>, vector<8x1024xf32>,
    %85 = vector.extract_strided_slice %72 {offsets = [0, 37], sizes = [8, 1024], strides = [1, 1]} : vector<8x1280xf32> to vector<8x1024xf32>
    %c48_60 = arith.constant 48 : index
    %c0_61 = arith.constant 0 : index
    %86 = vector.load %arg8[%c48_60, %c0_61] : memref<216x1024xf32, #tpu.memory_space<vmem>>, vector<8x1024xf32>
    tpu.vector_store %arg8[%c48_60, %c0_61], %85 {strides = array<i32>} : memref<216x1024xf32, #tpu.memory_space<vmem>>, vector<8x1024xf32>,
    %87 = vector.extract_strided_slice %72 {offsets = [0, 38], sizes = [8, 1024], strides = [1, 1]} : vector<8x1280xf32> to vector<8x1024xf32>
    %c56_62 = arith.constant 56 : index
    %c0_63 = arith.constant 0 : index
    %88 = vector.load %arg8[%c56_62, %c0_63] : memref<216x1024xf32, #tpu.memory_space<vmem>>, vector<8x1024xf32>
    tpu.vector_store %arg8[%c56_62, %c0_63], %87 {strides = array<i32>} : memref<216x1024xf32, #tpu.memory_space<vmem>>, vector<8x1024xf32>,
    %89 = vector.extract_strided_slice %72 {offsets = [0, 39], sizes = [8, 1024], strides = [1, 1]} : vector<8x1280xf32> to vector<8x1024xf32>
    %c64_64 = arith.constant 64 : index
    %c0_65 = arith.constant 0 : index
    %90 = vector.load %arg8[%c64_64, %c0_65] : memref<216x1024xf32, #tpu.memory_space<vmem>>, vector<8x1024xf32>
    tpu.vector_store %arg8[%c64_64, %c0_65], %89 {strides = array<i32>} : memref<216x1024xf32, #tpu.memory_space<vmem>>, vector<8x1024xf32>,
    %91 = vector.extract_strided_slice %72 {offsets = [0, 117], sizes = [8, 1024], strides = [1, 1]} : vector<8x1280xf32> to vector<8x1024xf32>
    %c72_66 = arith.constant 72 : index
    %c0_67 = arith.constant 0 : index
    %92 = vector.load %arg8[%c72_66, %c0_67] : memref<216x1024xf32, #tpu.memory_space<vmem>>, vector<8x1024xf32>
    tpu.vector_store %arg8[%c72_66, %c0_67], %91 {strides = array<i32>} : memref<216x1024xf32, #tpu.memory_space<vmem>>, vector<8x1024xf32>,
    %93 = vector.extract_strided_slice %72 {offsets = [0, 118], sizes = [8, 1024], strides = [1, 1]} : vector<8x1280xf32> to vector<8x1024xf32>
    %c80_68 = arith.constant 80 : index
    %c0_69 = arith.constant 0 : index
    %94 = vector.load %arg8[%c80_68, %c0_69] : memref<216x1024xf32, #tpu.memory_space<vmem>>, vector<8x1024xf32>
    tpu.vector_store %arg8[%c80_68, %c0_69], %93 {strides = array<i32>} : memref<216x1024xf32, #tpu.memory_space<vmem>>, vector<8x1024xf32>,
    %95 = vector.extract_strided_slice %72 {offsets = [0, 119], sizes = [8, 1024], strides = [1, 1]} : vector<8x1280xf32> to vector<8x1024xf32>
    %c88_70 = arith.constant 88 : index
    %c0_71 = arith.constant 0 : index
    %96 = vector.load %arg8[%c88_70, %c0_71] : memref<216x1024xf32, #tpu.memory_space<vmem>>, vector<8x1024xf32>
    tpu.vector_store %arg8[%c88_70, %c0_71], %95 {strides = array<i32>} : memref<216x1024xf32, #tpu.memory_space<vmem>>, vector<8x1024xf32>,
    %97 = vector.extract_strided_slice %72 {offsets = [0, 127], sizes = [8, 1024], strides = [1, 1]} : vector<8x1280xf32> to vector<8x1024xf32>
    %c96_72 = arith.constant 96 : index
    %c0_73 = arith.constant 0 : index
    %98 = vector.load %arg8[%c96_72, %c0_73] : memref<216x1024xf32, #tpu.memory_space<vmem>>, vector<8x1024xf32>
    tpu.vector_store %arg8[%c96_72, %c0_73], %97 {strides = array<i32>} : memref<216x1024xf32, #tpu.memory_space<vmem>>, vector<8x1024xf32>,
    %99 = vector.extract_strided_slice %72 {offsets = [0, 128], sizes = [8, 1024], strides = [1, 1]} : vector<8x1280xf32> to vector<8x1024xf32>
    %c104_74 = arith.constant 104 : index
    %c0_75 = arith.constant 0 : index
    %100 = vector.load %arg8[%c104_74, %c0_75] : memref<216x1024xf32, #tpu.memory_space<vmem>>, vector<8x1024xf32>
    tpu.vector_store %arg8[%c104_74, %c0_75], %99 {strides = array<i32>} : memref<216x1024xf32, #tpu.memory_space<vmem>>, vector<8x1024xf32>,
    %101 = vector.extract_strided_slice %72 {offsets = [0, 129], sizes = [8, 1024], strides = [1, 1]} : vector<8x1280xf32> to vector<8x1024xf32>
    %c112_76 = arith.constant 112 : index
    %c0_77 = arith.constant 0 : index
    %102 = vector.load %arg8[%c112_76, %c0_77] : memref<216x1024xf32, #tpu.memory_space<vmem>>, vector<8x1024xf32>
    tpu.vector_store %arg8[%c112_76, %c0_77], %101 {strides = array<i32>} : memref<216x1024xf32, #tpu.memory_space<vmem>>, vector<8x1024xf32>,
    %103 = vector.extract_strided_slice %72 {offsets = [0, 137], sizes = [8, 1024], strides = [1, 1]} : vector<8x1280xf32> to vector<8x1024xf32>
    %c120_78 = arith.constant 120 : index
    %c0_79 = arith.constant 0 : index
    %104 = vector.load %arg8[%c120_78, %c0_79] : memref<216x1024xf32, #tpu.memory_space<vmem>>, vector<8x1024xf32>
    tpu.vector_store %arg8[%c120_78, %c0_79], %103 {strides = array<i32>} : memref<216x1024xf32, #tpu.memory_space<vmem>>, vector<8x1024xf32>,
    %105 = vector.extract_strided_slice %72 {offsets = [0, 138], sizes = [8, 1024], strides = [1, 1]} : vector<8x1280xf32> to vector<8x1024xf32>
    %c128_80 = arith.constant 128 : index
    %c0_81 = arith.constant 0 : index
    %106 = vector.load %arg8[%c128_80, %c0_81] : memref<216x1024xf32, #tpu.memory_space<vmem>>, vector<8x1024xf32>
    tpu.vector_store %arg8[%c128_80, %c0_81], %105 {strides = array<i32>} : memref<216x1024xf32, #tpu.memory_space<vmem>>, vector<8x1024xf32>,
    %107 = vector.extract_strided_slice %72 {offsets = [0, 139], sizes = [8, 1024], strides = [1, 1]} : vector<8x1280xf32> to vector<8x1024xf32>
    %c136_82 = arith.constant 136 : index
    %c0_83 = arith.constant 0 : index
    %108 = vector.load %arg8[%c136_82, %c0_83] : memref<216x1024xf32, #tpu.memory_space<vmem>>, vector<8x1024xf32>
    tpu.vector_store %arg8[%c136_82, %c0_83], %107 {strides = array<i32>} : memref<216x1024xf32, #tpu.memory_space<vmem>>, vector<8x1024xf32>,
    %109 = vector.extract_strided_slice %72 {offsets = [0, 217], sizes = [8, 1024], strides = [1, 1]} : vector<8x1280xf32> to vector<8x1024xf32>
    %c144_84 = arith.constant 144 : index
    %c0_85 = arith.constant 0 : index
    %110 = vector.load %arg8[%c144_84, %c0_85] : memref<216x1024xf32, #tpu.memory_space<vmem>>, vector<8x1024xf32>
    tpu.vector_store %arg8[%c144_84, %c0_85], %109 {strides = array<i32>} : memref<216x1024xf32, #tpu.memory_space<vmem>>, vector<8x1024xf32>,
    %111 = vector.extract_strided_slice %72 {offsets = [0, 218], sizes = [8, 1024], strides = [1, 1]} : vector<8x1280xf32> to vector<8x1024xf32>
    %c152_86 = arith.constant 152 : index
    %c0_87 = arith.constant 0 : index
    %112 = vector.load %arg8[%c152_86, %c0_87] : memref<216x1024xf32, #tpu.memory_space<vmem>>, vector<8x1024xf32>
    tpu.vector_store %arg8[%c152_86, %c0_87], %111 {strides = array<i32>} : memref<216x1024xf32, #tpu.memory_space<vmem>>, vector<8x1024xf32>,
    %113 = vector.extract_strided_slice %72 {offsets = [0, 219], sizes = [8, 1024], strides = [1, 1]} : vector<8x1280xf32> to vector<8x1024xf32>
    %c160_88 = arith.constant 160 : index
    %c0_89 = arith.constant 0 : index
    %114 = vector.load %arg8[%c160_88, %c0_89] : memref<216x1024xf32, #tpu.memory_space<vmem>>, vector<8x1024xf32>
    tpu.vector_store %arg8[%c160_88, %c0_89], %113 {strides = array<i32>} : memref<216x1024xf32, #tpu.memory_space<vmem>>, vector<8x1024xf32>,
    %115 = vector.extract_strided_slice %72 {offsets = [0, 227], sizes = [8, 1024], strides = [1, 1]} : vector<8x1280xf32> to vector<8x1024xf32>
    %c168_90 = arith.constant 168 : index
    %c0_91 = arith.constant 0 : index
    %116 = vector.load %arg8[%c168_90, %c0_91] : memref<216x1024xf32, #tpu.memory_space<vmem>>, vector<8x1024xf32>
    tpu.vector_store %arg8[%c168_90, %c0_91], %115 {strides = array<i32>} : memref<216x1024xf32, #tpu.memory_space<vmem>>, vector<8x1024xf32>,
    %117 = vector.extract_strided_slice %72 {offsets = [0, 228], sizes = [8, 1024], strides = [1, 1]} : vector<8x1280xf32> to vector<8x1024xf32>
    %c176_92 = arith.constant 176 : index
    %c0_93 = arith.constant 0 : index
    %118 = vector.load %arg8[%c176_92, %c0_93] : memref<216x1024xf32, #tpu.memory_space<vmem>>, vector<8x1024xf32>
    tpu.vector_store %arg8[%c176_92, %c0_93], %117 {strides = array<i32>} : memref<216x1024xf32, #tpu.memory_space<vmem>>, vector<8x1024xf32>,
    %119 = vector.extract_strided_slice %72 {offsets = [0, 229], sizes = [8, 1024], strides = [1, 1]} : vector<8x1280xf32> to vector<8x1024xf32>
    %c184_94 = arith.constant 184 : index
    %c0_95 = arith.constant 0 : index
    %120 = vector.load %arg8[%c184_94, %c0_95] : memref<216x1024xf32, #tpu.memory_space<vmem>>, vector<8x1024xf32>
    tpu.vector_store %arg8[%c184_94, %c0_95], %119 {strides = array<i32>} : memref<216x1024xf32, #tpu.memory_space<vmem>>, vector<8x1024xf32>,
    %121 = vector.extract_strided_slice %72 {offsets = [0, 237], sizes = [8, 1024], strides = [1, 1]} : vector<8x1280xf32> to vector<8x1024xf32>
    %c192_96 = arith.constant 192 : index
    %c0_97 = arith.constant 0 : index
    %122 = vector.load %arg8[%c192_96, %c0_97] : memref<216x1024xf32, #tpu.memory_space<vmem>>, vector<8x1024xf32>
    tpu.vector_store %arg8[%c192_96, %c0_97], %121 {strides = array<i32>} : memref<216x1024xf32, #tpu.memory_space<vmem>>, vector<8x1024xf32>,
    %123 = vector.extract_strided_slice %72 {offsets = [0, 238], sizes = [8, 1024], strides = [1, 1]} : vector<8x1280xf32> to vector<8x1024xf32>
    %c200_98 = arith.constant 200 : index
    %c0_99 = arith.constant 0 : index
    %124 = vector.load %arg8[%c200_98, %c0_99] : memref<216x1024xf32, #tpu.memory_space<vmem>>, vector<8x1024xf32>
    tpu.vector_store %arg8[%c200_98, %c0_99], %123 {strides = array<i32>} : memref<216x1024xf32, #tpu.memory_space<vmem>>, vector<8x1024xf32>,
    %125 = vector.extract_strided_slice %72 {offsets = [0, 239], sizes = [8, 1024], strides = [1, 1]} : vector<8x1280xf32> to vector<8x1024xf32>
    %c208_100 = arith.constant 208 : index
    %c0_101 = arith.constant 0 : index
    %126 = vector.load %arg8[%c208_100, %c0_101] : memref<216x1024xf32, #tpu.memory_space<vmem>>, vector<8x1024xf32>
    tpu.vector_store %arg8[%c208_100, %c0_101], %125 {strides = array<i32>} : memref<216x1024xf32, #tpu.memory_space<vmem>>, vector<8x1024xf32>,
    %c0_102 = arith.constant 0 : index
    %c0_103 = arith.constant 0 : index
    %127 = vector.load %arg4[%c0_102, %c0_103] : memref<8x216xf32, #tpu.memory_space<vmem>>, vector<8x216xf32>
    %c0_104 = arith.constant 0 : index
    %c0_105 = arith.constant 0 : index
    %128 = vector.load %arg8[%c0_104, %c0_105] : memref<216x1024xf32, #tpu.memory_space<vmem>>, vector<216x1024xf32>
    %cst_106 = arith.constant dense<0.000000e+00> : vector<8x1024xf32>
    %129 = tpu.matmul %127, %128, %cst_106 {dimension_numbers = #tpu.dot_dimension_numbers<[1], [0], [0], [1], [0, 0, 1, 1], [], []>} : vector<8x216xf32>, vector<216x1024xf32>, vector<8x1024xf32> -> vector<8x1024xf32>
    %c0_107 = arith.constant 0 : index
    %c0_108 = arith.constant 0 : index
    %130 = vector.load %arg5[%c0_107, %c0_108] : memref<8x1xf32, #tpu.memory_space<vmem>>, vector<8x1xf32>
    %131 = vector.broadcast %130 : vector<8x1xf32> to vector<8x1024xf32>
    %132 = arith.addf %129, %131 : vector<8x1024xf32>
    %cst_109 = arith.constant 0.000000e+00 : f32
    %133 = vector.broadcast %cst_109 : f32 to vector<8x1024xf32>
    %134 = arith.maximumf %132, %133 : vector<8x1024xf32>
    %c0_110 = arith.constant 0 : index
    %c0_111 = arith.constant 0 : index
    %c0_112 = arith.constant 0 : index
    %135 = vector.load %arg7[%c0_110, %c0_111, %c0_112] : memref<1x8x1024xf32, #tpu.memory_space<vmem>>, vector<1x8x1024xf32>
    %136 = vector.shape_cast %135 : vector<1x8x1024xf32> to vector<8x1024xf32>
    %137 = vector.shape_cast %134 : vector<8x1024xf32> to vector<1x8x1024xf32>
    tpu.vector_store %arg7[%c0_110, %c0_111, %c0_112], %137 {strides = array<i32>} : memref<1x8x1024xf32, #tpu.memory_space<vmem>>, vector<1x8x1024xf32>,
    return
  }
  func.func @transform_0(%arg0: i32) -> (i32, i32, i32) {
    %c0_i32 = arith.constant 0 : i32
    %c0_i32_0 = arith.constant 0 : i32
    %c0_i32_1 = arith.constant 0 : i32
    return %arg0, %c0_i32, %c0_i32_0 : i32, i32, i32
  }
  func.func @transform_1(%arg0: i32) -> (i32, i32) {
    %c0_i32 = arith.constant 0 : i32
    %c0_i32_0 = arith.constant 0 : i32
    %c0_i32_1 = arith.constant 0 : i32
    return %c0_i32, %c0_i32_0 : i32, i32
  }
  func.func @transform_2(%arg0: i32) -> (i32, i32) {
    %c0_i32 = arith.constant 0 : i32
    %c0_i32_0 = arith.constant 0 : i32
    %c0_i32_1 = arith.constant 0 : i32
    return %c0_i32, %c0_i32_0 : i32, i32
  }
  func.func @transform_3(%arg0: i32) -> (i32, i32) {
    %c0_i32 = arith.constant 0 : i32
    %c0_i32_0 = arith.constant 0 : i32
    %c0_i32_1 = arith.constant 0 : i32
    return %c0_i32, %c0_i32_0 : i32, i32
  }
  func.func @transform_4(%arg0: i32) -> (i32, i32) {
    %c0_i32 = arith.constant 0 : i32
    %c0_i32_0 = arith.constant 0 : i32
    %c0_i32_1 = arith.constant 0 : i32
    return %c0_i32, %c0_i32_0 : i32, i32
  }
  func.func @transform_5(%arg0: i32) -> (i32, i32) {
    %c0_i32 = arith.constant 0 : i32
    %c0_i32_0 = arith.constant 0 : i32
    %c0_i32_1 = arith.constant 0 : i32
    return %c0_i32, %c0_i32_0 : i32, i32
  }
  func.func @transform_6(%arg0: i32) -> (i32, i32, i32) {
    %c0_i32 = arith.constant 0 : i32
    %c0_i32_0 = arith.constant 0 : i32
    %c0_i32_1 = arith.constant 0 : i32
    return %arg0, %c0_i32, %c0_i32_0 : i32, i32, i32
  }
}

</mosaic_0001>

<llo_original>
// kernel: double_conv_block.1
$region0: #{double_conv_block.1}
  #allocation0 [shape = 'u32[]', space=smem, size = 0x4, offset = 0x4, fixed_abs, tag = 'smem constant byte address 0x4 - core index']
  #allocation1 [shape = 'u32[72,128]{1,0:T(1,128)}', space=vmem, size = 0x9000, scoped, tag = 'internal scratch']
  #allocation2 [shape = 'f32[216,1024]{1,0:T(8,128)}', space=vmem, size = 0xd8000, scoped, tag = 'scratch operand']
  #allocation3 [shape = 'f32[8,1280]{1,0:T(8,128)}', space=vmem, size = 0xa000, scoped, tag = 'scratch operand']
  %s0 = inlined_call_operand.vmem [shape: f32[2,8,1280], index: 0, kind: input, shape index: {}]
  %s1 = inlined_call_operand.vmem [shape: f32[8,216], index: 1, kind: input, shape index: {}]
  %s2 = inlined_call_operand.vmem [shape: f32[8,1], index: 2, kind: input, shape index: {}]
  %s3 = inlined_call_operand.vmem [shape: f32[8,216], index: 3, kind: input, shape index: {}]
  %s4 = inlined_call_operand.vmem [shape: f32[8,1], index: 4, kind: input, shape index: {}]
  %s5 = inlined_call_operand.vmem [shape: f32[1,1024], index: 5, kind: input, shape index: {}]
  %s6 = inlined_call_operand.vmem [shape: f32[2,8,1024], index: 6, kind: output, shape index: {}]
  %s7 = sld [smem:[#allocation0]]
  $region57: #{double_conv_block.1} parent=0
    _
  %s9 = ssub.s32 1, %s7
  %s10 = scalar_select 0, %s9, %s7
  loop: start=0, step=1, limit=4
  $region2: #{double_conv_block.1} parent=0 // loop_pre_header
    _
  $region3: #{double_conv_block.1} parent=0 // loop_header
    %s12 = sphi 0, %s16
    %p13 = scmp.ge.s32.totalorder %s12, 4
    %s22 = sphi 0, %s24
    %s25 = sphi 0, %s22
    %s26 = sphi 0, %s25
    %s42 = sphi 0, %s26
    %s46 = sphi 0, %s46
    %s48 = sphi 0, %s46
    %s49 = sphi 0, %s48
    %s63 = sphi 0, %s49
    %s67 = sphi 0, %s67
    %s69 = sphi 0, %s67
    %s70 = sphi 0, %s69
    %s84 = sphi 0, %s70
    %s88 = sphi 0, %s88
    %s90 = sphi 0, %s88
    %s91 = sphi 0, %s90
    %s105 = sphi 0, %s91
    %s109 = sphi 0, %s109
    %s111 = sphi 0, %s109
    %s112 = sphi 0, %s111
    %s126 = sphi 0, %s112
    %s130 = sphi 0, %s130
    %s132 = sphi 0, %s130
    %s133 = sphi 0, %s132
    %s147 = sphi 0, %s133
    %s153 = sphi 0, %s155
    %s156 = sphi 0, %s153
    %s157 = sphi 0, %s156
    %s173 = sphi 0, %s157
  $region4: #{double_conv_block.1} parent=0 // loop_header_branch
    %15 = sbr.rel (%p13) target = $region8
  $region5: #{double_conv_block.1} parent=0 // loop_body
    %s17 = ssub.s32 %s12, 1
    %s18 = ssub.s32 %s12, 2
    %s19 = sadd.s32 %s12, 1
    %s20 = ssub.s32 %s12, %s19
    %p21 = scmp.eq.s32.totalorder %s20, 0
    %s23 = sadd.s32 %s22, 1
    %s24 = scalar_select %p21, %s22, %s23
    %p27 = pneg %p21
    %p28 = scmp.eq.s32.totalorder %s12, 1
    %p29 = por %p27, %p28
    %p30 = scmp.ne.s32.totalorder %s22, %s25
    %p31 = scmp.eq.s32.totalorder %s12, 0
    %p32 = por %p30, %p31
    %p33 = scmp.ne.s32.totalorder %s22, %s25
    %p34 = scmp.eq.s32.totalorder %s17, 1
    %p35 = por %p33, %p34
    %p36 = scmp.ne.s32.totalorder %s25, %s26
    %p37 = scmp.eq.s32.totalorder %s17, 0
    %p38 = por %p36, %p37
    %p39 = scmp.ne.s32.totalorder %s25, %s26
    %p40 = scmp.eq.s32.totalorder %s18, 1
    %p41 = por %p39, %p40
    %p43 = scmp.ne.s32.totalorder %s26, %s42
    %p44 = scmp.eq.s32.totalorder %s18, 0
    %p45 = por %p43, %p44
    %s47 = sadd.s32 %s46, 1
    %p50 = scmp.eq.s32.totalorder %s12, 1
    %p51 = scmp.ne.s32.totalorder %s46, %s48
    %p52 = scmp.eq.s32.totalorder %s12, 0
    %p53 = por %p51, %p52
    %p54 = scmp.ne.s32.totalorder %s46, %s48
    %p55 = scmp.eq.s32.totalorder %s17, 1
    %p56 = por %p54, %p55
    %p57 = scmp.ne.s32.totalorder %s48, %s49
    %p58 = scmp.eq.s32.totalorder %s17, 0
    %p59 = por %p57, %p58
    %p60 = scmp.ne.s32.totalorder %s48, %s49
    %p61 = scmp.eq.s32.totalorder %s18, 1
    %p62 = por %p60, %p61
    %p64 = scmp.ne.s32.totalorder %s49, %s63
    %p65 = scmp.eq.s32.totalorder %s18, 0
    %p66 = por %p64, %p65
    %s68 = sadd.s32 %s67, 1
    %p71 = scmp.eq.s32.totalorder %s12, 1
    %p72 = scmp.ne.s32.totalorder %s67, %s69
    %p73 = scmp.eq.s32.totalorder %s12, 0
    %p74 = por %p72, %p73
    %p75 = scmp.ne.s32.totalorder %s67, %s69
    %p76 = scmp.eq.s32.totalorder %s17, 1
    %p77 = por %p75, %p76
    %p78 = scmp.ne.s32.totalorder %s69, %s70
    %p79 = scmp.eq.s32.totalorder %s17, 0
    %p80 = por %p78, %p79
    %p81 = scmp.ne.s32.totalorder %s69, %s70
    %p82 = scmp.eq.s32.totalorder %s18, 1
    %p83 = por %p81, %p82
    %p85 = scmp.ne.s32.totalorder %s70, %s84
    %p86 = scmp.eq.s32.totalorder %s18, 0
    %p87 = por %p85, %p86
    %s89 = sadd.s32 %s88, 1
    %p92 = scmp.eq.s32.totalorder %s12, 1
    %p93 = scmp.ne.s32.totalorder %s88, %s90
    %p94 = scmp.eq.s32.totalorder %s12, 0
    %p95 = por %p93, %p94
    %p96 = scmp.ne.s32.totalorder %s88, %s90
    %p97 = scmp.eq.s32.totalorder %s17, 1
    %p98 = por %p96, %p97
    %p99 = scmp.ne.s32.totalorder %s90, %s91
    %p100 = scmp.eq.s32.totalorder %s17, 0
    %p101 = por %p99, %p100
    %p102 = scmp.ne.s32.totalorder %s90, %s91
    %p103 = scmp.eq.s32.totalorder %s18, 1
    %p104 = por %p102, %p103
    %p106 = scmp.ne.s32.totalorder %s91, %s105
    %p107 = scmp.eq.s32.totalorder %s18, 0
    %p108 = por %p106, %p107
    %s110 = sadd.s32 %s109, 1
    %p113 = scmp.eq.s32.totalorder %s12, 1
    %p114 = scmp.ne.s32.totalorder %s109, %s111
    %p115 = scmp.eq.s32.totalorder %s12, 0
    %p116 = por %p114, %p115
    %p117 = scmp.ne.s32.totalorder %s109, %s111
    %p118 = scmp.eq.s32.totalorder %s17, 1
    %p119 = por %p117, %p118
    %p120 = scmp.ne.s32.totalorder %s111, %s112
    %p121 = scmp.eq.s32.totalorder %s17, 0
    %p122 = por %p120, %p121
    %p123 = scmp.ne.s32.totalorder %s111, %s112
    %p124 = scmp.eq.s32.totalorder %s18, 1
    %p125 = por %p123, %p124
    %p127 = scmp.ne.s32.totalorder %s112, %s126
    %p128 = scmp.eq.s32.totalorder %s18, 0
    %p129 = por %p127, %p128
    %s131 = sadd.s32 %s130, 1
    %p134 = scmp.eq.s32.totalorder %s12, 1
    %p135 = scmp.ne.s32.totalorder %s130, %s132
    %p136 = scmp.eq.s32.totalorder %s12, 0
    %p137 = por %p135, %p136
    %p138 = scmp.ne.s32.totalorder %s130, %s132
    %p139 = scmp.eq.s32.totalorder %s17, 1
    %p140 = por %p138, %p139
    %p141 = scmp.ne.s32.totalorder %s132, %s133
    %p142 = scmp.eq.s32.totalorder %s17, 0
    %p143 = por %p141, %p142
    %p144 = scmp.ne.s32.totalorder %s132, %s133
    %p145 = scmp.eq.s32.totalorder %s18, 1
    %p146 = por %p144, %p145
    %p148 = scmp.ne.s32.totalorder %s133, %s147
    %p149 = scmp.eq.s32.totalorder %s18, 0
    %p150 = por %p148, %p149
    %s151 = ssub.s32 %s12, %s19
    %p152 = scmp.eq.s32.totalorder %s151, 0
    %s154 = sadd.s32 %s153, 1
    %s155 = scalar_select %p152, %s153, %s154
    %p158 = pneg %p152
    %p159 = scmp.eq.s32.totalorder %s12, 1
    %p160 = por %p158, %p159
    %p161 = scmp.ne.s32.totalorder %s153, %s156
    %p162 = scmp.eq.s32.totalorder %s12, 0
    %p163 = por %p161, %p162
    %p164 = scmp.ne.s32.totalorder %s153, %s156
    %p165 = scmp.eq.s32.totalorder %s17, 1
    %p166 = por %p164, %p165
    %p167 = scmp.ne.s32.totalorder %s156, %s157
    %p168 = scmp.eq.s32.totalorder %s17, 0
    %p169 = por %p167, %p168
    %p170 = scmp.ne.s32.totalorder %s156, %s157
    %p171 = scmp.eq.s32.totalorder %s18, 1
    %p172 = por %p170, %p171
    %p174 = scmp.ne.s32.totalorder %s157, %s173
    %p175 = scmp.eq.s32.totalorder %s18, 0
    %p176 = por %p174, %p175
    %p177 = scmp.le.s32.totalorder 1, %s12
    %p178 = scmp.lt.s32.totalorder %s12, 3
    %p179 = pnand %p177, %p178
    %p180 = pneg %p179
    // Predicated region
    $region9: #{double_conv_block.1} parent=5 // pred_check
      _
    $region10: #{double_conv_block.1} parent=5 // pred_check_branch
      %182 = sbr.rel (%p179) target = $region12
    $region11: #{double_conv_block.1} parent=5 // pred_region
      %s183 = ssub.s32 %s12, 1
      // Predicated region
      $region13: #{double_conv_block.1} parent=11 // pred_check
        %p184 = pneg %p59
      $region14: #{double_conv_block.1} parent=11 // pred_check_branch
        %186 = sbr.rel (%p184) target = $region16
      $region15: #{double_conv_block.1} parent=11 // pred_region
        _
      $region16: #{double_conv_block.1} parent=11 // pred_fallthru
        _
      // Predicated region
      $region17: #{double_conv_block.1} parent=11 // pred_check
        %p187 = pneg %p80
      $region18: #{double_conv_block.1} parent=11 // pred_check_branch
        %189 = sbr.rel (%p187) target = $region20
      $region19: #{double_conv_block.1} parent=11 // pred_region
        _
      $region20: #{double_conv_block.1} parent=11 // pred_fallthru
        _
      // Predicated region
      $region21: #{double_conv_block.1} parent=11 // pred_check
        %p190 = pneg %p101
      $region22: #{double_conv_block.1} parent=11 // pred_check_branch
        %192 = sbr.rel (%p190) target = $region24
      $region23: #{double_conv_block.1} parent=11 // pred_region
        _
      $region24: #{double_conv_block.1} parent=11 // pred_fallthru
        _
      // Predicated region
      $region25: #{double_conv_block.1} parent=11 // pred_check
        %p193 = pneg %p122
      $region26: #{double_conv_block.1} parent=11 // pred_check_branch
        %195 = sbr.rel (%p193) target = $region28
      $region27: #{double_conv_block.1} parent=11 // pred_region
        _
      $region28: #{double_conv_block.1} parent=11 // pred_fallthru
        _
      // Predicated region
      $region29: #{double_conv_block.1} parent=11 // pred_check
        %p196 = pneg %p143
      $region30: #{double_conv_block.1} parent=11 // pred_check_branch
        %198 = sbr.rel (%p196) target = $region32
      $region31: #{double_conv_block.1} parent=11 // pred_region
        _
      $region32: #{double_conv_block.1} parent=11 // pred_fallthru
        _
    $region12: #{double_conv_block.1} parent=5 // pred_fallthru
      _
    %p199 = scmp.lt.s32.totalorder %s12, 2
    // Predicated region
    $region33: #{double_conv_block.1} parent=5 // pred_check
      %p200 = pneg %p199
    $region34: #{double_conv_block.1} parent=5 // pred_check_branch
      %202 = sbr.rel (%p200) target = $region36
    $region35: #{double_conv_block.1} parent=5 // pred_region
      // Predicated region
      $region37: #{double_conv_block.1} parent=35 // pred_check
        %p203 = pneg %p32
      $region38: #{double_conv_block.1} parent=35 // pred_check_branch
        %205 = sbr.rel (%p203) target = $region40
      $region39: #{double_conv_block.1} parent=35 // pred_region
        %p206 = scmp.lt.s32.totalorder %s12, 1
        %s207 = scalar_select %p206, %s12, 1
        %s208 = smul.addr %s207, 10
        %s209 = smul.addr %s208, 8
        %s210 = scalar_lea.vmem %s0, %s209
      $region40: #{double_conv_block.1} parent=35 // pred_fallthru
        _
    $region36: #{double_conv_block.1} parent=5 // pred_fallthru
      _
    %p211 = scmp.le.s32.totalorder 1, %s12
    %p212 = scmp.lt.s32.totalorder %s12, 3
    %p213 = pnand %p211, %p212
    %p214 = pneg %p213
    // Predicated region
    $region41: #{double_conv_block.1} parent=5 // pred_check
      _
    $region42: #{double_conv_block.1} parent=5 // pred_check_branch
      %216 = sbr.rel (%p213) target = $region44
    $region43: #{double_conv_block.1} parent=5 // pred_region
      %s217 = ssub.s32 %s12, 1
      %p218 = scmp.lt.s32.totalorder %s17, 1
      %s219 = scalar_select %p218, %s17, 1
      %s220 = smul.addr %s219, 10
      %s221 = smul.addr %s220, 8
      %s222 = scalar_lea.vmem %s0, %s221
      %p223 = pneg %p38
      %p224 = pneg %p35
      %p225 = pneg %p59
      %p226 = pneg %p56
      %p227 = pneg %p80
      %p228 = pneg %p77
      %p229 = pneg %p101
      %p230 = pneg %p98
      %p231 = pneg %p122
      %p232 = pneg %p119
      %p233 = pneg %p143
      %p234 = pneg %p140
      %p235 = pneg %p169
      %p236 = pneg %p166
      %p237 = scmp.lt.s32.totalorder %s17, 1
      %s238 = scalar_select %p237, %s17, 1
      %s239 = smul.addr %s238, 8
      %s240 = smul.addr %s239, 8
      %s241 = scalar_lea.vmem %s6, %s240
      %p242 = scmp.lt.s32.totalorder %s17, 1
      %s243 = scalar_select %p242, %s17, 1
      %s244 = smul.addr %s243, 10
      %s245 = smul.addr %s244, 8
      %s246 = scalar_lea.vmem %s0, %s245
      %p247 = scmp.lt.s32.totalorder %s17, 1
      %s248 = scalar_select %p247, %s17, 1
      %s249 = smul.addr %s248, 8
      %s250 = smul.addr %s249, 8
      %s251 = scalar_lea.vmem %s6, %s250
      %252 = vst [vmem:[#allocation3] sm:$0xff] 0.0
      %253 = vst [vmem:[#allocation3 + $0x48] sm:$0xff] 0.0
      %v254 = vld [vmem:[%s246] sm:$0xff]
      %v255 = vld [vmem:[%s246 + $0x8] sm:$0xff]
      %v256 = vld [vmem:[%s246 + $0x10] sm:$0xff]
      %v257 = vld [vmem:[%s246 + $0x18] sm:$0xff]
      %v258 = vld [vmem:[%s246 + $0x20] sm:$0xff]
      %v259 = vld [vmem:[%s246 + $0x28] sm:$0xff]
      %v260 = vld [vmem:[%s246 + $0x30] sm:$0xff]
      %v261 = vld [vmem:[%s246 + $0x38] sm:$0xff]
      %v262 = vld [vmem:[%s246 + $0x40] sm:$0xff]
      %v263 = vld [vmem:[%s246 + $0x48] sm:$0xff]
      %273 = vrot.lane.b32.xlu0 %v254, 111
      %v274 = vpop.permute.xlu0 %273
      %275 = vrot.lane.b32.xlu0 %v255, 111
      %v276 = vpop.permute.xlu0 %275
      %277 = vrot.lane.b32.xlu0 %v256, 111
      %v278 = vpop.permute.xlu0 %277
      %279 = vrot.lane.b32.xlu0 %v257, 111
      %v280 = vpop.permute.xlu0 %279
      %281 = vrot.lane.b32.xlu0 %v258, 111
      %v282 = vpop.permute.xlu0 %281
      %283 = vrot.lane.b32.xlu0 %v259, 111
      %v284 = vpop.permute.xlu0 %283
      %285 = vrot.lane.b32.xlu0 %v260, 111
      %v286 = vpop.permute.xlu0 %285
      %287 = vrot.lane.b32.xlu0 %v261, 111
      %v288 = vpop.permute.xlu0 %287
      %289 = vrot.lane.b32.xlu0 %v262, 111
      %v290 = vpop.permute.xlu0 %289
      %vm291 = vcmask 908288
      %v292 = vsel %vm291, %v274, %v276
      %v293 = vsel %vm291, %v276, %v278
      %v294 = vsel %vm291, %v278, %v280
      %v295 = vsel %vm291, %v280, %v282
      %v296 = vsel %vm291, %v282, %v284
      %v297 = vsel %vm291, %v284, %v286
      %v298 = vsel %vm291, %v286, %v288
      %v299 = vsel %vm291, %v288, %v290
      %308 = vst [vmem:[#allocation2] sm:$0xff] %v292
      %309 = vst [vmem:[#allocation2 + $0x8] sm:$0xff] %v293
      %310 = vst [vmem:[#allocation2 + $0x10] sm:$0xff] %v294
      %311 = vst [vmem:[#allocation2 + $0x18] sm:$0xff] %v295
      %312 = vst [vmem:[#allocation2 + $0x20] sm:$0xff] %v296
      %313 = vst [vmem:[#allocation2 + $0x28] sm:$0xff] %v297
      %314 = vst [vmem:[#allocation2 + $0x30] sm:$0xff] %v298
      %315 = vst [vmem:[#allocation2 + $0x38] sm:$0xff] %v299
      %316 = vrot.lane.b32.xlu0 %v254, 110
      %v317 = vpop.permute.xlu0 %316
      %318 = vrot.lane.b32.xlu0 %v255, 110
      %v319 = vpop.permute.xlu0 %318
      %320 = vrot.lane.b32.xlu0 %v256, 110
      %v321 = vpop.permute.xlu0 %320
      %322 = vrot.lane.b32.xlu0 %v257, 110
      %v323 = vpop.permute.xlu0 %322
      %324 = vrot.lane.b32.xlu0 %v258, 110
      %v325 = vpop.permute.xlu0 %324
      %326 = vrot.lane.b32.xlu0 %v259, 110
      %v327 = vpop.permute.xlu0 %326
      %328 = vrot.lane.b32.xlu0 %v260, 110
      %v329 = vpop.permute.xlu0 %328
      %330 = vrot.lane.b32.xlu0 %v261, 110
      %v331 = vpop.permute.xlu0 %330
      %332 = vrot.lane.b32.xlu0 %v262, 110
      %v333 = vpop.permute.xlu0 %332
      %vm334 = vcmask 900096
      %v335 = vsel %vm334, %v317, %v319
      %v336 = vsel %vm334, %v319, %v321
      %v337 = vsel %vm334, %v321, %v323
      %v338 = vsel %vm334, %v323, %v325
      %v339 = vsel %vm334, %v325, %v327
      %v340 = vsel %vm334, %v327, %v329
      %v341 = vsel %vm334, %v329, %v331
      %v342 = vsel %vm334, %v331, %v333
      %351 = vst [vmem:[#allocation2 + $0x40] sm:$0xff] %v335
      %352 = vst [vmem:[#allocation2 + $0x48] sm:$0xff] %v336
      %353 = vst [vmem:[#allocation2 + $0x50] sm:$0xff] %v337
      %354 = vst [vmem:[#allocation2 + $0x58] sm:$0xff] %v338
      %355 = vst [vmem:[#allocation2 + $0x60] sm:$0xff] %v339
      %356 = vst [vmem:[#allocation2 + $0x68] sm:$0xff] %v340
      %357 = vst [vmem:[#allocation2 + $0x70] sm:$0xff] %v341
      %358 = vst [vmem:[#allocation2 + $0x78] sm:$0xff] %v342
      %359 = vrot.lane.b32.xlu0 %v254, 109
      %v360 = vpop.permute.xlu0 %359
      %361 = vrot.lane.b32.xlu0 %v255, 109
      %v362 = vpop.permute.xlu0 %361
      %363 = vrot.lane.b32.xlu0 %v256, 109
      %v364 = vpop.permute.xlu0 %363
      %365 = vrot.lane.b32.xlu0 %v257, 109
      %v366 = vpop.permute.xlu0 %365
      %367 = vrot.lane.b32.xlu0 %v258, 109
      %v368 = vpop.permute.xlu0 %367
      %369 = vrot.lane.b32.xlu0 %v259, 109
      %v370 = vpop.permute.xlu0 %369
      %371 = vrot.lane.b32.xlu0 %v260, 109
      %v372 = vpop.permute.xlu0 %371
      %373 = vrot.lane.b32.xlu0 %v261, 109
      %v374 = vpop.permute.xlu0 %373
      %375 = vrot.lane.b32.xlu0 %v262, 109
      %v376 = vpop.permute.xlu0 %375
      %vm377 = vcmask 891904
      %v378 = vsel %vm377, %v360, %v362
      %v379 = vsel %vm377, %v362, %v364
      %v380 = vsel %vm377, %v364, %v366
      %v381 = vsel %vm377, %v366, %v368
      %v382 = vsel %vm377, %v368, %v370
      %v383 = vsel %vm377, %v370, %v372
      %v384 = vsel %vm377, %v372, %v374
      %v385 = vsel %vm377, %v374, %v376
      %394 = vst [vmem:[#allocation2 + $0x80] sm:$0xff] %v378
      %395 = vst [vmem:[#allocation2 + $0x88] sm:$0xff] %v379
      %396 = vst [vmem:[#allocation2 + $0x90] sm:$0xff] %v380
      %397 = vst [vmem:[#allocation2 + $0x98] sm:$0xff] %v381
      %398 = vst [vmem:[#allocation2 + $0xa0] sm:$0xff] %v382
      %399 = vst [vmem:[#allocation2 + $0xa8] sm:$0xff] %v383
      %400 = vst [vmem:[#allocation2 + $0xb0] sm:$0xff] %v384
      %401 = vst [vmem:[#allocation2 + $0xb8] sm:$0xff] %v385
      %402 = vrot.lane.b32.xlu0 %v254, 101
      %v403 = vpop.permute.xlu0 %402
      %404 = vrot.lane.b32.xlu0 %v255, 101
      %v405 = vpop.permute.xlu0 %404
      %406 = vrot.lane.b32.xlu0 %v256, 101
      %v407 = vpop.permute.xlu0 %406
      %408 = vrot.lane.b32.xlu0 %v257, 101
      %v409 = vpop.permute.xlu0 %408
      %410 = vrot.lane.b32.xlu0 %v258, 101
      %v411 = vpop.permute.xlu0 %410
      %412 = vrot.lane.b32.xlu0 %v259, 101
      %v413 = vpop.permute.xlu0 %412
      %414 = vrot.lane.b32.xlu0 %v260, 101
      %v415 = vpop.permute.xlu0 %414
      %416 = vrot.lane.b32.xlu0 %v261, 101
      %v417 = vpop.permute.xlu0 %416
      %418 = vrot.lane.b32.xlu0 %v262, 101
      %v419 = vpop.permute.xlu0 %418
      %vm420 = vcmask 826368
      %v421 = vsel %vm420, %v403, %v405
      %v422 = vsel %vm420, %v405, %v407
      %v423 = vsel %vm420, %v407, %v409
      %v424 = vsel %vm420, %v409, %v411
      %v425 = vsel %vm420, %v411, %v413
      %v426 = vsel %vm420, %v413, %v415
      %v427 = vsel %vm420, %v415, %v417
      %v428 = vsel %vm420, %v417, %v419
      %437 = vst [vmem:[#allocation2 + $0xc0] sm:$0xff] %v421
      %438 = vst [vmem:[#allocation2 + $0xc8] sm:$0xff] %v422
      %439 = vst [vmem:[#allocation2 + $0xd0] sm:$0xff] %v423
      %440 = vst [vmem:[#allocation2 + $0xd8] sm:$0xff] %v424
      %441 = vst [vmem:[#allocation2 + $0xe0] sm:$0xff] %v425
      %442 = vst [vmem:[#allocation2 + $0xe8] sm:$0xff] %v426
      %443 = vst [vmem:[#allocation2 + $0xf0] sm:$0xff] %v427
      %444 = vst [vmem:[#allocation2 + $0xf8] sm:$0xff] %v428
      %445 = vrot.lane.b32.xlu0 %v254, 100
      %v446 = vpop.permute.xlu0 %445
      %447 = vrot.lane.b32.xlu0 %v255, 100
      %v448 = vpop.permute.xlu0 %447
      %449 = vrot.lane.b32.xlu0 %v256, 100
      %v450 = vpop.permute.xlu0 %449
      %451 = vrot.lane.b32.xlu0 %v257, 100
      %v452 = vpop.permute.xlu0 %451
      %453 = vrot.lane.b32.xlu0 %v258, 100
      %v454 = vpop.permute.xlu0 %453
      %455 = vrot.lane.b32.xlu0 %v259, 100
      %v456 = vpop.permute.xlu0 %455
      %457 = vrot.lane.b32.xlu0 %v260, 100
      %v458 = vpop.permute.xlu0 %457
      %459 = vrot.lane.b32.xlu0 %v261, 100
      %v460 = vpop.permute.xlu0 %459
      %461 = vrot.lane.b32.xlu0 %v262, 100
      %v462 = vpop.permute.xlu0 %461
      %vm463 = vcmask 818176
      %v464 = vsel %vm463, %v446, %v448
      %v465 = vsel %vm463, %v448, %v450
      %v466 = vsel %vm463, %v450, %v452
      %v467 = vsel %vm463, %v452, %v454
      %v468 = vsel %vm463, %v454, %v456
      %v469 = vsel %vm463, %v456, %v458
      %v470 = vsel %vm463, %v458, %v460
      %v471 = vsel %vm463, %v460, %v462
      %480 = vst [vmem:[#allocation2 + $0x100] sm:$0xff] %v464
      %481 = vst [vmem:[#allocation2 + $0x108] sm:$0xff] %v465
      %482 = vst [vmem:[#allocation2 + $0x110] sm:$0xff] %v466
      %483 = vst [vmem:[#allocation2 + $0x118] sm:$0xff] %v467
      %484 = vst [vmem:[#allocation2 + $0x120] sm:$0xff] %v468
      %485 = vst [vmem:[#allocation2 + $0x128] sm:$0xff] %v469
      %486 = vst [vmem:[#allocation2 + $0x130] sm:$0xff] %v470
      %487 = vst [vmem:[#allocation2 + $0x138] sm:$0xff] %v471
      %488 = vrot.lane.b32.xlu0 %v254, 99
      %v489 = vpop.permute.xlu0 %488
      %490 = vrot.lane.b32.xlu0 %v255, 99
      %v491 = vpop.permute.xlu0 %490
      %492 = vrot.lane.b32.xlu0 %v256, 99
      %v493 = vpop.permute.xlu0 %492
      %494 = vrot.lane.b32.xlu0 %v257, 99
      %v495 = vpop.permute.xlu0 %494
      %496 = vrot.lane.b32.xlu0 %v258, 99
      %v497 = vpop.permute.xlu0 %496
      %498 = vrot.lane.b32.xlu0 %v259, 99
      %v499 = vpop.permute.xlu0 %498
      %500 = vrot.lane.b32.xlu0 %v260, 99
      %v501 = vpop.permute.xlu0 %500
      %502 = vrot.lane.b32.xlu0 %v261, 99
      %v503 = vpop.permute.xlu0 %502
      %504 = vrot.lane.b32.xlu0 %v262, 99
      %v505 = vpop.permute.xlu0 %504
      %vm506 = vcmask 809984
      %v507 = vsel %vm506, %v489, %v491
      %v508 = vsel %vm506, %v491, %v493
      %v509 = vsel %vm506, %v493, %v495
      %v510 = vsel %vm506, %v495, %v497
      %v511 = vsel %vm506, %v497, %v499
      %v512 = vsel %vm506, %v499, %v501
      %v513 = vsel %vm506, %v501, %v503
      %v514 = vsel %vm506, %v503, %v505
      %523 = vst [vmem:[#allocation2 + $0x140] sm:$0xff] %v507
      %524 = vst [vmem:[#allocation2 + $0x148] sm:$0xff] %v508
      %525 = vst [vmem:[#allocation2 + $0x150] sm:$0xff] %v509
      %526 = vst [vmem:[#allocation2 + $0x158] sm:$0xff] %v510
      %527 = vst [vmem:[#allocation2 + $0x160] sm:$0xff] %v511
      %528 = vst [vmem:[#allocation2 + $0x168] sm:$0xff] %v512
      %529 = vst [vmem:[#allocation2 + $0x170] sm:$0xff] %v513
      %530 = vst [vmem:[#allocation2 + $0x178] sm:$0xff] %v514
      %531 = vrot.lane.b32.xlu0 %v254, 91
      %v532 = vpop.permute.xlu0 %531
      %533 = vrot.lane.b32.xlu0 %v255, 91
      %v534 = vpop.permute.xlu0 %533
      %535 = vrot.lane.b32.xlu0 %v256, 91
      %v536 = vpop.permute.xlu0 %535
      %537 = vrot.lane.b32.xlu0 %v257, 91
      %v538 = vpop.permute.xlu0 %537
      %539 = vrot.lane.b32.xlu0 %v258, 91
      %v540 = vpop.permute.xlu0 %539
      %541 = vrot.lane.b32.xlu0 %v259, 91
      %v542 = vpop.permute.xlu0 %541
      %543 = vrot.lane.b32.xlu0 %v260, 91
      %v544 = vpop.permute.xlu0 %543
      %545 = vrot.lane.b32.xlu0 %v261, 91
      %v546 = vpop.permute.xlu0 %545
      %547 = vrot.lane.b32.xlu0 %v262, 91
      %v548 = vpop.permute.xlu0 %547
      %vm549 = vcmask 744448
      %v550 = vsel %vm549, %v532, %v534
      %v551 = vsel %vm549, %v534, %v536
      %v552 = vsel %vm549, %v536, %v538
      %v553 = vsel %vm549, %v538, %v540
      %v554 = vsel %vm549, %v540, %v542
      %v555 = vsel %vm549, %v542, %v544
      %v556 = vsel %vm549, %v544, %v546
      %v557 = vsel %vm549, %v546, %v548
      %566 = vst [vmem:[#allocation2 + $0x180] sm:$0xff] %v550
      %567 = vst [vmem:[#allocation2 + $0x188] sm:$0xff] %v551
      %568 = vst [vmem:[#allocation2 + $0x190] sm:$0xff] %v552
      %569 = vst [vmem:[#allocation2 + $0x198] sm:$0xff] %v553
      %570 = vst [vmem:[#allocation2 + $0x1a0] sm:$0xff] %v554
      %571 = vst [vmem:[#allocation2 + $0x1a8] sm:$0xff] %v555
      %572 = vst [vmem:[#allocation2 + $0x1b0] sm:$0xff] %v556
      %573 = vst [vmem:[#allocation2 + $0x1b8] sm:$0xff] %v557
      %574 = vrot.lane.b32.xlu0 %v254, 90
      %v575 = vpop.permute.xlu0 %574
      %576 = vrot.lane.b32.xlu0 %v255, 90
      %v577 = vpop.permute.xlu0 %576
      %578 = vrot.lane.b32.xlu0 %v256, 90
      %v579 = vpop.permute.xlu0 %578
      %580 = vrot.lane.b32.xlu0 %v257, 90
      %v581 = vpop.permute.xlu0 %580
      %582 = vrot.lane.b32.xlu0 %v258, 90
      %v583 = vpop.permute.xlu0 %582
      %584 = vrot.lane.b32.xlu0 %v259, 90
      %v585 = vpop.permute.xlu0 %584
      %586 = vrot.lane.b32.xlu0 %v260, 90
      %v587 = vpop.permute.xlu0 %586
      %588 = vrot.lane.b32.xlu0 %v261, 90
      %v589 = vpop.permute.xlu0 %588
      %590 = vrot.lane.b32.xlu0 %v262, 90
      %v591 = vpop.permute.xlu0 %590
      %vm592 = vcmask 736256
      %v593 = vsel %vm592, %v575, %v577
      %v594 = vsel %vm592, %v577, %v579
      %v595 = vsel %vm592, %v579, %v581
      %v596 = vsel %vm592, %v581, %v583
      %v597 = vsel %vm592, %v583, %v585
      %v598 = vsel %vm592, %v585, %v587
      %v599 = vsel %vm592, %v587, %v589
      %v600 = vsel %vm592, %v589, %v591
      %609 = vst [vmem:[#allocation2 + $0x1c0] sm:$0xff] %v593
      %610 = vst [vmem:[#allocation2 + $0x1c8] sm:$0xff] %v594
      %611 = vst [vmem:[#allocation2 + $0x1d0] sm:$0xff] %v595
      %612 = vst [vmem:[#allocation2 + $0x1d8] sm:$0xff] %v596
      %613 = vst [vmem:[#allocation2 + $0x1e0] sm:$0xff] %v597
      %614 = vst [vmem:[#allocation2 + $0x1e8] sm:$0xff] %v598
      %615 = vst [vmem:[#allocation2 + $0x1f0] sm:$0xff] %v599
      %616 = vst [vmem:[#allocation2 + $0x1f8] sm:$0xff] %v600
      %617 = vrot.lane.b32.xlu0 %v254, 89
      %v618 = vpop.permute.xlu0 %617
      %619 = vrot.lane.b32.xlu0 %v255, 89
      %v620 = vpop.permute.xlu0 %619
      %621 = vrot.lane.b32.xlu0 %v256, 89
      %v622 = vpop.permute.xlu0 %621
      %623 = vrot.lane.b32.xlu0 %v257, 89
      %v624 = vpop.permute.xlu0 %623
      %625 = vrot.lane.b32.xlu0 %v258, 89
      %v626 = vpop.permute.xlu0 %625
      %627 = vrot.lane.b32.xlu0 %v259, 89
      %v628 = vpop.permute.xlu0 %627
      %629 = vrot.lane.b32.xlu0 %v260, 89
      %v630 = vpop.permute.xlu0 %629
      %631 = vrot.lane.b32.xlu0 %v261, 89
      %v632 = vpop.permute.xlu0 %631
      %633 = vrot.lane.b32.xlu0 %v262, 89
      %v634 = vpop.permute.xlu0 %633
      %vm635 = vcmask 728064
      %v636 = vsel %vm635, %v618, %v620
      %v637 = vsel %vm635, %v620, %v622
      %v638 = vsel %vm635, %v622, %v624
      %v639 = vsel %vm635, %v624, %v626
      %v640 = vsel %vm635, %v626, %v628
      %v641 = vsel %vm635, %v628, %v630
      %v642 = vsel %vm635, %v630, %v632
      %v643 = vsel %vm635, %v632, %v634
      %652 = vst [vmem:[#allocation2 + $0x200] sm:$0xff] %v636
      %653 = vst [vmem:[#allocation2 + $0x208] sm:$0xff] %v637
      %654 = vst [vmem:[#allocation2 + $0x210] sm:$0xff] %v638
      %655 = vst [vmem:[#allocation2 + $0x218] sm:$0xff] %v639
      %656 = vst [vmem:[#allocation2 + $0x220] sm:$0xff] %v640
      %657 = vst [vmem:[#allocation2 + $0x228] sm:$0xff] %v641
      %658 = vst [vmem:[#allocation2 + $0x230] sm:$0xff] %v642
      %659 = vst [vmem:[#allocation2 + $0x238] sm:$0xff] %v643
      %660 = vrot.lane.b32.xlu0 %v254, 11
      %v661 = vpop.permute.xlu0 %660
      %662 = vrot.lane.b32.xlu0 %v255, 11
      %v663 = vpop.permute.xlu0 %662
      %664 = vrot.lane.b32.xlu0 %v256, 11
      %v665 = vpop.permute.xlu0 %664
      %666 = vrot.lane.b32.xlu0 %v257, 11
      %v667 = vpop.permute.xlu0 %666
      %668 = vrot.lane.b32.xlu0 %v258, 11
      %v669 = vpop.permute.xlu0 %668
      %670 = vrot.lane.b32.xlu0 %v259, 11
      %v671 = vpop.permute.xlu0 %670
      %672 = vrot.lane.b32.xlu0 %v260, 11
      %v673 = vpop.permute.xlu0 %672
      %674 = vrot.lane.b32.xlu0 %v261, 11
      %v675 = vpop.permute.xlu0 %674
      %676 = vrot.lane.b32.xlu0 %v262, 11
      %v677 = vpop.permute.xlu0 %676
      %vm678 = vcmask 89088
      %v679 = vsel %vm678, %v661, %v663
      %v680 = vsel %vm678, %v663, %v665
      %v681 = vsel %vm678, %v665, %v667
      %v682 = vsel %vm678, %v667, %v669
      %v683 = vsel %vm678, %v669, %v671
      %v684 = vsel %vm678, %v671, %v673
      %v685 = vsel %vm678, %v673, %v675
      %v686 = vsel %vm678, %v675, %v677
      %695 = vst [vmem:[#allocation2 + $0x240] sm:$0xff] %v679
      %696 = vst [vmem:[#allocation2 + $0x248] sm:$0xff] %v680
      %697 = vst [vmem:[#allocation2 + $0x250] sm:$0xff] %v681
      %698 = vst [vmem:[#allocation2 + $0x258] sm:$0xff] %v682
      %699 = vst [vmem:[#allocation2 + $0x260] sm:$0xff] %v683
      %700 = vst [vmem:[#allocation2 + $0x268] sm:$0xff] %v684
      %701 = vst [vmem:[#allocation2 + $0x270] sm:$0xff] %v685
      %702 = vst [vmem:[#allocation2 + $0x278] sm:$0xff] %v686
      %703 = vrot.lane.b32.xlu0 %v254, 10
      %v704 = vpop.permute.xlu0 %703
      %705 = vrot.lane.b32.xlu0 %v255, 10
      %v706 = vpop.permute.xlu0 %705
      %707 = vrot.lane.b32.xlu0 %v256, 10
      %v708 = vpop.permute.xlu0 %707
      %709 = vrot.lane.b32.xlu0 %v257, 10
      %v710 = vpop.permute.xlu0 %709
      %711 = vrot.lane.b32.xlu0 %v258, 10
      %v712 = vpop.permute.xlu0 %711
      %713 = vrot.lane.b32.xlu0 %v259, 10
      %v714 = vpop.permute.xlu0 %713
      %715 = vrot.lane.b32.xlu0 %v260, 10
      %v716 = vpop.permute.xlu0 %715
      %717 = vrot.lane.b32.xlu0 %v261, 10
      %v718 = vpop.permute.xlu0 %717
      %719 = vrot.lane.b32.xlu0 %v262, 10
      %v720 = vpop.permute.xlu0 %719
      %vm721 = vcmask 80896
      %v722 = vsel %vm721, %v704, %v706
      %v723 = vsel %vm721, %v706, %v708
      %v724 = vsel %vm721, %v708, %v710
      %v725 = vsel %vm721, %v710, %v712
      %v726 = vsel %vm721, %v712, %v714
      %v727 = vsel %vm721, %v714, %v716
      %v728 = vsel %vm721, %v716, %v718
      %v729 = vsel %vm721, %v718, %v720
      %738 = vst [vmem:[#allocation2 + $0x280] sm:$0xff] %v722
      %739 = vst [vmem:[#allocation2 + $0x288] sm:$0xff] %v723
      %740 = vst [vmem:[#allocation2 + $0x290] sm:$0xff] %v724
      %741 = vst [vmem:[#allocation2 + $0x298] sm:$0xff] %v725
      %742 = vst [vmem:[#allocation2 + $0x2a0] sm:$0xff] %v726
      %743 = vst [vmem:[#allocation2 + $0x2a8] sm:$0xff] %v727
      %744 = vst [vmem:[#allocation2 + $0x2b0] sm:$0xff] %v728
      %745 = vst [vmem:[#allocation2 + $0x2b8] sm:$0xff] %v729
      %746 = vrot.lane.b32.xlu0 %v254, 9
      %v747 = vpop.permute.xlu0 %746
      %748 = vrot.lane.b32.xlu0 %v255, 9
      %v749 = vpop.permute.xlu0 %748
      %750 = vrot.lane.b32.xlu0 %v256, 9
      %v751 = vpop.permute.xlu0 %750
      %752 = vrot.lane.b32.xlu0 %v257, 9
      %v753 = vpop.permute.xlu0 %752
      %754 = vrot.lane.b32.xlu0 %v258, 9
      %v755 = vpop.permute.xlu0 %754
      %756 = vrot.lane.b32.xlu0 %v259, 9
      %v757 = vpop.permute.xlu0 %756
      %758 = vrot.lane.b32.xlu0 %v260, 9
      %v759 = vpop.permute.xlu0 %758
      %760 = vrot.lane.b32.xlu0 %v261, 9
      %v761 = vpop.permute.xlu0 %760
      %762 = vrot.lane.b32.xlu0 %v262, 9
      %v763 = vpop.permute.xlu0 %762
      %vm764 = vcmask 72704
      %v765 = vsel %vm764, %v747, %v749
      %v766 = vsel %vm764, %v749, %v751
      %v767 = vsel %vm764, %v751, %v753
      %v768 = vsel %vm764, %v753, %v755
      %v769 = vsel %vm764, %v755, %v757
      %v770 = vsel %vm764, %v757, %v759
      %v771 = vsel %vm764, %v759, %v761
      %v772 = vsel %vm764, %v761, %v763
      %781 = vst [vmem:[#allocation2 + $0x2c0] sm:$0xff] %v765
      %782 = vst [vmem:[#allocation2 + $0x2c8] sm:$0xff] %v766
      %783 = vst [vmem:[#allocation2 + $0x2d0] sm:$0xff] %v767
      %784 = vst [vmem:[#allocation2 + $0x2d8] sm:$0xff] %v768
      %785 = vst [vmem:[#allocation2 + $0x2e0] sm:$0xff] %v769
      %786 = vst [vmem:[#allocation2 + $0x2e8] sm:$0xff] %v770
      %787 = vst [vmem:[#allocation2 + $0x2f0] sm:$0xff] %v771
      %788 = vst [vmem:[#allocation2 + $0x2f8] sm:$0xff] %v772
      %789 = vrot.lane.b32.xlu0 %v254, 1
      %v790 = vpop.permute.xlu0 %789
      %791 = vrot.lane.b32.xlu0 %v255, 1
      %v792 = vpop.permute.xlu0 %791
      %793 = vrot.lane.b32.xlu0 %v256, 1
      %v794 = vpop.permute.xlu0 %793
      %795 = vrot.lane.b32.xlu0 %v257, 1
      %v796 = vpop.permute.xlu0 %795
      %797 = vrot.lane.b32.xlu0 %v258, 1
      %v798 = vpop.permute.xlu0 %797
      %799 = vrot.lane.b32.xlu0 %v259, 1
      %v800 = vpop.permute.xlu0 %799
      %801 = vrot.lane.b32.xlu0 %v260, 1
      %v802 = vpop.permute.xlu0 %801
      %803 = vrot.lane.b32.xlu0 %v261, 1
      %v804 = vpop.permute.xlu0 %803
      %805 = vrot.lane.b32.xlu0 %v262, 1
      %v806 = vpop.permute.xlu0 %805
      %vm807 = vcmask 7168
      %v808 = vsel %vm807, %v790, %v792
      %v809 = vsel %vm807, %v792, %v794
      %v810 = vsel %vm807, %v794, %v796
      %v811 = vsel %vm807, %v796, %v798
      %v812 = vsel %vm807, %v798, %v800
      %v813 = vsel %vm807, %v800, %v802
      %v814 = vsel %vm807, %v802, %v804
      %v815 = vsel %vm807, %v804, %v806
      %824 = vst [vmem:[#allocation2 + $0x300] sm:$0xff] %v808
      %825 = vst [vmem:[#allocation2 + $0x308] sm:$0xff] %v809
      %826 = vst [vmem:[#allocation2 + $0x310] sm:$0xff] %v810
      %827 = vst [vmem:[#allocation2 + $0x318] sm:$0xff] %v811
      %828 = vst [vmem:[#allocation2 + $0x320] sm:$0xff] %v812
      %829 = vst [vmem:[#allocation2 + $0x328] sm:$0xff] %v813
      %830 = vst [vmem:[#allocation2 + $0x330] sm:$0xff] %v814
      %831 = vst [vmem:[#allocation2 + $0x338] sm:$0xff] %v815
      %832 = vst [vmem:[#allocation2 + $0x340] sm:$0xff] %v255
      %833 = vst [vmem:[#allocation2 + $0x348] sm:$0xff] %v256
      %834 = vst [vmem:[#allocation2 + $0x350] sm:$0xff] %v257
      %835 = vst [vmem:[#allocation2 + $0x358] sm:$0xff] %v258
      %836 = vst [vmem:[#allocation2 + $0x360] sm:$0xff] %v259
      %837 = vst [vmem:[#allocation2 + $0x368] sm:$0xff] %v260
      %838 = vst [vmem:[#allocation2 + $0x370] sm:$0xff] %v261
      %839 = vst [vmem:[#allocation2 + $0x378] sm:$0xff] %v262
      %841 = vrot.lane.b32.xlu0 %v255, 127
      %v842 = vpop.permute.xlu0 %841
      %843 = vrot.lane.b32.xlu0 %v256, 127
      %v844 = vpop.permute.xlu0 %843
      %845 = vrot.lane.b32.xlu0 %v257, 127
      %v846 = vpop.permute.xlu0 %845
      %847 = vrot.lane.b32.xlu0 %v258, 127
      %v848 = vpop.permute.xlu0 %847
      %849 = vrot.lane.b32.xlu0 %v259, 127
      %v850 = vpop.permute.xlu0 %849
      %851 = vrot.lane.b32.xlu0 %v260, 127
      %v852 = vpop.permute.xlu0 %851
      %853 = vrot.lane.b32.xlu0 %v261, 127
      %v854 = vpop.permute.xlu0 %853
      %855 = vrot.lane.b32.xlu0 %v262, 127
      %v856 = vpop.permute.xlu0 %855
      %857 = vrot.lane.b32.xlu0 %v263, 127
      %v858 = vpop.permute.xlu0 %857
      %vm859 = vcmask 1039360
      %v860 = vsel %vm859, %v842, %v844
      %v861 = vsel %vm859, %v844, %v846
      %v862 = vsel %vm859, %v846, %v848
      %v863 = vsel %vm859, %v848, %v850
      %v864 = vsel %vm859, %v850, %v852
      %v865 = vsel %vm859, %v852, %v854
      %v866 = vsel %vm859, %v854, %v856
      %v867 = vsel %vm859, %v856, %v858
      %876 = vst [vmem:[#allocation2 + $0x380] sm:$0xff] %v860
      %877 = vst [vmem:[#allocation2 + $0x388] sm:$0xff] %v861
      %878 = vst [vmem:[#allocation2 + $0x390] sm:$0xff] %v862
      %879 = vst [vmem:[#allocation2 + $0x398] sm:$0xff] %v863
      %880 = vst [vmem:[#allocation2 + $0x3a0] sm:$0xff] %v864
      %881 = vst [vmem:[#allocation2 + $0x3a8] sm:$0xff] %v865
      %882 = vst [vmem:[#allocation2 + $0x3b0] sm:$0xff] %v866
      %883 = vst [vmem:[#allocation2 + $0x3b8] sm:$0xff] %v867
      %884 = vrot.lane.b32.xlu0 %v255, 119
      %v885 = vpop.permute.xlu0 %884
      %886 = vrot.lane.b32.xlu0 %v256, 119
      %v887 = vpop.permute.xlu0 %886
      %888 = vrot.lane.b32.xlu0 %v257, 119
      %v889 = vpop.permute.xlu0 %888
      %890 = vrot.lane.b32.xlu0 %v258, 119
      %v891 = vpop.permute.xlu0 %890
      %892 = vrot.lane.b32.xlu0 %v259, 119
      %v893 = vpop.permute.xlu0 %892
      %894 = vrot.lane.b32.xlu0 %v260, 119
      %v895 = vpop.permute.xlu0 %894
      %896 = vrot.lane.b32.xlu0 %v261, 119
      %v897 = vpop.permute.xlu0 %896
      %898 = vrot.lane.b32.xlu0 %v262, 119
      %v899 = vpop.permute.xlu0 %898
      %900 = vrot.lane.b32.xlu0 %v263, 119
      %v901 = vpop.permute.xlu0 %900
      %vm902 = vcmask 973824
      %v903 = vsel %vm902, %v885, %v887
      %v904 = vsel %vm902, %v887, %v889
      %v905 = vsel %vm902, %v889, %v891
      %v906 = vsel %vm902, %v891, %v893
      %v907 = vsel %vm902, %v893, %v895
      %v908 = vsel %vm902, %v895, %v897
      %v909 = vsel %vm902, %v897, %v899
      %v910 = vsel %vm902, %v899, %v901
      %919 = vst [vmem:[#allocation2 + $0x3c0] sm:$0xff] %v903
      %920 = vst [vmem:[#allocation2 + $0x3c8] sm:$0xff] %v904
      %921 = vst [vmem:[#allocation2 + $0x3d0] sm:$0xff] %v905
      %922 = vst [vmem:[#allocation2 + $0x3d8] sm:$0xff] %v906
      %923 = vst [vmem:[#allocation2 + $0x3e0] sm:$0xff] %v907
      %924 = vst [vmem:[#allocation2 + $0x3e8] sm:$0xff] %v908
      %925 = vst [vmem:[#allocation2 + $0x3f0] sm:$0xff] %v909
      %926 = vst [vmem:[#allocation2 + $0x3f8] sm:$0xff] %v910
      %927 = vrot.lane.b32.xlu0 %v255, 118
      %v928 = vpop.permute.xlu0 %927
      %929 = vrot.lane.b32.xlu0 %v256, 118
      %v930 = vpop.permute.xlu0 %929
      %931 = vrot.lane.b32.xlu0 %v257, 118
      %v932 = vpop.permute.xlu0 %931
      %933 = vrot.lane.b32.xlu0 %v258, 118
      %v934 = vpop.permute.xlu0 %933
      %935 = vrot.lane.b32.xlu0 %v259, 118
      %v936 = vpop.permute.xlu0 %935
      %937 = vrot.lane.b32.xlu0 %v260, 118
      %v938 = vpop.permute.xlu0 %937
      %939 = vrot.lane.b32.xlu0 %v261, 118
      %v940 = vpop.permute.xlu0 %939
      %941 = vrot.lane.b32.xlu0 %v262, 118
      %v942 = vpop.permute.xlu0 %941
      %943 = vrot.lane.b32.xlu0 %v263, 118
      %v944 = vpop.permute.xlu0 %943
      %vm945 = vcmask 965632
      %v946 = vsel %vm945, %v928, %v930
      %v947 = vsel %vm945, %v930, %v932
      %v948 = vsel %vm945, %v932, %v934
      %v949 = vsel %vm945, %v934, %v936
      %v950 = vsel %vm945, %v936, %v938
      %v951 = vsel %vm945, %v938, %v940
      %v952 = vsel %vm945, %v940, %v942
      %v953 = vsel %vm945, %v942, %v944
      %962 = vst [vmem:[#allocation2 + $0x400] sm:$0xff] %v946
      %963 = vst [vmem:[#allocation2 + $0x408] sm:$0xff] %v947
      %964 = vst [vmem:[#allocation2 + $0x410] sm:$0xff] %v948
      %965 = vst [vmem:[#allocation2 + $0x418] sm:$0xff] %v949
      %966 = vst [vmem:[#allocation2 + $0x420] sm:$0xff] %v950
      %967 = vst [vmem:[#allocation2 + $0x428] sm:$0xff] %v951
      %968 = vst [vmem:[#allocation2 + $0x430] sm:$0xff] %v952
      %969 = vst [vmem:[#allocation2 + $0x438] sm:$0xff] %v953
      %970 = vrot.lane.b32.xlu0 %v255, 117
      %v971 = vpop.permute.xlu0 %970
      %972 = vrot.lane.b32.xlu0 %v256, 117
      %v973 = vpop.permute.xlu0 %972
      %974 = vrot.lane.b32.xlu0 %v257, 117
      %v975 = vpop.permute.xlu0 %974
      %976 = vrot.lane.b32.xlu0 %v258, 117
      %v977 = vpop.permute.xlu0 %976
      %978 = vrot.lane.b32.xlu0 %v259, 117
      %v979 = vpop.permute.xlu0 %978
      %980 = vrot.lane.b32.xlu0 %v260, 117
      %v981 = vpop.permute.xlu0 %980
      %982 = vrot.lane.b32.xlu0 %v261, 117
      %v983 = vpop.permute.xlu0 %982
      %984 = vrot.lane.b32.xlu0 %v262, 117
      %v985 = vpop.permute.xlu0 %984
      %986 = vrot.lane.b32.xlu0 %v263, 117
      %v987 = vpop.permute.xlu0 %986
      %vm988 = vcmask 957440
      %v989 = vsel %vm988, %v971, %v973
      %v990 = vsel %vm988, %v973, %v975
      %v991 = vsel %vm988, %v975, %v977
      %v992 = vsel %vm988, %v977, %v979
      %v993 = vsel %vm988, %v979, %v981
      %v994 = vsel %vm988, %v981, %v983
      %v995 = vsel %vm988, %v983, %v985
      %v996 = vsel %vm988, %v985, %v987
      %1005 = vst [vmem:[#allocation2 + $0x440] sm:$0xff] %v989
      %1006 = vst [vmem:[#allocation2 + $0x448] sm:$0xff] %v990
      %1007 = vst [vmem:[#allocation2 + $0x450] sm:$0xff] %v991
      %1008 = vst [vmem:[#allocation2 + $0x458] sm:$0xff] %v992
      %1009 = vst [vmem:[#allocation2 + $0x460] sm:$0xff] %v993
      %1010 = vst [vmem:[#allocation2 + $0x468] sm:$0xff] %v994
      %1011 = vst [vmem:[#allocation2 + $0x470] sm:$0xff] %v995
      %1012 = vst [vmem:[#allocation2 + $0x478] sm:$0xff] %v996
      %1013 = vrot.lane.b32.xlu0 %v255, 39
      %v1014 = vpop.permute.xlu0 %1013
      %1015 = vrot.lane.b32.xlu0 %v256, 39
      %v1016 = vpop.permute.xlu0 %1015
      %1017 = vrot.lane.b32.xlu0 %v257, 39
      %v1018 = vpop.permute.xlu0 %1017
      %1019 = vrot.lane.b32.xlu0 %v258, 39
      %v1020 = vpop.permute.xlu0 %1019
      %1021 = vrot.lane.b32.xlu0 %v259, 39
      %v1022 = vpop.permute.xlu0 %1021
      %1023 = vrot.lane.b32.xlu0 %v260, 39
      %v1024 = vpop.permute.xlu0 %1023
      %1025 = vrot.lane.b32.xlu0 %v261, 39
      %v1026 = vpop.permute.xlu0 %1025
      %1027 = vrot.lane.b32.xlu0 %v262, 39
      %v1028 = vpop.permute.xlu0 %1027
      %1029 = vrot.lane.b32.xlu0 %v263, 39
      %v1030 = vpop.permute.xlu0 %1029
      %vm1031 = vcmask 318464
      %v1032 = vsel %vm1031, %v1014, %v1016
      %v1033 = vsel %vm1031, %v1016, %v1018
      %v1034 = vsel %vm1031, %v1018, %v1020
      %v1035 = vsel %vm1031, %v1020, %v1022
      %v1036 = vsel %vm1031, %v1022, %v1024
      %v1037 = vsel %vm1031, %v1024, %v1026
      %v1038 = vsel %vm1031, %v1026, %v1028
      %v1039 = vsel %vm1031, %v1028, %v1030
      %1048 = vst [vmem:[#allocation2 + $0x480] sm:$0xff] %v1032
      %1049 = vst [vmem:[#allocation2 + $0x488] sm:$0xff] %v1033
      %1050 = vst [vmem:[#allocation2 + $0x490] sm:$0xff] %v1034
      %1051 = vst [vmem:[#allocation2 + $0x498] sm:$0xff] %v1035
      %1052 = vst [vmem:[#allocation2 + $0x4a0] sm:$0xff] %v1036
      %1053 = vst [vmem:[#allocation2 + $0x4a8] sm:$0xff] %v1037
      %1054 = vst [vmem:[#allocation2 + $0x4b0] sm:$0xff] %v1038
      %1055 = vst [vmem:[#allocation2 + $0x4b8] sm:$0xff] %v1039
      %1056 = vrot.lane.b32.xlu0 %v255, 38
      %v1057 = vpop.permute.xlu0 %1056
      %1058 = vrot.lane.b32.xlu0 %v256, 38
      %v1059 = vpop.permute.xlu0 %1058
      %1060 = vrot.lane.b32.xlu0 %v257, 38
      %v1061 = vpop.permute.xlu0 %1060
      %1062 = vrot.lane.b32.xlu0 %v258, 38
      %v1063 = vpop.permute.xlu0 %1062
      %1064 = vrot.lane.b32.xlu0 %v259, 38
      %v1065 = vpop.permute.xlu0 %1064
      %1066 = vrot.lane.b32.xlu0 %v260, 38
      %v1067 = vpop.permute.xlu0 %1066
      %1068 = vrot.lane.b32.xlu0 %v261, 38
      %v1069 = vpop.permute.xlu0 %1068
      %1070 = vrot.lane.b32.xlu0 %v262, 38
      %v1071 = vpop.permute.xlu0 %1070
      %1072 = vrot.lane.b32.xlu0 %v263, 38
      %v1073 = vpop.permute.xlu0 %1072
      %vm1074 = vcmask 310272
      %v1075 = vsel %vm1074, %v1057, %v1059
      %v1076 = vsel %vm1074, %v1059, %v1061
      %v1077 = vsel %vm1074, %v1061, %v1063
      %v1078 = vsel %vm1074, %v1063, %v1065
      %v1079 = vsel %vm1074, %v1065, %v1067
      %v1080 = vsel %vm1074, %v1067, %v1069
      %v1081 = vsel %vm1074, %v1069, %v1071
      %v1082 = vsel %vm1074, %v1071, %v1073
      %1091 = vst [vmem:[#allocation2 + $0x4c0] sm:$0xff] %v1075
      %1092 = vst [vmem:[#allocation2 + $0x4c8] sm:$0xff] %v1076
      %1093 = vst [vmem:[#allocation2 + $0x4d0] sm:$0xff] %v1077
      %1094 = vst [vmem:[#allocation2 + $0x4d8] sm:$0xff] %v1078
      %1095 = vst [vmem:[#allocation2 + $0x4e0] sm:$0xff] %v1079
      %1096 = vst [vmem:[#allocation2 + $0x4e8] sm:$0xff] %v1080
      %1097 = vst [vmem:[#allocation2 + $0x4f0] sm:$0xff] %v1081
      %1098 = vst [vmem:[#allocation2 + $0x4f8] sm:$0xff] %v1082
      %1099 = vrot.lane.b32.xlu0 %v255, 37
      %v1100 = vpop.permute.xlu0 %1099
      %1101 = vrot.lane.b32.xlu0 %v256, 37
      %v1102 = vpop.permute.xlu0 %1101
      %1103 = vrot.lane.b32.xlu0 %v257, 37
      %v1104 = vpop.permute.xlu0 %1103
      %1105 = vrot.lane.b32.xlu0 %v258, 37
      %v1106 = vpop.permute.xlu0 %1105
      %1107 = vrot.lane.b32.xlu0 %v259, 37
      %v1108 = vpop.permute.xlu0 %1107
      %1109 = vrot.lane.b32.xlu0 %v260, 37
      %v1110 = vpop.permute.xlu0 %1109
      %1111 = vrot.lane.b32.xlu0 %v261, 37
      %v1112 = vpop.permute.xlu0 %1111
      %1113 = vrot.lane.b32.xlu0 %v262, 37
      %v1114 = vpop.permute.xlu0 %1113
      %1115 = vrot.lane.b32.xlu0 %v263, 37
      %v1116 = vpop.permute.xlu0 %1115
      %vm1117 = vcmask 302080
      %v1118 = vsel %vm1117, %v1100, %v1102
      %v1119 = vsel %vm1117, %v1102, %v1104
      %v1120 = vsel %vm1117, %v1104, %v1106
      %v1121 = vsel %vm1117, %v1106, %v1108
      %v1122 = vsel %vm1117, %v1108, %v1110
      %v1123 = vsel %vm1117, %v1110, %v1112
      %v1124 = vsel %vm1117, %v1112, %v1114
      %v1125 = vsel %vm1117, %v1114, %v1116
      %1134 = vst [vmem:[#allocation2 + $0x500] sm:$0xff] %v1118
      %1135 = vst [vmem:[#allocation2 + $0x508] sm:$0xff] %v1119
      %1136 = vst [vmem:[#allocation2 + $0x510] sm:$0xff] %v1120
      %1137 = vst [vmem:[#allocation2 + $0x518] sm:$0xff] %v1121
      %1138 = vst [vmem:[#allocation2 + $0x520] sm:$0xff] %v1122
      %1139 = vst [vmem:[#allocation2 + $0x528] sm:$0xff] %v1123
      %1140 = vst [vmem:[#allocation2 + $0x530] sm:$0xff] %v1124
      %1141 = vst [vmem:[#allocation2 + $0x538] sm:$0xff] %v1125
      %1142 = vrot.lane.b32.xlu0 %v255, 29
      %v1143 = vpop.permute.xlu0 %1142
      %1144 = vrot.lane.b32.xlu0 %v256, 29
      %v1145 = vpop.permute.xlu0 %1144
      %1146 = vrot.lane.b32.xlu0 %v257, 29
      %v1147 = vpop.permute.xlu0 %1146
      %1148 = vrot.lane.b32.xlu0 %v258, 29
      %v1149 = vpop.permute.xlu0 %1148
      %1150 = vrot.lane.b32.xlu0 %v259, 29
      %v1151 = vpop.permute.xlu0 %1150
      %1152 = vrot.lane.b32.xlu0 %v260, 29
      %v1153 = vpop.permute.xlu0 %1152
      %1154 = vrot.lane.b32.xlu0 %v261, 29
      %v1155 = vpop.permute.xlu0 %1154
      %1156 = vrot.lane.b32.xlu0 %v262, 29
      %v1157 = vpop.permute.xlu0 %1156
      %1158 = vrot.lane.b32.xlu0 %v263, 29
      %v1159 = vpop.permute.xlu0 %1158
      %vm1160 = vcmask 236544
      %v1161 = vsel %vm1160, %v1143, %v1145
      %v1162 = vsel %vm1160, %v1145, %v1147
      %v1163 = vsel %vm1160, %v1147, %v1149
      %v1164 = vsel %vm1160, %v1149, %v1151
      %v1165 = vsel %vm1160, %v1151, %v1153
      %v1166 = vsel %vm1160, %v1153, %v1155
      %v1167 = vsel %vm1160, %v1155, %v1157
      %v1168 = vsel %vm1160, %v1157, %v1159
      %1177 = vst [vmem:[#allocation2 + $0x540] sm:$0xff] %v1161
      %1178 = vst [vmem:[#allocation2 + $0x548] sm:$0xff] %v1162
      %1179 = vst [vmem:[#allocation2 + $0x550] sm:$0xff] %v1163
      %1180 = vst [vmem:[#allocation2 + $0x558] sm:$0xff] %v1164
      %1181 = vst [vmem:[#allocation2 + $0x560] sm:$0xff] %v1165
      %1182 = vst [vmem:[#allocation2 + $0x568] sm:$0xff] %v1166
      %1183 = vst [vmem:[#allocation2 + $0x570] sm:$0xff] %v1167
      %1184 = vst [vmem:[#allocation2 + $0x578] sm:$0xff] %v1168
      %1185 = vrot.lane.b32.xlu0 %v255, 28
      %v1186 = vpop.permute.xlu0 %1185
      %1187 = vrot.lane.b32.xlu0 %v256, 28
      %v1188 = vpop.permute.xlu0 %1187
      %1189 = vrot.lane.b32.xlu0 %v257, 28
      %v1190 = vpop.permute.xlu0 %1189
      %1191 = vrot.lane.b32.xlu0 %v258, 28
      %v1192 = vpop.permute.xlu0 %1191
      %1193 = vrot.lane.b32.xlu0 %v259, 28
      %v1194 = vpop.permute.xlu0 %1193
      %1195 = vrot.lane.b32.xlu0 %v260, 28
      %v1196 = vpop.permute.xlu0 %1195
      %1197 = vrot.lane.b32.xlu0 %v261, 28
      %v1198 = vpop.permute.xlu0 %1197
      %1199 = vrot.lane.b32.xlu0 %v262, 28
      %v1200 = vpop.permute.xlu0 %1199
      %1201 = vrot.lane.b32.xlu0 %v263, 28
      %v1202 = vpop.permute.xlu0 %1201
      %vm1203 = vcmask 228352
      %v1204 = vsel %vm1203, %v1186, %v1188
      %v1205 = vsel %vm1203, %v1188, %v1190
      %v1206 = vsel %vm1203, %v1190, %v1192
      %v1207 = vsel %vm1203, %v1192, %v1194
      %v1208 = vsel %vm1203, %v1194, %v1196
      %v1209 = vsel %vm1203, %v1196, %v1198
      %v1210 = vsel %vm1203, %v1198, %v1200
      %v1211 = vsel %vm1203, %v1200, %v1202
      %1220 = vst [vmem:[#allocation2 + $0x580] sm:$0xff] %v1204
      %1221 = vst [vmem:[#allocation2 + $0x588] sm:$0xff] %v1205
      %1222 = vst [vmem:[#allocation2 + $0x590] sm:$0xff] %v1206
      %1223 = vst [vmem:[#allocation2 + $0x598] sm:$0xff] %v1207
      %1224 = vst [vmem:[#allocation2 + $0x5a0] sm:$0xff] %v1208
      %1225 = vst [vmem:[#allocation2 + $0x5a8] sm:$0xff] %v1209
      %1226 = vst [vmem:[#allocation2 + $0x5b0] sm:$0xff] %v1210
      %1227 = vst [vmem:[#allocation2 + $0x5b8] sm:$0xff] %v1211
      %1228 = vrot.lane.b32.xlu0 %v255, 27
      %v1229 = vpop.permute.xlu0 %1228
      %1230 = vrot.lane.b32.xlu0 %v256, 27
      %v1231 = vpop.permute.xlu0 %1230
      %1232 = vrot.lane.b32.xlu0 %v257, 27
      %v1233 = vpop.permute.xlu0 %1232
      %1234 = vrot.lane.b32.xlu0 %v258, 27
      %v1235 = vpop.permute.xlu0 %1234
      %1236 = vrot.lane.b32.xlu0 %v259, 27
      %v1237 = vpop.permute.xlu0 %1236
      %1238 = vrot.lane.b32.xlu0 %v260, 27
      %v1239 = vpop.permute.xlu0 %1238
      %1240 = vrot.lane.b32.xlu0 %v261, 27
      %v1241 = vpop.permute.xlu0 %1240
      %1242 = vrot.lane.b32.xlu0 %v262, 27
      %v1243 = vpop.permute.xlu0 %1242
      %1244 = vrot.lane.b32.xlu0 %v263, 27
      %v1245 = vpop.permute.xlu0 %1244
      %vm1246 = vcmask 220160
      %v1247 = vsel %vm1246, %v1229, %v1231
      %v1248 = vsel %vm1246, %v1231, %v1233
      %v1249 = vsel %vm1246, %v1233, %v1235
      %v1250 = vsel %vm1246, %v1235, %v1237
      %v1251 = vsel %vm1246, %v1237, %v1239
      %v1252 = vsel %vm1246, %v1239, %v1241
      %v1253 = vsel %vm1246, %v1241, %v1243
      %v1254 = vsel %vm1246, %v1243, %v1245
      %1263 = vst [vmem:[#allocation2 + $0x5c0] sm:$0xff] %v1247
      %1264 = vst [vmem:[#allocation2 + $0x5c8] sm:$0xff] %v1248
      %1265 = vst [vmem:[#allocation2 + $0x5d0] sm:$0xff] %v1249
      %1266 = vst [vmem:[#allocation2 + $0x5d8] sm:$0xff] %v1250
      %1267 = vst [vmem:[#allocation2 + $0x5e0] sm:$0xff] %v1251
      %1268 = vst [vmem:[#allocation2 + $0x5e8] sm:$0xff] %v1252
      %1269 = vst [vmem:[#allocation2 + $0x5f0] sm:$0xff] %v1253
      %1270 = vst [vmem:[#allocation2 + $0x5f8] sm:$0xff] %v1254
      %1271 = vrot.lane.b32.xlu0 %v255, 19
      %v1272 = vpop.permute.xlu0 %1271
      %1273 = vrot.lane.b32.xlu0 %v256, 19
      %v1274 = vpop.permute.xlu0 %1273
      %1275 = vrot.lane.b32.xlu0 %v257, 19
      %v1276 = vpop.permute.xlu0 %1275
      %1277 = vrot.lane.b32.xlu0 %v258, 19
      %v1278 = vpop.permute.xlu0 %1277
      %1279 = vrot.lane.b32.xlu0 %v259, 19
      %v1280 = vpop.permute.xlu0 %1279
      %1281 = vrot.lane.b32.xlu0 %v260, 19
      %v1282 = vpop.permute.xlu0 %1281
      %1283 = vrot.lane.b32.xlu0 %v261, 19
      %v1284 = vpop.permute.xlu0 %1283
      %1285 = vrot.lane.b32.xlu0 %v262, 19
      %v1286 = vpop.permute.xlu0 %1285
      %1287 = vrot.lane.b32.xlu0 %v263, 19
      %v1288 = vpop.permute.xlu0 %1287
      %vm1289 = vcmask 154624
      %v1290 = vsel %vm1289, %v1272, %v1274
      %v1291 = vsel %vm1289, %v1274, %v1276
      %v1292 = vsel %vm1289, %v1276, %v1278
      %v1293 = vsel %vm1289, %v1278, %v1280
      %v1294 = vsel %vm1289, %v1280, %v1282
      %v1295 = vsel %vm1289, %v1282, %v1284
      %v1296 = vsel %vm1289, %v1284, %v1286
      %v1297 = vsel %vm1289, %v1286, %v1288
      %1306 = vst [vmem:[#allocation2 + $0x600] sm:$0xff] %v1290
      %1307 = vst [vmem:[#allocation2 + $0x608] sm:$0xff] %v1291
      %1308 = vst [vmem:[#allocation2 + $0x610] sm:$0xff] %v1292
      %1309 = vst [vmem:[#allocation2 + $0x618] sm:$0xff] %v1293
      %1310 = vst [vmem:[#allocation2 + $0x620] sm:$0xff] %v1294
      %1311 = vst [vmem:[#allocation2 + $0x628] sm:$0xff] %v1295
      %1312 = vst [vmem:[#allocation2 + $0x630] sm:$0xff] %v1296
      %1313 = vst [vmem:[#allocation2 + $0x638] sm:$0xff] %v1297
      %1314 = vrot.lane.b32.xlu0 %v255, 18
      %v1315 = vpop.permute.xlu0 %1314
      %1316 = vrot.lane.b32.xlu0 %v256, 18
      %v1317 = vpop.permute.xlu0 %1316
      %1318 = vrot.lane.b32.xlu0 %v257, 18
      %v1319 = vpop.permute.xlu0 %1318
      %1320 = vrot.lane.b32.xlu0 %v258, 18
      %v1321 = vpop.permute.xlu0 %1320
      %1322 = vrot.lane.b32.xlu0 %v259, 18
      %v1323 = vpop.permute.xlu0 %1322
      %1324 = vrot.lane.b32.xlu0 %v260, 18
      %v1325 = vpop.permute.xlu0 %1324
      %1326 = vrot.lane.b32.xlu0 %v261, 18
      %v1327 = vpop.permute.xlu0 %1326
      %1328 = vrot.lane.b32.xlu0 %v262, 18
      %v1329 = vpop.permute.xlu0 %1328
      %1330 = vrot.lane.b32.xlu0 %v263, 18
      %v1331 = vpop.permute.xlu0 %1330
      %vm1332 = vcmask 146432
      %v1333 = vsel %vm1332, %v1315, %v1317
      %v1334 = vsel %vm1332, %v1317, %v1319
      %v1335 = vsel %vm1332, %v1319, %v1321
      %v1336 = vsel %vm1332, %v1321, %v1323
      %v1337 = vsel %vm1332, %v1323, %v1325
      %v1338 = vsel %vm1332, %v1325, %v1327
      %v1339 = vsel %vm1332, %v1327, %v1329
      %v1340 = vsel %vm1332, %v1329, %v1331
      %1349 = vst [vmem:[#allocation2 + $0x640] sm:$0xff] %v1333
      %1350 = vst [vmem:[#allocation2 + $0x648] sm:$0xff] %v1334
      %1351 = vst [vmem:[#allocation2 + $0x650] sm:$0xff] %v1335
      %1352 = vst [vmem:[#allocation2 + $0x658] sm:$0xff] %v1336
      %1353 = vst [vmem:[#allocation2 + $0x660] sm:$0xff] %v1337
      %1354 = vst [vmem:[#allocation2 + $0x668] sm:$0xff] %v1338
      %1355 = vst [vmem:[#allocation2 + $0x670] sm:$0xff] %v1339
      %1356 = vst [vmem:[#allocation2 + $0x678] sm:$0xff] %v1340
      %1357 = vrot.lane.b32.xlu0 %v255, 17
      %v1358 = vpop.permute.xlu0 %1357
      %1359 = vrot.lane.b32.xlu0 %v256, 17
      %v1360 = vpop.permute.xlu0 %1359
      %1361 = vrot.lane.b32.xlu0 %v257, 17
      %v1362 = vpop.permute.xlu0 %1361
      %1363 = vrot.lane.b32.xlu0 %v258, 17
      %v1364 = vpop.permute.xlu0 %1363
      %1365 = vrot.lane.b32.xlu0 %v259, 17
      %v1366 = vpop.permute.xlu0 %1365
      %1367 = vrot.lane.b32.xlu0 %v260, 17
      %v1368 = vpop.permute.xlu0 %1367
      %1369 = vrot.lane.b32.xlu0 %v261, 17
      %v1370 = vpop.permute.xlu0 %1369
      %1371 = vrot.lane.b32.xlu0 %v262, 17
      %v1372 = vpop.permute.xlu0 %1371
      %1373 = vrot.lane.b32.xlu0 %v263, 17
      %v1374 = vpop.permute.xlu0 %1373
      %vm1375 = vcmask 138240
      %v1376 = vsel %vm1375, %v1358, %v1360
      %v1377 = vsel %vm1375, %v1360, %v1362
      %v1378 = vsel %vm1375, %v1362, %v1364
      %v1379 = vsel %vm1375, %v1364, %v1366
      %v1380 = vsel %vm1375, %v1366, %v1368
      %v1381 = vsel %vm1375, %v1368, %v1370
      %v1382 = vsel %vm1375, %v1370, %v1372
      %v1383 = vsel %vm1375, %v1372, %v1374
      %1392 = vst [vmem:[#allocation2 + $0x680] sm:$0xff] %v1376
      %1393 = vst [vmem:[#allocation2 + $0x688] sm:$0xff] %v1377
      %1394 = vst [vmem:[#allocation2 + $0x690] sm:$0xff] %v1378
      %1395 = vst [vmem:[#allocation2 + $0x698] sm:$0xff] %v1379
      %1396 = vst [vmem:[#allocation2 + $0x6a0] sm:$0xff] %v1380
      %1397 = vst [vmem:[#allocation2 + $0x6a8] sm:$0xff] %v1381
      %1398 = vst [vmem:[#allocation2 + $0x6b0] sm:$0xff] %v1382
      %1399 = vst [vmem:[#allocation2 + $0x6b8] sm:$0xff] %v1383
      %v1400 = vld [vmem:[%s1] sm:$0xff]
      %v1401 = vld [vmem:[%s1 + $0x8] sm:$0xff]
      %v1402 = vld [vmem:[#allocation2] sm:$0xff]
      %v1403 = vld [vmem:[#allocation2 + $0x8] sm:$0xff]
      %v1404 = vld [vmem:[#allocation2 + $0x10] sm:$0xff]
      %v1405 = vld [vmem:[#allocation2 + $0x18] sm:$0xff]
      %v1406 = vld [vmem:[#allocation2 + $0x20] sm:$0xff]
      %v1407 = vld [vmem:[#allocation2 + $0x28] sm:$0xff]
      %v1408 = vld [vmem:[#allocation2 + $0x30] sm:$0xff]
      %v1409 = vld [vmem:[#allocation2 + $0x38] sm:$0xff]
      %v1410 = vld [vmem:[#allocation2 + $0x40] sm:$0xff]
      %v1411 = vld [vmem:[#allocation2 + $0x48] sm:$0xff]
      %v1412 = vld [vmem:[#allocation2 + $0x50] sm:$0xff]
      %v1413 = vld [vmem:[#allocation2 + $0x58] sm:$0xff]
      %v1414 = vld [vmem:[#allocation2 + $0x60] sm:$0xff]
      %v1415 = vld [vmem:[#allocation2 + $0x68] sm:$0xff]
      %v1416 = vld [vmem:[#allocation2 + $0x70] sm:$0xff]
      %v1417 = vld [vmem:[#allocation2 + $0x78] sm:$0xff]
      %v1418 = vld [vmem:[#allocation2 + $0x80] sm:$0xff]
      %v1419 = vld [vmem:[#allocation2 + $0x88] sm:$0xff]
      %v1420 = vld [vmem:[#allocation2 + $0x90] sm:$0xff]
      %v1421 = vld [vmem:[#allocation2 + $0x98] sm:$0xff]
      %v1422 = vld [vmem:[#allocation2 + $0xa0] sm:$0xff]
      %v1423 = vld [vmem:[#allocation2 + $0xa8] sm:$0xff]
      %v1424 = vld [vmem:[#allocation2 + $0xb0] sm:$0xff]
      %v1425 = vld [vmem:[#allocation2 + $0xb8] sm:$0xff]
      %v1426 = vld [vmem:[#allocation2 + $0xc0] sm:$0xff]
      %v1427 = vld [vmem:[#allocation2 + $0xc8] sm:$0xff]
      %v1428 = vld [vmem:[#allocation2 + $0xd0] sm:$0xff]
      %v1429 = vld [vmem:[#allocation2 + $0xd8] sm:$0xff]
      %v1430 = vld [vmem:[#allocation2 + $0xe0] sm:$0xff]
      %v1431 = vld [vmem:[#allocation2 + $0xe8] sm:$0xff]
      %v1432 = vld [vmem:[#allocation2 + $0xf0] sm:$0xff]
      %v1433 = vld [vmem:[#allocation2 + $0xf8] sm:$0xff]
      %v1434 = vld [vmem:[#allocation2 + $0x100] sm:$0xff]
      %v1435 = vld [vmem:[#allocation2 + $0x108] sm:$0xff]
      %v1436 = vld [vmem:[#allocation2 + $0x110] sm:$0xff]
      %v1437 = vld [vmem:[#allocation2 + $0x118] sm:$0xff]
      %v1438 = vld [vmem:[#allocation2 + $0x120] sm:$0xff]
      %v1439 = vld [vmem:[#allocation2 + $0x128] sm:$0xff]
      %v1440 = vld [vmem:[#allocation2 + $0x130] sm:$0xff]
      %v1441 = vld [vmem:[#allocation2 + $0x138] sm:$0xff]
      %v1442 = vld [vmem:[#allocation2 + $0x140] sm:$0xff]
      %v1443 = vld [vmem:[#allocation2 + $0x148] sm:$0xff]
      %v1444 = vld [vmem:[#allocation2 + $0x150] sm:$0xff]
      %v1445 = vld [vmem:[#allocation2 + $0x158] sm:$0xff]
      %v1446 = vld [vmem:[#allocation2 + $0x160] sm:$0xff]
      %v1447 = vld [vmem:[#allocation2 + $0x168] sm:$0xff]
      %v1448 = vld [vmem:[#allocation2 + $0x170] sm:$0xff]
      %v1449 = vld [vmem:[#allocation2 + $0x178] sm:$0xff]
      %v1450 = vld [vmem:[#allocation2 + $0x180] sm:$0xff]
      %v1451 = vld [vmem:[#allocation2 + $0x188] sm:$0xff]
      %v1452 = vld [vmem:[#allocation2 + $0x190] sm:$0xff]
      %v1453 = vld [vmem:[#allocation2 + $0x198] sm:$0xff]
      %v1454 = vld [vmem:[#allocation2 + $0x1a0] sm:$0xff]
      %v1455 = vld [vmem:[#allocation2 + $0x1a8] sm:$0xff]
      %v1456 = vld [vmem:[#allocation2 + $0x1b0] sm:$0xff]
      %v1457 = vld [vmem:[#allocation2 + $0x1b8] sm:$0xff]
      %v1458 = vld [vmem:[#allocation2 + $0x1c0] sm:$0xff]
      %v1459 = vld [vmem:[#allocation2 + $0x1c8] sm:$0xff]
      %v1460 = vld [vmem:[#allocation2 + $0x1d0] sm:$0xff]
      %v1461 = vld [vmem:[#allocation2 + $0x1d8] sm:$0xff]
      %v1462 = vld [vmem:[#allocation2 + $0x1e0] sm:$0xff]
      %v1463 = vld [vmem:[#allocation2 + $0x1e8] sm:$0xff]
      %v1464 = vld [vmem:[#allocation2 + $0x1f0] sm:$0xff]
      %v1465 = vld [vmem:[#allocation2 + $0x1f8] sm:$0xff]
      %v1466 = vld [vmem:[#allocation2 + $0x200] sm:$0xff]
      %v1467 = vld [vmem:[#allocation2 + $0x208] sm:$0xff]
      %v1468 = vld [vmem:[#allocation2 + $0x210] sm:$0xff]
      %v1469 = vld [vmem:[#allocation2 + $0x218] sm:$0xff]
      %v1470 = vld [vmem:[#allocation2 + $0x220] sm:$0xff]
      %v1471 = vld [vmem:[#allocation2 + $0x228] sm:$0xff]
      %v1472 = vld [vmem:[#allocation2 + $0x230] sm:$0xff]
      %v1473 = vld [vmem:[#allocation2 + $0x238] sm:$0xff]
      %v1474 = vld [vmem:[#allocation2 + $0x240] sm:$0xff]
      %v1475 = vld [vmem:[#allocation2 + $0x248] sm:$0xff]
      %v1476 = vld [vmem:[#allocation2 + $0x250] sm:$0xff]
      %v1477 = vld [vmem:[#allocation2 + $0x258] sm:$0xff]
      %v1478 = vld [vmem:[#allocation2 + $0x260] sm:$0xff]
      %v1479 = vld [vmem:[#allocation2 + $0x268] sm:$0xff]
      %v1480 = vld [vmem:[#allocation2 + $0x270] sm:$0xff]
      %v1481 = vld [vmem:[#allocation2 + $0x278] sm:$0xff]
      %v1482 = vld [vmem:[#allocation2 + $0x280] sm:$0xff]
      %v1483 = vld [vmem:[#allocation2 + $0x288] sm:$0xff]
      %v1484 = vld [vmem:[#allocation2 + $0x290] sm:$0xff]
      %v1485 = vld [vmem:[#allocation2 + $0x298] sm:$0xff]
      %v1486 = vld [vmem:[#allocation2 + $0x2a0] sm:$0xff]
      %v1487 = vld [vmem:[#allocation2 + $0x2a8] sm:$0xff]
      %v1488 = vld [vmem:[#allocation2 + $0x2b0] sm:$0xff]
      %v1489 = vld [vmem:[#allocation2 + $0x2b8] sm:$0xff]
      %v1490 = vld [vmem:[#allocation2 + $0x2c0] sm:$0xff]
      %v1491 = vld [vmem:[#allocation2 + $0x2c8] sm:$0xff]
      %v1492 = vld [vmem:[#allocation2 + $0x2d0] sm:$0xff]
      %v1493 = vld [vmem:[#allocation2 + $0x2d8] sm:$0xff]
      %v1494 = vld [vmem:[#allocation2 + $0x2e0] sm:$0xff]
      %v1495 = vld [vmem:[#allocation2 + $0x2e8] sm:$0xff]
      %v1496 = vld [vmem:[#allocation2 + $0x2f0] sm:$0xff]
      %v1497 = vld [vmem:[#allocation2 + $0x2f8] sm:$0xff]
      %v1498 = vld [vmem:[#allocation2 + $0x300] sm:$0xff]
      %v1499 = vld [vmem:[#allocation2 + $0x308] sm:$0xff]
      %v1500 = vld [vmem:[#allocation2 + $0x310] sm:$0xff]
      %v1501 = vld [vmem:[#allocation2 + $0x318] sm:$0xff]
      %v1502 = vld [vmem:[#allocation2 + $0x320] sm:$0xff]
      %v1503 = vld [vmem:[#allocation2 + $0x328] sm:$0xff]
      %v1504 = vld [vmem:[#allocation2 + $0x330] sm:$0xff]
      %v1505 = vld [vmem:[#allocation2 + $0x338] sm:$0xff]
      %v1506 = vld [vmem:[#allocation2 + $0x340] sm:$0xff]
      %v1507 = vld [vmem:[#allocation2 + $0x348] sm:$0xff]
      %v1508 = vld [vmem:[#allocation2 + $0x350] sm:$0xff]
      %v1509 = vld [vmem:[#allocation2 + $0x358] sm:$0xff]
      %v1510 = vld [vmem:[#allocation2 + $0x360] sm:$0xff]
      %v1511 = vld [vmem:[#allocation2 + $0x368] sm:$0xff]
      %v1512 = vld [vmem:[#allocation2 + $0x370] sm:$0xff]
      %v1513 = vld [vmem:[#allocation2 + $0x378] sm:$0xff]
      %v1514 = vld [vmem:[#allocation2 + $0x380] sm:$0xff]
      %v1515 = vld [vmem:[#allocation2 + $0x388] sm:$0xff]
      %v1516 = vld [vmem:[#allocation2 + $0x390] sm:$0xff]
      %v1517 = vld [vmem:[#allocation2 + $0x398] sm:$0xff]
      %v1518 = vld [vmem:[#allocation2 + $0x3a0] sm:$0xff]
      %v1519 = vld [vmem:[#allocation2 + $0x3a8] sm:$0xff]
      %v1520 = vld [vmem:[#allocation2 + $0x3b0] sm:$0xff]
      %v1521 = vld [vmem:[#allocation2 + $0x3b8] sm:$0xff]
      %v1522 = vld [vmem:[#allocation2 + $0x3c0] sm:$0xff]
      %v1523 = vld [vmem:[#allocation2 + $0x3c8] sm:$0xff]
      %v1524 = vld [vmem:[#allocation2 + $0x3d0] sm:$0xff]
      %v1525 = vld [vmem:[#allocation2 + $0x3d8] sm:$0xff]
      %v1526 = vld [vmem:[#allocation2 + $0x3e0] sm:$0xff]
      %v1527 = vld [vmem:[#allocation2 + $0x3e8] sm:$0xff]
      %v1528 = vld [vmem:[#allocation2 + $0x3f0] sm:$0xff]
      %v1529 = vld [vmem:[#allocation2 + $0x3f8] sm:$0xff]
      %v1530 = vld [vmem:[#allocation2 + $0x400] sm:$0xff]
      %v1531 = vld [vmem:[#allocation2 + $0x408] sm:$0xff]
      %v1532 = vld [vmem:[#allocation2 + $0x410] sm:$0xff]
      %v1533 = vld [vmem:[#allocation2 + $0x418] sm:$0xff]
      %v1534 = vld [vmem:[#allocation2 + $0x420] sm:$0xff]
      %v1535 = vld [vmem:[#allocation2 + $0x428] sm:$0xff]
      %v1536 = vld [vmem:[#allocation2 + $0x430] sm:$0xff]
      %v1537 = vld [vmem:[#allocation2 + $0x438] sm:$0xff]
      %v1538 = vld [vmem:[#allocation2 + $0x440] sm:$0xff]
      %v1539 = vld [vmem:[#allocation2 + $0x448] sm:$0xff]
      %v1540 = vld [vmem:[#allocation2 + $0x450] sm:$0xff]
      %v1541 = vld [vmem:[#allocation2 + $0x458] sm:$0xff]
      %v1542 = vld [vmem:[#allocation2 + $0x460] sm:$0xff]
      %v1543 = vld [vmem:[#allocation2 + $0x468] sm:$0xff]
      %v1544 = vld [vmem:[#allocation2 + $0x470] sm:$0xff]
      %v1545 = vld [vmem:[#allocation2 + $0x478] sm:$0xff]
      %v1546 = vld [vmem:[#allocation2 + $0x480] sm:$0xff]
      %v1547 = vld [vmem:[#allocation2 + $0x488] sm:$0xff]
      %v1548 = vld [vmem:[#allocation2 + $0x490] sm:$0xff]
      %v1549 = vld [vmem:[#allocation2 + $0x498] sm:$0xff]
      %v1550 = vld [vmem:[#allocation2 + $0x4a0] sm:$0xff]
      %v1551 = vld [vmem:[#allocation2 + $0x4a8] sm:$0xff]
      %v1552 = vld [vmem:[#allocation2 + $0x4b0] sm:$0xff]
      %v1553 = vld [vmem:[#allocation2 + $0x4b8] sm:$0xff]
      %v1554 = vld [vmem:[#allocation2 + $0x4c0] sm:$0xff]
      %v1555 = vld [vmem:[#allocation2 + $0x4c8] sm:$0xff]
      %v1556 = vld [vmem:[#allocation2 + $0x4d0] sm:$0xff]
      %v1557 = vld [vmem:[#allocation2 + $0x4d8] sm:$0xff]
      %v1558 = vld [vmem:[#allocation2 + $0x4e0] sm:$0xff]
      %v1559 = vld [vmem:[#allocation2 + $0x4e8] sm:$0xff]
      %v1560 = vld [vmem:[#allocation2 + $0x4f0] sm:$0xff]
      %v1561 = vld [vmem:[#allocation2 + $0x4f8] sm:$0xff]
      %v1562 = vld [vmem:[#allocation2 + $0x500] sm:$0xff]
      %v1563 = vld [vmem:[#allocation2 + $0x508] sm:$0xff]
      %v1564 = vld [vmem:[#allocation2 + $0x510] sm:$0xff]
      %v1565 = vld [vmem:[#allocation2 + $0x518] sm:$0xff]
      %v1566 = vld [vmem:[#allocation2 + $0x520] sm:$0xff]
      %v1567 = vld [vmem:[#allocation2 + $0x528] sm:$0xff]
      %v1568 = vld [vmem:[#allocation2 + $0x530] sm:$0xff]
      %v1569 = vld [vmem:[#allocation2 + $0x538] sm:$0xff]
      %v1570 = vld [vmem:[#allocation2 + $0x540] sm:$0xff]
      %v1571 = vld [vmem:[#allocation2 + $0x548] sm:$0xff]
      %v1572 = vld [vmem:[#allocation2 + $0x550] sm:$0xff]
      %v1573 = vld [vmem:[#allocation2 + $0x558] sm:$0xff]
      %v1574 = vld [vmem:[#allocation2 + $0x560] sm:$0xff]
      %v1575 = vld [vmem:[#allocation2 + $0x568] sm:$0xff]
      %v1576 = vld [vmem:[#allocation2 + $0x570] sm:$0xff]
      %v1577 = vld [vmem:[#allocation2 + $0x578] sm:$0xff]
      %v1578 = vld [vmem:[#allocation2 + $0x580] sm:$0xff]
      %v1579 = vld [vmem:[#allocation2 + $0x588] sm:$0xff]
      %v1580 = vld [vmem:[#allocation2 + $0x590] sm:$0xff]
      %v1581 = vld [vmem:[#allocation2 + $0x598] sm:$0xff]
      %v1582 = vld [vmem:[#allocation2 + $0x5a0] sm:$0xff]
      %v1583 = vld [vmem:[#allocation2 + $0x5a8] sm:$0xff]
      %v1584 = vld [vmem:[#allocation2 + $0x5b0] sm:$0xff]
      %v1585 = vld [vmem:[#allocation2 + $0x5b8] sm:$0xff]
      %v1586 = vld [vmem:[#allocation2 + $0x5c0] sm:$0xff]
      %v1587 = vld [vmem:[#allocation2 + $0x5c8] sm:$0xff]
      %v1588 = vld [vmem:[#allocation2 + $0x5d0] sm:$0xff]
      %v1589 = vld [vmem:[#allocation2 + $0x5d8] sm:$0xff]
      %v1590 = vld [vmem:[#allocation2 + $0x5e0] sm:$0xff]
      %v1591 = vld [vmem:[#allocation2 + $0x5e8] sm:$0xff]
      %v1592 = vld [vmem:[#allocation2 + $0x5f0] sm:$0xff]
      %v1593 = vld [vmem:[#allocation2 + $0x5f8] sm:$0xff]
      %v1594 = vld [vmem:[#allocation2 + $0x600] sm:$0xff]
      %v1595 = vld [vmem:[#allocation2 + $0x608] sm:$0xff]
      %v1596 = vld [vmem:[#allocation2 + $0x610] sm:$0xff]
      %v1597 = vld [vmem:[#allocation2 + $0x618] sm:$0xff]
      %v1598 = vld [vmem:[#allocation2 + $0x620] sm:$0xff]
      %v1599 = vld [vmem:[#allocation2 + $0x628] sm:$0xff]
      %v1600 = vld [vmem:[#allocation2 + $0x630] sm:$0xff]
      %v1601 = vld [vmem:[#allocation2 + $0x638] sm:$0xff]
      %v1602 = vld [vmem:[#allocation2 + $0x640] sm:$0xff]
      %v1603 = vld [vmem:[#allocation2 + $0x648] sm:$0xff]
      %v1604 = vld [vmem:[#allocation2 + $0x650] sm:$0xff]
      %v1605 = vld [vmem:[#allocation2 + $0x658] sm:$0xff]
      %v1606 = vld [vmem:[#allocation2 + $0x660] sm:$0xff]
      %v1607 = vld [vmem:[#allocation2 + $0x668] sm:$0xff]
      %v1608 = vld [vmem:[#allocation2 + $0x670] sm:$0xff]
      %v1609 = vld [vmem:[#allocation2 + $0x678] sm:$0xff]
      %v1610 = vld [vmem:[#allocation2 + $0x680] sm:$0xff]
      %v1611 = vld [vmem:[#allocation2 + $0x688] sm:$0xff]
      %v1612 = vld [vmem:[#allocation2 + $0x690] sm:$0xff]
      %v1613 = vld [vmem:[#allocation2 + $0x698] sm:$0xff]
      %v1614 = vld [vmem:[#allocation2 + $0x6a0] sm:$0xff]
      %v1615 = vld [vmem:[#allocation2 + $0x6a8] sm:$0xff]
      %v1616 = vld [vmem:[#allocation2 + $0x6b0] sm:$0xff]
      %v1617 = vld [vmem:[#allocation2 + $0x6b8] sm:$0xff]
      %v1618 = vld [vmem:[%s2] sm:$0xff]
      %1620 = vset.pattern.permute.xlu0 0
      %1621 = vperm.xlu0 %1620, %v1618
      %v1622 = vpop.permute.xlu0 %1621
      %vm1624 = vcmask 719872
      %v1626 = vsel %vm1624, %v1401, 0
      %1628 = vmatpush.msra.mxu0 %v1522
      %1629 = vmatpush.msra.mxu0 %v1514
      %1630 = vmatpush.msra.mxu0 %v1506
      %1631 = vmatpush.msra.mxu0 %v1498
      %1632 = vmatpush.msra.mxu0 %v1490
      %1633 = vmatpush.msra.mxu0 %v1482
      %1634 = vmatpush.msra.mxu0 %v1474
      %1635 = vmatpush.msra.mxu0 %v1466
      %1636 = vmatpush.msra.mxu0 %v1458
      %1637 = vmatpush.msra.mxu0 %v1450
      %1638 = vmatpush.msra.mxu0 %v1442
      %1639 = vmatpush.msra.mxu0 %v1434
      %1640 = vmatpush.msra.mxu0 %v1426
      %1641 = vmatpush.msra.mxu0 %v1418
      %1642 = vmatpush.msra.mxu0 %v1410
      %1643 = vmatpush.msra.mxu0 %v1402
      %1644 = vmatmul.f32.gmra.mxu0 %v1400
      %v1645 = vpop.f32.mrf.mxu0
      %v1646 = vadd.f32 %v1622, %v1645
      %1647 = vdwg.mxu0
      %1648 = vmatpush.msra.mxu0 0.0
      %1649 = vmatpush.msra.mxu0 0.0
      %1650 = vmatpush.msra.mxu0 0.0
      %1651 = vmatpush.msra.mxu0 0.0
      %1652 = vmatpush.msra.mxu0 0.0
      %1653 = vmatpush.msra.mxu0 %v1610
      %1654 = vmatpush.msra.mxu0 %v1602
      %1655 = vmatpush.msra.mxu0 %v1594
      %1656 = vmatpush.msra.mxu0 %v1586
      %1657 = vmatpush.msra.mxu0 %v1578
      %1658 = vmatpush.msra.mxu0 %v1570
      %1659 = vmatpush.msra.mxu0 %v1562
      %1660 = vmatpush.msra.mxu0 %v1554
      %1661 = vmatpush.msra.mxu0 %v1546
      %1662 = vmatpush.msra.mxu0 %v1538
      %1663 = vmatpush.msra.mxu0 %v1530
      %1664 = vmatmul.f32.gmra.mxu0 %v1626
      %v1665 = vpop.f32.mrf.mxu0
      %v1666 = vadd.f32 %v1646, %v1665
      %1667 = vdwg.mxu0
      %1668 = vmatpush.msra.mxu0 %v1523
      %1669 = vmatpush.msra.mxu0 %v1515
      %1670 = vmatpush.msra.mxu0 %v1507
      %1671 = vmatpush.msra.mxu0 %v1499
      %1672 = vmatpush.msra.mxu0 %v1491
      %1673 = vmatpush.msra.mxu0 %v1483
      %1674 = vmatpush.msra.mxu0 %v1475
      %1675 = vmatpush.msra.mxu0 %v1467
      %1676 = vmatpush.msra.mxu0 %v1459
      %1677 = vmatpush.msra.mxu0 %v1451
      %1678 = vmatpush.msra.mxu0 %v1443
      %1679 = vmatpush.msra.mxu0 %v1435
      %1680 = vmatpush.msra.mxu0 %v1427
      %1681 = vmatpush.msra.mxu0 %v1419
      %1682 = vmatpush.msra.mxu0 %v1411
      %1683 = vmatpush.msra.mxu0 %v1403
      %1684 = vmatmul.f32.gmra.mxu0 %v1400
      %v1685 = vpop.f32.mrf.mxu0
      %v1686 = vadd.f32 %v1622, %v1685
      %1687 = vdwg.mxu0
      %1688 = vmatpush.msra.mxu0 0.0
      %1689 = vmatpush.msra.mxu0 0.0
      %1690 = vmatpush.msra.mxu0 0.0
      %1691 = vmatpush.msra.mxu0 0.0
      %1692 = vmatpush.msra.mxu0 0.0
      %1693 = vmatpush.msra.mxu0 %v1611
      %1694 = vmatpush.msra.mxu0 %v1603
      %1695 = vmatpush.msra.mxu0 %v1595
      %1696 = vmatpush.msra.mxu0 %v1587
      %1697 = vmatpush.msra.mxu0 %v1579
      %1698 = vmatpush.msra.mxu0 %v1571
      %1699 = vmatpush.msra.mxu0 %v1563
      %1700 = vmatpush.msra.mxu0 %v1555
      %1701 = vmatpush.msra.mxu0 %v1547
      %1702 = vmatpush.msra.mxu0 %v1539
      %1703 = vmatpush.msra.mxu0 %v1531
      %1704 = vmatmul.f32.gmra.mxu0 %v1626
      %v1705 = vpop.f32.mrf.mxu0
      %v1706 = vadd.f32 %v1686, %v1705
      %1707 = vdwg.mxu0
      %1708 = vmatpush.msra.mxu0 %v1524
      %1709 = vmatpush.msra.mxu0 %v1516
      %1710 = vmatpush.msra.mxu0 %v1508
      %1711 = vmatpush.msra.mxu0 %v1500
      %1712 = vmatpush.msra.mxu0 %v1492
      %1713 = vmatpush.msra.mxu0 %v1484
      %1714 = vmatpush.msra.mxu0 %v1476
      %1715 = vmatpush.msra.mxu0 %v1468
      %1716 = vmatpush.msra.mxu0 %v1460
      %1717 = vmatpush.msra.mxu0 %v1452
      %1718 = vmatpush.msra.mxu0 %v1444
      %1719 = vmatpush.msra.mxu0 %v1436
      %1720 = vmatpush.msra.mxu0 %v1428
      %1721 = vmatpush.msra.mxu0 %v1420
      %1722 = vmatpush.msra.mxu0 %v1412
      %1723 = vmatpush.msra.mxu0 %v1404
      %1724 = vmatmul.f32.gmra.mxu0 %v1400
      %v1725 = vpop.f32.mrf.mxu0
      %v1726 = vadd.f32 %v1622, %v1725
      %1727 = vdwg.mxu0
      %1728 = vmatpush.msra.mxu0 0.0
      %1729 = vmatpush.msra.mxu0 0.0
      %1730 = vmatpush.msra.mxu0 0.0
      %1731 = vmatpush.msra.mxu0 0.0
      %1732 = vmatpush.msra.mxu0 0.0
      %1733 = vmatpush.msra.mxu0 %v1612
      %1734 = vmatpush.msra.mxu0 %v1604
      %1735 = vmatpush.msra.mxu0 %v1596
      %1736 = vmatpush.msra.mxu0 %v1588
      %1737 = vmatpush.msra.mxu0 %v1580
      %1738 = vmatpush.msra.mxu0 %v1572
      %1739 = vmatpush.msra.mxu0 %v1564
      %1740 = vmatpush.msra.mxu0 %v1556
      %1741 = vmatpush.msra.mxu0 %v1548
      %1742 = vmatpush.msra.mxu0 %v1540
      %1743 = vmatpush.msra.mxu0 %v1532
      %1744 = vmatmul.f32.gmra.mxu0 %v1626
      %v1745 = vpop.f32.mrf.mxu0
      %v1746 = vadd.f32 %v1726, %v1745
      %1747 = vdwg.mxu0
      %1748 = vmatpush.msra.mxu0 %v1525
      %1749 = vmatpush.msra.mxu0 %v1517
      %1750 = vmatpush.msra.mxu0 %v1509
      %1751 = vmatpush.msra.mxu0 %v1501
      %1752 = vmatpush.msra.mxu0 %v1493
      %1753 = vmatpush.msra.mxu0 %v1485
      %1754 = vmatpush.msra.mxu0 %v1477
      %1755 = vmatpush.msra.mxu0 %v1469
      %1756 = vmatpush.msra.mxu0 %v1461
      %1757 = vmatpush.msra.mxu0 %v1453
      %1758 = vmatpush.msra.mxu0 %v1445
      %1759 = vmatpush.msra.mxu0 %v1437
      %1760 = vmatpush.msra.mxu0 %v1429
      %1761 = vmatpush.msra.mxu0 %v1421
      %1762 = vmatpush.msra.mxu0 %v1413
      %1763 = vmatpush.msra.mxu0 %v1405
      %1764 = vmatmul.f32.gmra.mxu0 %v1400
      %v1765 = vpop.f32.mrf.mxu0
      %v1766 = vadd.f32 %v1622, %v1765
      %1767 = vdwg.mxu0
      %1768 = vmatpush.msra.mxu0 0.0
      %1769 = vmatpush.msra.mxu0 0.0
      %1770 = vmatpush.msra.mxu0 0.0
      %1771 = vmatpush.msra.mxu0 0.0
      %1772 = vmatpush.msra.mxu0 0.0
      %1773 = vmatpush.msra.mxu0 %v1613
      %1774 = vmatpush.msra.mxu0 %v1605
      %1775 = vmatpush.msra.mxu0 %v1597
      %1776 = vmatpush.msra.mxu0 %v1589
      %1777 = vmatpush.msra.mxu0 %v1581
      %1778 = vmatpush.msra.mxu0 %v1573
      %1779 = vmatpush.msra.mxu0 %v1565
      %1780 = vmatpush.msra.mxu0 %v1557
      %1781 = vmatpush.msra.mxu0 %v1549
      %1782 = vmatpush.msra.mxu0 %v1541
      %1783 = vmatpush.msra.mxu0 %v1533
      %1784 = vmatmul.f32.gmra.mxu0 %v1626
      %v1785 = vpop.f32.mrf.mxu0
      %v1786 = vadd.f32 %v1766, %v1785
      %1787 = vdwg.mxu0
      %1788 = vmatpush.msra.mxu0 %v1526
      %1789 = vmatpush.msra.mxu0 %v1518
      %1790 = vmatpush.msra.mxu0 %v1510
      %1791 = vmatpush.msra.mxu0 %v1502
      %1792 = vmatpush.msra.mxu0 %v1494
      %1793 = vmatpush.msra.mxu0 %v1486
      %1794 = vmatpush.msra.mxu0 %v1478
      %1795 = vmatpush.msra.mxu0 %v1470
      %1796 = vmatpush.msra.mxu0 %v1462
      %1797 = vmatpush.msra.mxu0 %v1454
      %1798 = vmatpush.msra.mxu0 %v1446
      %1799 = vmatpush.msra.mxu0 %v1438
      %1800 = vmatpush.msra.mxu0 %v1430
      %1801 = vmatpush.msra.mxu0 %v1422
      %1802 = vmatpush.msra.mxu0 %v1414
      %1803 = vmatpush.msra.mxu0 %v1406
      %1804 = vmatmul.f32.gmra.mxu0 %v1400
      %v1805 = vpop.f32.mrf.mxu0
      %v1806 = vadd.f32 %v1622, %v1805
      %1807 = vdwg.mxu0
      %1808 = vmatpush.msra.mxu0 0.0
      %1809 = vmatpush.msra.mxu0 0.0
      %1810 = vmatpush.msra.mxu0 0.0
      %1811 = vmatpush.msra.mxu0 0.0
      %1812 = vmatpush.msra.mxu0 0.0
      %1813 = vmatpush.msra.mxu0 %v1614
      %1814 = vmatpush.msra.mxu0 %v1606
      %1815 = vmatpush.msra.mxu0 %v1598
      %1816 = vmatpush.msra.mxu0 %v1590
      %1817 = vmatpush.msra.mxu0 %v1582
      %1818 = vmatpush.msra.mxu0 %v1574
      %1819 = vmatpush.msra.mxu0 %v1566
      %1820 = vmatpush.msra.mxu0 %v1558
      %1821 = vmatpush.msra.mxu0 %v1550
      %1822 = vmatpush.msra.mxu0 %v1542
      %1823 = vmatpush.msra.mxu0 %v1534
      %1824 = vmatmul.f32.gmra.mxu0 %v1626
      %v1825 = vpop.f32.mrf.mxu0
      %v1826 = vadd.f32 %v1806, %v1825
      %1827 = vdwg.mxu0
      %1828 = vmatpush.msra.mxu0 %v1527
      %1829 = vmatpush.msra.mxu0 %v1519
      %1830 = vmatpush.msra.mxu0 %v1511
      %1831 = vmatpush.msra.mxu0 %v1503
      %1832 = vmatpush.msra.mxu0 %v1495
      %1833 = vmatpush.msra.mxu0 %v1487
      %1834 = vmatpush.msra.mxu0 %v1479
      %1835 = vmatpush.msra.mxu0 %v1471
      %1836 = vmatpush.msra.mxu0 %v1463
      %1837 = vmatpush.msra.mxu0 %v1455
      %1838 = vmatpush.msra.mxu0 %v1447
      %1839 = vmatpush.msra.mxu0 %v1439
      %1840 = vmatpush.msra.mxu0 %v1431
      %1841 = vmatpush.msra.mxu0 %v1423
      %1842 = vmatpush.msra.mxu0 %v1415
      %1843 = vmatpush.msra.mxu0 %v1407
      %1844 = vmatmul.f32.gmra.mxu0 %v1400
      %v1845 = vpop.f32.mrf.mxu0
      %v1846 = vadd.f32 %v1622, %v1845
      %1847 = vdwg.mxu0
      %1848 = vmatpush.msra.mxu0 0.0
      %1849 = vmatpush.msra.mxu0 0.0
      %1850 = vmatpush.msra.mxu0 0.0
      %1851 = vmatpush.msra.mxu0 0.0
      %1852 = vmatpush.msra.mxu0 0.0
      %1853 = vmatpush.msra.mxu0 %v1615
      %1854 = vmatpush.msra.mxu0 %v1607
      %1855 = vmatpush.msra.mxu0 %v1599
      %1856 = vmatpush.msra.mxu0 %v1591
      %1857 = vmatpush.msra.mxu0 %v1583
      %1858 = vmatpush.msra.mxu0 %v1575
      %1859 = vmatpush.msra.mxu0 %v1567
      %1860 = vmatpush.msra.mxu0 %v1559
      %1861 = vmatpush.msra.mxu0 %v1551
      %1862 = vmatpush.msra.mxu0 %v1543
      %1863 = vmatpush.msra.mxu0 %v1535
      %1864 = vmatmul.f32.gmra.mxu0 %v1626
      %v1865 = vpop.f32.mrf.mxu0
      %v1866 = vadd.f32 %v1846, %v1865
      %1867 = vdwg.mxu0
      %1868 = vmatpush.msra.mxu0 %v1528
      %1869 = vmatpush.msra.mxu0 %v1520
      %1870 = vmatpush.msra.mxu0 %v1512
      %1871 = vmatpush.msra.mxu0 %v1504
      %1872 = vmatpush.msra.mxu0 %v1496
      %1873 = vmatpush.msra.mxu0 %v1488
      %1874 = vmatpush.msra.mxu0 %v1480
      %1875 = vmatpush.msra.mxu0 %v1472
      %1876 = vmatpush.msra.mxu0 %v1464
      %1877 = vmatpush.msra.mxu0 %v1456
      %1878 = vmatpush.msra.mxu0 %v1448
      %1879 = vmatpush.msra.mxu0 %v1440
      %1880 = vmatpush.msra.mxu0 %v1432
      %1881 = vmatpush.msra.mxu0 %v1424
      %1882 = vmatpush.msra.mxu0 %v1416
      %1883 = vmatpush.msra.mxu0 %v1408
      %1884 = vmatmul.f32.gmra.mxu0 %v1400
      %v1885 = vpop.f32.mrf.mxu0
      %v1886 = vadd.f32 %v1622, %v1885
      %1887 = vdwg.mxu0
      %1888 = vmatpush.msra.mxu0 0.0
      %1889 = vmatpush.msra.mxu0 0.0
      %1890 = vmatpush.msra.mxu0 0.0
      %1891 = vmatpush.msra.mxu0 0.0
      %1892 = vmatpush.msra.mxu0 0.0
      %1893 = vmatpush.msra.mxu0 %v1616
      %1894 = vmatpush.msra.mxu0 %v1608
      %1895 = vmatpush.msra.mxu0 %v1600
      %1896 = vmatpush.msra.mxu0 %v1592
      %1897 = vmatpush.msra.mxu0 %v1584
      %1898 = vmatpush.msra.mxu0 %v1576
      %1899 = vmatpush.msra.mxu0 %v1568
      %1900 = vmatpush.msra.mxu0 %v1560
      %1901 = vmatpush.msra.mxu0 %v1552
      %1902 = vmatpush.msra.mxu0 %v1544
      %1903 = vmatpush.msra.mxu0 %v1536
      %1904 = vmatmul.f32.gmra.mxu0 %v1626
      %v1905 = vpop.f32.mrf.mxu0
      %v1906 = vadd.f32 %v1886, %v1905
      %1907 = vdwg.mxu0
      %1908 = vmatpush.msra.mxu0 %v1529
      %1909 = vmatpush.msra.mxu0 %v1521
      %1910 = vmatpush.msra.mxu0 %v1513
      %1911 = vmatpush.msra.mxu0 %v1505
      %1912 = vmatpush.msra.mxu0 %v1497
      %1913 = vmatpush.msra.mxu0 %v1489
      %1914 = vmatpush.msra.mxu0 %v1481
      %1915 = vmatpush.msra.mxu0 %v1473
      %1916 = vmatpush.msra.mxu0 %v1465
      %1917 = vmatpush.msra.mxu0 %v1457
      %1918 = vmatpush.msra.mxu0 %v1449
      %1919 = vmatpush.msra.mxu0 %v1441
      %1920 = vmatpush.msra.mxu0 %v1433
      %1921 = vmatpush.msra.mxu0 %v1425
      %1922 = vmatpush.msra.mxu0 %v1417
      %1923 = vmatpush.msra.mxu0 %v1409
      %1924 = vmatmul.f32.gmra.mxu0 %v1400
      %v1925 = vpop.f32.mrf.mxu0
      %v1926 = vadd.f32 %v1622, %v1925
      %1927 = vdwg.mxu0
      %1928 = vmatpush.msra.mxu0 0.0
      %1929 = vmatpush.msra.mxu0 0.0
      %1930 = vmatpush.msra.mxu0 0.0
      %1931 = vmatpush.msra.mxu0 0.0
      %1932 = vmatpush.msra.mxu0 0.0
      %1933 = vmatpush.msra.mxu0 %v1617
      %1934 = vmatpush.msra.mxu0 %v1609
      %1935 = vmatpush.msra.mxu0 %v1601
      %1936 = vmatpush.msra.mxu0 %v1593
      %1937 = vmatpush.msra.mxu0 %v1585
      %1938 = vmatpush.msra.mxu0 %v1577
      %1939 = vmatpush.msra.mxu0 %v1569
      %1940 = vmatpush.msra.mxu0 %v1561
      %1941 = vmatpush.msra.mxu0 %v1553
      %1942 = vmatpush.msra.mxu0 %v1545
      %1943 = vmatpush.msra.mxu0 %v1537
      %1944 = vmatmul.f32.gmra.mxu0 %v1626
      %v1945 = vpop.f32.mrf.mxu0
      %v1946 = vadd.f32 %v1926, %v1945
      %1947 = vdwg.mxu0
      %v1948 = vmax.f32 %v1666, 0.0
      %v1949 = vmax.f32 %v1706, 0.0
      %v1950 = vmax.f32 %v1746, 0.0
      %v1951 = vmax.f32 %v1786, 0.0
      %v1952 = vmax.f32 %v1826, 0.0
      %v1953 = vmax.f32 %v1866, 0.0
      %v1954 = vmax.f32 %v1906, 0.0
      %v1955 = vmax.f32 %v1946, 0.0
      %v1956 = vld [vmem:[%s5] sm:$0xff]
      %v1958 = vperm.slane %v1956, 0
      %v1959 = vperm.slane %v1956, 1
      %v1960 = vperm.slane %v1956, 2
      %v1961 = vperm.slane %v1956, 3
      %v1962 = vperm.slane %v1956, 4
      %v1963 = vperm.slane %v1956, 5
      %v1964 = vperm.slane %v1956, 6
      %v1965 = vperm.slane %v1956, 7
      %v1974 = vmul.f32 %v1948, %v1958
      %v1975 = vmul.f32 %v1949, %v1959
      %v1976 = vmul.f32 %v1950, %v1960
      %v1977 = vmul.f32 %v1951, %v1961
      %v1978 = vmul.f32 %v1952, %v1962
      %v1979 = vmul.f32 %v1953, %v1963
      %v1980 = vmul.f32 %v1954, %v1964
      %v1981 = vmul.f32 %v1955, %v1965
      %1982 = vst [vmem:[#allocation3 + $0x8] sm:$0xff] %v1974
      %1983 = vst [vmem:[#allocation3 + $0x10] sm:$0xff] %v1975
      %1984 = vst [vmem:[#allocation3 + $0x18] sm:$0xff] %v1976
      %1985 = vst [vmem:[#allocation3 + $0x20] sm:$0xff] %v1977
      %1986 = vst [vmem:[#allocation3 + $0x28] sm:$0xff] %v1978
      %1987 = vst [vmem:[#allocation3 + $0x30] sm:$0xff] %v1979
      %1988 = vst [vmem:[#allocation3 + $0x38] sm:$0xff] %v1980
      %1989 = vst [vmem:[#allocation3 + $0x40] sm:$0xff] %v1981
      %v1990 = vld [vmem:[#allocation3] sm:$0xff]
      %v1991 = vld [vmem:[#allocation3 + $0x8] sm:$0xff]
      %v1992 = vld [vmem:[#allocation3 + $0x10] sm:$0xff]
      %v1993 = vld [vmem:[#allocation3 + $0x18] sm:$0xff]
      %v1994 = vld [vmem:[#allocation3 + $0x20] sm:$0xff]
      %v1995 = vld [vmem:[#allocation3 + $0x28] sm:$0xff]
      %v1996 = vld [vmem:[#allocation3 + $0x30] sm:$0xff]
      %v1997 = vld [vmem:[#allocation3 + $0x38] sm:$0xff]
      %v1998 = vld [vmem:[#allocation3 + $0x40] sm:$0xff]
      %v1999 = vld [vmem:[#allocation3 + $0x48] sm:$0xff]
      %2009 = vrot.lane.b32.xlu0 %v1990, 111
      %v2010 = vpop.permute.xlu0 %2009
      %2011 = vrot.lane.b32.xlu0 %v1991, 111
      %v2012 = vpop.permute.xlu0 %2011
      %2013 = vrot.lane.b32.xlu0 %v1992, 111
      %v2014 = vpop.permute.xlu0 %2013
      %2015 = vrot.lane.b32.xlu0 %v1993, 111
      %v2016 = vpop.permute.xlu0 %2015
      %2017 = vrot.lane.b32.xlu0 %v1994, 111
      %v2018 = vpop.permute.xlu0 %2017
      %2019 = vrot.lane.b32.xlu0 %v1995, 111
      %v2020 = vpop.permute.xlu0 %2019
      %2021 = vrot.lane.b32.xlu0 %v1996, 111
      %v2022 = vpop.permute.xlu0 %2021
      %2023 = vrot.lane.b32.xlu0 %v1997, 111
      %v2024 = vpop.permute.xlu0 %2023
      %2025 = vrot.lane.b32.xlu0 %v1998, 111
      %v2026 = vpop.permute.xlu0 %2025
      %v2027 = vsel %vm291, %v2010, %v2012
      %v2028 = vsel %vm291, %v2012, %v2014
      %v2029 = vsel %vm291, %v2014, %v2016
      %v2030 = vsel %vm291, %v2016, %v2018
      %v2031 = vsel %vm291, %v2018, %v2020
      %v2032 = vsel %vm291, %v2020, %v2022
      %v2033 = vsel %vm291, %v2022, %v2024
      %v2034 = vsel %vm291, %v2024, %v2026
      %2043 = vst [vmem:[#allocation2] sm:$0xff] %v2027
      %2044 = vst [vmem:[#allocation2 + $0x8] sm:$0xff] %v2028
      %2045 = vst [vmem:[#allocation2 + $0x10] sm:$0xff] %v2029
      %2046 = vst [vmem:[#allocation2 + $0x18] sm:$0xff] %v2030
      %2047 = vst [vmem:[#allocation2 + $0x20] sm:$0xff] %v2031
      %2048 = vst [vmem:[#allocation2 + $0x28] sm:$0xff] %v2032
      %2049 = vst [vmem:[#allocation2 + $0x30] sm:$0xff] %v2033
      %2050 = vst [vmem:[#allocation2 + $0x38] sm:$0xff] %v2034
      %2051 = vrot.lane.b32.xlu0 %v1990, 110
      %v2052 = vpop.permute.xlu0 %2051
      %2053 = vrot.lane.b32.xlu0 %v1991, 110
      %v2054 = vpop.permute.xlu0 %2053
      %2055 = vrot.lane.b32.xlu0 %v1992, 110
      %v2056 = vpop.permute.xlu0 %2055
      %2057 = vrot.lane.b32.xlu0 %v1993, 110
      %v2058 = vpop.permute.xlu0 %2057
      %2059 = vrot.lane.b32.xlu0 %v1994, 110
      %v2060 = vpop.permute.xlu0 %2059
      %2061 = vrot.lane.b32.xlu0 %v1995, 110
      %v2062 = vpop.permute.xlu0 %2061
      %2063 = vrot.lane.b32.xlu0 %v1996, 110
      %v2064 = vpop.permute.xlu0 %2063
      %2065 = vrot.lane.b32.xlu0 %v1997, 110
      %v2066 = vpop.permute.xlu0 %2065
      %2067 = vrot.lane.b32.xlu0 %v1998, 110
      %v2068 = vpop.permute.xlu0 %2067
      %v2069 = vsel %vm334, %v2052, %v2054
      %v2070 = vsel %vm334, %v2054, %v2056
      %v2071 = vsel %vm334, %v2056, %v2058
      %v2072 = vsel %vm334, %v2058, %v2060
      %v2073 = vsel %vm334, %v2060, %v2062
      %v2074 = vsel %vm334, %v2062, %v2064
      %v2075 = vsel %vm334, %v2064, %v2066
      %v2076 = vsel %vm334, %v2066, %v2068
      %2085 = vst [vmem:[#allocation2 + $0x40] sm:$0xff] %v2069
      %2086 = vst [vmem:[#allocation2 + $0x48] sm:$0xff] %v2070
      %2087 = vst [vmem:[#allocation2 + $0x50] sm:$0xff] %v2071
      %2088 = vst [vmem:[#allocation2 + $0x58] sm:$0xff] %v2072
      %2089 = vst [vmem:[#allocation2 + $0x60] sm:$0xff] %v2073
      %2090 = vst [vmem:[#allocation2 + $0x68] sm:$0xff] %v2074
      %2091 = vst [vmem:[#allocation2 + $0x70] sm:$0xff] %v2075
      %2092 = vst [vmem:[#allocation2 + $0x78] sm:$0xff] %v2076
      %2093 = vrot.lane.b32.xlu0 %v1990, 109
      %v2094 = vpop.permute.xlu0 %2093
      %2095 = vrot.lane.b32.xlu0 %v1991, 109
      %v2096 = vpop.permute.xlu0 %2095
      %2097 = vrot.lane.b32.xlu0 %v1992, 109
      %v2098 = vpop.permute.xlu0 %2097
      %2099 = vrot.lane.b32.xlu0 %v1993, 109
      %v2100 = vpop.permute.xlu0 %2099
      %2101 = vrot.lane.b32.xlu0 %v1994, 109
      %v2102 = vpop.permute.xlu0 %2101
      %2103 = vrot.lane.b32.xlu0 %v1995, 109
      %v2104 = vpop.permute.xlu0 %2103
      %2105 = vrot.lane.b32.xlu0 %v1996, 109
      %v2106 = vpop.permute.xlu0 %2105
      %2107 = vrot.lane.b32.xlu0 %v1997, 109
      %v2108 = vpop.permute.xlu0 %2107
      %2109 = vrot.lane.b32.xlu0 %v1998, 109
      %v2110 = vpop.permute.xlu0 %2109
      %v2111 = vsel %vm377, %v2094, %v2096
      %v2112 = vsel %vm377, %v2096, %v2098
      %v2113 = vsel %vm377, %v2098, %v2100
      %v2114 = vsel %vm377, %v2100, %v2102
      %v2115 = vsel %vm377, %v2102, %v2104
      %v2116 = vsel %vm377, %v2104, %v2106
      %v2117 = vsel %vm377, %v2106, %v2108
      %v2118 = vsel %vm377, %v2108, %v2110
      %2127 = vst [vmem:[#allocation2 + $0x80] sm:$0xff] %v2111
      %2128 = vst [vmem:[#allocation2 + $0x88] sm:$0xff] %v2112
      %2129 = vst [vmem:[#allocation2 + $0x90] sm:$0xff] %v2113
      %2130 = vst [vmem:[#allocation2 + $0x98] sm:$0xff] %v2114
      %2131 = vst [vmem:[#allocation2 + $0xa0] sm:$0xff] %v2115
      %2132 = vst [vmem:[#allocation2 + $0xa8] sm:$0xff] %v2116
      %2133 = vst [vmem:[#allocation2 + $0xb0] sm:$0xff] %v2117
      %2134 = vst [vmem:[#allocation2 + $0xb8] sm:$0xff] %v2118
      %2135 = vrot.lane.b32.xlu0 %v1990, 101
      %v2136 = vpop.permute.xlu0 %2135
      %2137 = vrot.lane.b32.xlu0 %v1991, 101
      %v2138 = vpop.permute.xlu0 %2137
      %2139 = vrot.lane.b32.xlu0 %v1992, 101
      %v2140 = vpop.permute.xlu0 %2139
      %2141 = vrot.lane.b32.xlu0 %v1993, 101
      %v2142 = vpop.permute.xlu0 %2141
      %2143 = vrot.lane.b32.xlu0 %v1994, 101
      %v2144 = vpop.permute.xlu0 %2143
      %2145 = vrot.lane.b32.xlu0 %v1995, 101
      %v2146 = vpop.permute.xlu0 %2145
      %2147 = vrot.lane.b32.xlu0 %v1996, 101
      %v2148 = vpop.permute.xlu0 %2147
      %2149 = vrot.lane.b32.xlu0 %v1997, 101
      %v2150 = vpop.permute.xlu0 %2149
      %2151 = vrot.lane.b32.xlu0 %v1998, 101
      %v2152 = vpop.permute.xlu0 %2151
      %v2153 = vsel %vm420, %v2136, %v2138
      %v2154 = vsel %vm420, %v2138, %v2140
      %v2155 = vsel %vm420, %v2140, %v2142
      %v2156 = vsel %vm420, %v2142, %v2144
      %v2157 = vsel %vm420, %v2144, %v2146
      %v2158 = vsel %vm420, %v2146, %v2148
      %v2159 = vsel %vm420, %v2148, %v2150
      %v2160 = vsel %vm420, %v2150, %v2152
      %2169 = vst [vmem:[#allocation2 + $0xc0] sm:$0xff] %v2153
      %2170 = vst [vmem:[#allocation2 + $0xc8] sm:$0xff] %v2154
      %2171 = vst [vmem:[#allocation2 + $0xd0] sm:$0xff] %v2155
      %2172 = vst [vmem:[#allocation2 + $0xd8] sm:$0xff] %v2156
      %2173 = vst [vmem:[#allocation2 + $0xe0] sm:$0xff] %v2157
      %2174 = vst [vmem:[#allocation2 + $0xe8] sm:$0xff] %v2158
      %2175 = vst [vmem:[#allocation2 + $0xf0] sm:$0xff] %v2159
      %2176 = vst [vmem:[#allocation2 + $0xf8] sm:$0xff] %v2160
      %2177 = vrot.lane.b32.xlu0 %v1990, 100
      %v2178 = vpop.permute.xlu0 %2177
      %2179 = vrot.lane.b32.xlu0 %v1991, 100
      %v2180 = vpop.permute.xlu0 %2179
      %2181 = vrot.lane.b32.xlu0 %v1992, 100
      %v2182 = vpop.permute.xlu0 %2181
      %2183 = vrot.lane.b32.xlu0 %v1993, 100
      %v2184 = vpop.permute.xlu0 %2183
      %2185 = vrot.lane.b32.xlu0 %v1994, 100
      %v2186 = vpop.permute.xlu0 %2185
      %2187 = vrot.lane.b32.xlu0 %v1995, 100
      %v2188 = vpop.permute.xlu0 %2187
      %2189 = vrot.lane.b32.xlu0 %v1996, 100
      %v2190 = vpop.permute.xlu0 %2189
      %2191 = vrot.lane.b32.xlu0 %v1997, 100
      %v2192 = vpop.permute.xlu0 %2191
      %2193 = vrot.lane.b32.xlu0 %v1998, 100
      %v2194 = vpop.permute.xlu0 %2193
      %v2195 = vsel %vm463, %v2178, %v2180
      %v2196 = vsel %vm463, %v2180, %v2182
      %v2197 = vsel %vm463, %v2182, %v2184
      %v2198 = vsel %vm463, %v2184, %v2186
      %v2199 = vsel %vm463, %v2186, %v2188
      %v2200 = vsel %vm463, %v2188, %v2190
      %v2201 = vsel %vm463, %v2190, %v2192
      %v2202 = vsel %vm463, %v2192, %v2194
      %2211 = vst [vmem:[#allocation2 + $0x100] sm:$0xff] %v2195
      %2212 = vst [vmem:[#allocation2 + $0x108] sm:$0xff] %v2196
      %2213 = vst [vmem:[#allocation2 + $0x110] sm:$0xff] %v2197
      %2214 = vst [vmem:[#allocation2 + $0x118] sm:$0xff] %v2198
      %2215 = vst [vmem:[#allocation2 + $0x120] sm:$0xff] %v2199
      %2216 = vst [vmem:[#allocation2 + $0x128] sm:$0xff] %v2200
      %2217 = vst [vmem:[#allocation2 + $0x130] sm:$0xff] %v2201
      %2218 = vst [vmem:[#allocation2 + $0x138] sm:$0xff] %v2202
      %2219 = vrot.lane.b32.xlu0 %v1990, 99
      %v2220 = vpop.permute.xlu0 %2219
      %2221 = vrot.lane.b32.xlu0 %v1991, 99
      %v2222 = vpop.permute.xlu0 %2221
      %2223 = vrot.lane.b32.xlu0 %v1992, 99
      %v2224 = vpop.permute.xlu0 %2223
      %2225 = vrot.lane.b32.xlu0 %v1993, 99
      %v2226 = vpop.permute.xlu0 %2225
      %2227 = vrot.lane.b32.xlu0 %v1994, 99
      %v2228 = vpop.permute.xlu0 %2227
      %2229 = vrot.lane.b32.xlu0 %v1995, 99
      %v2230 = vpop.permute.xlu0 %2229
      %2231 = vrot.lane.b32.xlu0 %v1996, 99
      %v2232 = vpop.permute.xlu0 %2231
      %2233 = vrot.lane.b32.xlu0 %v1997, 99
      %v2234 = vpop.permute.xlu0 %2233
      %2235 = vrot.lane.b32.xlu0 %v1998, 99
      %v2236 = vpop.permute.xlu0 %2235
      %v2237 = vsel %vm506, %v2220, %v2222
      %v2238 = vsel %vm506, %v2222, %v2224
      %v2239 = vsel %vm506, %v2224, %v2226
      %v2240 = vsel %vm506, %v2226, %v2228
      %v2241 = vsel %vm506, %v2228, %v2230
      %v2242 = vsel %vm506, %v2230, %v2232
      %v2243 = vsel %vm506, %v2232, %v2234
      %v2244 = vsel %vm506, %v2234, %v2236
      %2253 = vst [vmem:[#allocation2 + $0x140] sm:$0xff] %v2237
      %2254 = vst [vmem:[#allocation2 + $0x148] sm:$0xff] %v2238
      %2255 = vst [vmem:[#allocation2 + $0x150] sm:$0xff] %v2239
      %2256 = vst [vmem:[#allocation2 + $0x158] sm:$0xff] %v2240
      %2257 = vst [vmem:[#allocation2 + $0x160] sm:$0xff] %v2241
      %2258 = vst [vmem:[#allocation2 + $0x168] sm:$0xff] %v2242
      %2259 = vst [vmem:[#allocation2 + $0x170] sm:$0xff] %v2243
      %2260 = vst [vmem:[#allocation2 + $0x178] sm:$0xff] %v2244
      %2261 = vrot.lane.b32.xlu0 %v1990, 91
      %v2262 = vpop.permute.xlu0 %2261
      %2263 = vrot.lane.b32.xlu0 %v1991, 91
      %v2264 = vpop.permute.xlu0 %2263
      %2265 = vrot.lane.b32.xlu0 %v1992, 91
      %v2266 = vpop.permute.xlu0 %2265
      %2267 = vrot.lane.b32.xlu0 %v1993, 91
      %v2268 = vpop.permute.xlu0 %2267
      %2269 = vrot.lane.b32.xlu0 %v1994, 91
      %v2270 = vpop.permute.xlu0 %2269
      %2271 = vrot.lane.b32.xlu0 %v1995, 91
      %v2272 = vpop.permute.xlu0 %2271
      %2273 = vrot.lane.b32.xlu0 %v1996, 91
      %v2274 = vpop.permute.xlu0 %2273
      %2275 = vrot.lane.b32.xlu0 %v1997, 91
      %v2276 = vpop.permute.xlu0 %2275
      %2277 = vrot.lane.b32.xlu0 %v1998, 91
      %v2278 = vpop.permute.xlu0 %2277
      %v2279 = vsel %vm549, %v2262, %v2264
      %v2280 = vsel %vm549, %v2264, %v2266
      %v2281 = vsel %vm549, %v2266, %v2268
      %v2282 = vsel %vm549, %v2268, %v2270
      %v2283 = vsel %vm549, %v2270, %v2272
      %v2284 = vsel %vm549, %v2272, %v2274
      %v2285 = vsel %vm549, %v2274, %v2276
      %v2286 = vsel %vm549, %v2276, %v2278
      %2295 = vst [vmem:[#allocation2 + $0x180] sm:$0xff] %v2279
      %2296 = vst [vmem:[#allocation2 + $0x188] sm:$0xff] %v2280
      %2297 = vst [vmem:[#allocation2 + $0x190] sm:$0xff] %v2281
      %2298 = vst [vmem:[#allocation2 + $0x198] sm:$0xff] %v2282
      %2299 = vst [vmem:[#allocation2 + $0x1a0] sm:$0xff] %v2283
      %2300 = vst [vmem:[#allocation2 + $0x1a8] sm:$0xff] %v2284
      %2301 = vst [vmem:[#allocation2 + $0x1b0] sm:$0xff] %v2285
      %2302 = vst [vmem:[#allocation2 + $0x1b8] sm:$0xff] %v2286
      %2303 = vrot.lane.b32.xlu0 %v1990, 90
      %v2304 = vpop.permute.xlu0 %2303
      %2305 = vrot.lane.b32.xlu0 %v1991, 90
      %v2306 = vpop.permute.xlu0 %2305
      %2307 = vrot.lane.b32.xlu0 %v1992, 90
      %v2308 = vpop.permute.xlu0 %2307
      %2309 = vrot.lane.b32.xlu0 %v1993, 90
      %v2310 = vpop.permute.xlu0 %2309
      %2311 = vrot.lane.b32.xlu0 %v1994, 90
      %v2312 = vpop.permute.xlu0 %2311
      %2313 = vrot.lane.b32.xlu0 %v1995, 90
      %v2314 = vpop.permute.xlu0 %2313
      %2315 = vrot.lane.b32.xlu0 %v1996, 90
      %v2316 = vpop.permute.xlu0 %2315
      %2317 = vrot.lane.b32.xlu0 %v1997, 90
      %v2318 = vpop.permute.xlu0 %2317
      %2319 = vrot.lane.b32.xlu0 %v1998, 90
      %v2320 = vpop.permute.xlu0 %2319
      %v2321 = vsel %vm592, %v2304, %v2306
      %v2322 = vsel %vm592, %v2306, %v2308
      %v2323 = vsel %vm592, %v2308, %v2310
      %v2324 = vsel %vm592, %v2310, %v2312
      %v2325 = vsel %vm592, %v2312, %v2314
      %v2326 = vsel %vm592, %v2314, %v2316
      %v2327 = vsel %vm592, %v2316, %v2318
      %v2328 = vsel %vm592, %v2318, %v2320
      %2337 = vst [vmem:[#allocation2 + $0x1c0] sm:$0xff] %v2321
      %2338 = vst [vmem:[#allocation2 + $0x1c8] sm:$0xff] %v2322
      %2339 = vst [vmem:[#allocation2 + $0x1d0] sm:$0xff] %v2323
      %2340 = vst [vmem:[#allocation2 + $0x1d8] sm:$0xff] %v2324
      %2341 = vst [vmem:[#allocation2 + $0x1e0] sm:$0xff] %v2325
      %2342 = vst [vmem:[#allocation2 + $0x1e8] sm:$0xff] %v2326
      %2343 = vst [vmem:[#allocation2 + $0x1f0] sm:$0xff] %v2327
      %2344 = vst [vmem:[#allocation2 + $0x1f8] sm:$0xff] %v2328
      %2345 = vrot.lane.b32.xlu0 %v1990, 89
      %v2346 = vpop.permute.xlu0 %2345
      %2347 = vrot.lane.b32.xlu0 %v1991, 89
      %v2348 = vpop.permute.xlu0 %2347
      %2349 = vrot.lane.b32.xlu0 %v1992, 89
      %v2350 = vpop.permute.xlu0 %2349
      %2351 = vrot.lane.b32.xlu0 %v1993, 89
      %v2352 = vpop.permute.xlu0 %2351
      %2353 = vrot.lane.b32.xlu0 %v1994, 89
      %v2354 = vpop.permute.xlu0 %2353
      %2355 = vrot.lane.b32.xlu0 %v1995, 89
      %v2356 = vpop.permute.xlu0 %2355
      %2357 = vrot.lane.b32.xlu0 %v1996, 89
      %v2358 = vpop.permute.xlu0 %2357
      %2359 = vrot.lane.b32.xlu0 %v1997, 89
      %v2360 = vpop.permute.xlu0 %2359
      %2361 = vrot.lane.b32.xlu0 %v1998, 89
      %v2362 = vpop.permute.xlu0 %2361
      %v2363 = vsel %vm635, %v2346, %v2348
      %v2364 = vsel %vm635, %v2348, %v2350
      %v2365 = vsel %vm635, %v2350, %v2352
      %v2366 = vsel %vm635, %v2352, %v2354
      %v2367 = vsel %vm635, %v2354, %v2356
      %v2368 = vsel %vm635, %v2356, %v2358
      %v2369 = vsel %vm635, %v2358, %v2360
      %v2370 = vsel %vm635, %v2360, %v2362
      %2379 = vst [vmem:[#allocation2 + $0x200] sm:$0xff] %v2363
      %2380 = vst [vmem:[#allocation2 + $0x208] sm:$0xff] %v2364
      %2381 = vst [vmem:[#allocation2 + $0x210] sm:$0xff] %v2365
      %2382 = vst [vmem:[#allocation2 + $0x218] sm:$0xff] %v2366
      %2383 = vst [vmem:[#allocation2 + $0x220] sm:$0xff] %v2367
      %2384 = vst [vmem:[#allocation2 + $0x228] sm:$0xff] %v2368
      %2385 = vst [vmem:[#allocation2 + $0x230] sm:$0xff] %v2369
      %2386 = vst [vmem:[#allocation2 + $0x238] sm:$0xff] %v2370
      %2387 = vrot.lane.b32.xlu0 %v1990, 11
      %v2388 = vpop.permute.xlu0 %2387
      %2389 = vrot.lane.b32.xlu0 %v1991, 11
      %v2390 = vpop.permute.xlu0 %2389
      %2391 = vrot.lane.b32.xlu0 %v1992, 11
      %v2392 = vpop.permute.xlu0 %2391
      %2393 = vrot.lane.b32.xlu0 %v1993, 11
      %v2394 = vpop.permute.xlu0 %2393
      %2395 = vrot.lane.b32.xlu0 %v1994, 11
      %v2396 = vpop.permute.xlu0 %2395
      %2397 = vrot.lane.b32.xlu0 %v1995, 11
      %v2398 = vpop.permute.xlu0 %2397
      %2399 = vrot.lane.b32.xlu0 %v1996, 11
      %v2400 = vpop.permute.xlu0 %2399
      %2401 = vrot.lane.b32.xlu0 %v1997, 11
      %v2402 = vpop.permute.xlu0 %2401
      %2403 = vrot.lane.b32.xlu0 %v1998, 11
      %v2404 = vpop.permute.xlu0 %2403
      %v2405 = vsel %vm678, %v2388, %v2390
      %v2406 = vsel %vm678, %v2390, %v2392
      %v2407 = vsel %vm678, %v2392, %v2394
      %v2408 = vsel %vm678, %v2394, %v2396
      %v2409 = vsel %vm678, %v2396, %v2398
      %v2410 = vsel %vm678, %v2398, %v2400
      %v2411 = vsel %vm678, %v2400, %v2402
      %v2412 = vsel %vm678, %v2402, %v2404
      %2421 = vst [vmem:[#allocation2 + $0x240] sm:$0xff] %v2405
      %2422 = vst [vmem:[#allocation2 + $0x248] sm:$0xff] %v2406
      %2423 = vst [vmem:[#allocation2 + $0x250] sm:$0xff] %v2407
      %2424 = vst [vmem:[#allocation2 + $0x258] sm:$0xff] %v2408
      %2425 = vst [vmem:[#allocation2 + $0x260] sm:$0xff] %v2409
      %2426 = vst [vmem:[#allocation2 + $0x268] sm:$0xff] %v2410
      %2427 = vst [vmem:[#allocation2 + $0x270] sm:$0xff] %v2411
      %2428 = vst [vmem:[#allocation2 + $0x278] sm:$0xff] %v2412
      %2429 = vrot.lane.b32.xlu0 %v1990, 10
      %v2430 = vpop.permute.xlu0 %2429
      %2431 = vrot.lane.b32.xlu0 %v1991, 10
      %v2432 = vpop.permute.xlu0 %2431
      %2433 = vrot.lane.b32.xlu0 %v1992, 10
      %v2434 = vpop.permute.xlu0 %2433
      %2435 = vrot.lane.b32.xlu0 %v1993, 10
      %v2436 = vpop.permute.xlu0 %2435
      %2437 = vrot.lane.b32.xlu0 %v1994, 10
      %v2438 = vpop.permute.xlu0 %2437
      %2439 = vrot.lane.b32.xlu0 %v1995, 10
      %v2440 = vpop.permute.xlu0 %2439
      %2441 = vrot.lane.b32.xlu0 %v1996, 10
      %v2442 = vpop.permute.xlu0 %2441
      %2443 = vrot.lane.b32.xlu0 %v1997, 10
      %v2444 = vpop.permute.xlu0 %2443
      %2445 = vrot.lane.b32.xlu0 %v1998, 10
      %v2446 = vpop.permute.xlu0 %2445
      %v2447 = vsel %vm721, %v2430, %v2432
      %v2448 = vsel %vm721, %v2432, %v2434
      %v2449 = vsel %vm721, %v2434, %v2436
      %v2450 = vsel %vm721, %v2436, %v2438
      %v2451 = vsel %vm721, %v2438, %v2440
      %v2452 = vsel %vm721, %v2440, %v2442
      %v2453 = vsel %vm721, %v2442, %v2444
      %v2454 = vsel %vm721, %v2444, %v2446
      %2463 = vst [vmem:[#allocation2 + $0x280] sm:$0xff] %v2447
      %2464 = vst [vmem:[#allocation2 + $0x288] sm:$0xff] %v2448
      %2465 = vst [vmem:[#allocation2 + $0x290] sm:$0xff] %v2449
      %2466 = vst [vmem:[#allocation2 + $0x298] sm:$0xff] %v2450
      %2467 = vst [vmem:[#allocation2 + $0x2a0] sm:$0xff] %v2451
      %2468 = vst [vmem:[#allocation2 + $0x2a8] sm:$0xff] %v2452
      %2469 = vst [vmem:[#allocation2 + $0x2b0] sm:$0xff] %v2453
      %2470 = vst [vmem:[#allocation2 + $0x2b8] sm:$0xff] %v2454
      %2471 = vrot.lane.b32.xlu0 %v1990, 9
      %v2472 = vpop.permute.xlu0 %2471
      %2473 = vrot.lane.b32.xlu0 %v1991, 9
      %v2474 = vpop.permute.xlu0 %2473
      %2475 = vrot.lane.b32.xlu0 %v1992, 9
      %v2476 = vpop.permute.xlu0 %2475
      %2477 = vrot.lane.b32.xlu0 %v1993, 9
      %v2478 = vpop.permute.xlu0 %2477
      %2479 = vrot.lane.b32.xlu0 %v1994, 9
      %v2480 = vpop.permute.xlu0 %2479
      %2481 = vrot.lane.b32.xlu0 %v1995, 9
      %v2482 = vpop.permute.xlu0 %2481
      %2483 = vrot.lane.b32.xlu0 %v1996, 9
      %v2484 = vpop.permute.xlu0 %2483
      %2485 = vrot.lane.b32.xlu0 %v1997, 9
      %v2486 = vpop.permute.xlu0 %2485
      %2487 = vrot.lane.b32.xlu0 %v1998, 9
      %v2488 = vpop.permute.xlu0 %2487
      %v2489 = vsel %vm764, %v2472, %v2474
      %v2490 = vsel %vm764, %v2474, %v2476
      %v2491 = vsel %vm764, %v2476, %v2478
      %v2492 = vsel %vm764, %v2478, %v2480
      %v2493 = vsel %vm764, %v2480, %v2482
      %v2494 = vsel %vm764, %v2482, %v2484
      %v2495 = vsel %vm764, %v2484, %v2486
      %v2496 = vsel %vm764, %v2486, %v2488
      %2505 = vst [vmem:[#allocation2 + $0x2c0] sm:$0xff] %v2489
      %2506 = vst [vmem:[#allocation2 + $0x2c8] sm:$0xff] %v2490
      %2507 = vst [vmem:[#allocation2 + $0x2d0] sm:$0xff] %v2491
      %2508 = vst [vmem:[#allocation2 + $0x2d8] sm:$0xff] %v2492
      %2509 = vst [vmem:[#allocation2 + $0x2e0] sm:$0xff] %v2493
      %2510 = vst [vmem:[#allocation2 + $0x2e8] sm:$0xff] %v2494
      %2511 = vst [vmem:[#allocation2 + $0x2f0] sm:$0xff] %v2495
      %2512 = vst [vmem:[#allocation2 + $0x2f8] sm:$0xff] %v2496
      %2513 = vrot.lane.b32.xlu0 %v1990, 1
      %v2514 = vpop.permute.xlu0 %2513
      %2515 = vrot.lane.b32.xlu0 %v1991, 1
      %v2516 = vpop.permute.xlu0 %2515
      %2517 = vrot.lane.b32.xlu0 %v1992, 1
      %v2518 = vpop.permute.xlu0 %2517
      %2519 = vrot.lane.b32.xlu0 %v1993, 1
      %v2520 = vpop.permute.xlu0 %2519
      %2521 = vrot.lane.b32.xlu0 %v1994, 1
      %v2522 = vpop.permute.xlu0 %2521
      %2523 = vrot.lane.b32.xlu0 %v1995, 1
      %v2524 = vpop.permute.xlu0 %2523
      %2525 = vrot.lane.b32.xlu0 %v1996, 1
      %v2526 = vpop.permute.xlu0 %2525
      %2527 = vrot.lane.b32.xlu0 %v1997, 1
      %v2528 = vpop.permute.xlu0 %2527
      %2529 = vrot.lane.b32.xlu0 %v1998, 1
      %v2530 = vpop.permute.xlu0 %2529
      %v2531 = vsel %vm807, %v2514, %v2516
      %v2532 = vsel %vm807, %v2516, %v2518
      %v2533 = vsel %vm807, %v2518, %v2520
      %v2534 = vsel %vm807, %v2520, %v2522
      %v2535 = vsel %vm807, %v2522, %v2524
      %v2536 = vsel %vm807, %v2524, %v2526
      %v2537 = vsel %vm807, %v2526, %v2528
      %v2538 = vsel %vm807, %v2528, %v2530
      %2547 = vst [vmem:[#allocation2 + $0x300] sm:$0xff] %v2531
      %2548 = vst [vmem:[#allocation2 + $0x308] sm:$0xff] %v2532
      %2549 = vst [vmem:[#allocation2 + $0x310] sm:$0xff] %v2533
      %2550 = vst [vmem:[#allocation2 + $0x318] sm:$0xff] %v2534
      %2551 = vst [vmem:[#allocation2 + $0x320] sm:$0xff] %v2535
      %2552 = vst [vmem:[#allocation2 + $0x328] sm:$0xff] %v2536
      %2553 = vst [vmem:[#allocation2 + $0x330] sm:$0xff] %v2537
      %2554 = vst [vmem:[#allocation2 + $0x338] sm:$0xff] %v2538
      %2555 = vst [vmem:[#allocation2 + $0x340] sm:$0xff] %v1991
      %2556 = vst [vmem:[#allocation2 + $0x348] sm:$0xff] %v1992
      %2557 = vst [vmem:[#allocation2 + $0x350] sm:$0xff] %v1993
      %2558 = vst [vmem:[#allocation2 + $0x358] sm:$0xff] %v1994
      %2559 = vst [vmem:[#allocation2 + $0x360] sm:$0xff] %v1995
      %2560 = vst [vmem:[#allocation2 + $0x368] sm:$0xff] %v1996
      %2561 = vst [vmem:[#allocation2 + $0x370] sm:$0xff] %v1997
      %2562 = vst [vmem:[#allocation2 + $0x378] sm:$0xff] %v1998
      %2564 = vrot.lane.b32.xlu0 %v1991, 127
      %v2565 = vpop.permute.xlu0 %2564
      %2566 = vrot.lane.b32.xlu0 %v1992, 127
      %v2567 = vpop.permute.xlu0 %2566
      %2568 = vrot.lane.b32.xlu0 %v1993, 127
      %v2569 = vpop.permute.xlu0 %2568
      %2570 = vrot.lane.b32.xlu0 %v1994, 127
      %v2571 = vpop.permute.xlu0 %2570
      %2572 = vrot.lane.b32.xlu0 %v1995, 127
      %v2573 = vpop.permute.xlu0 %2572
      %2574 = vrot.lane.b32.xlu0 %v1996, 127
      %v2575 = vpop.permute.xlu0 %2574
      %2576 = vrot.lane.b32.xlu0 %v1997, 127
      %v2577 = vpop.permute.xlu0 %2576
      %2578 = vrot.lane.b32.xlu0 %v1998, 127
      %v2579 = vpop.permute.xlu0 %2578
      %2580 = vrot.lane.b32.xlu0 %v1999, 127
      %v2581 = vpop.permute.xlu0 %2580
      %v2582 = vsel %vm859, %v2565, %v2567
      %v2583 = vsel %vm859, %v2567, %v2569
      %v2584 = vsel %vm859, %v2569, %v2571
      %v2585 = vsel %vm859, %v2571, %v2573
      %v2586 = vsel %vm859, %v2573, %v2575
      %v2587 = vsel %vm859, %v2575, %v2577
      %v2588 = vsel %vm859, %v2577, %v2579
      %v2589 = vsel %vm859, %v2579, %v2581
      %2598 = vst [vmem:[#allocation2 + $0x380] sm:$0xff] %v2582
      %2599 = vst [vmem:[#allocation2 + $0x388] sm:$0xff] %v2583
      %2600 = vst [vmem:[#allocation2 + $0x390] sm:$0xff] %v2584
      %2601 = vst [vmem:[#allocation2 + $0x398] sm:$0xff] %v2585
      %2602 = vst [vmem:[#allocation2 + $0x3a0] sm:$0xff] %v2586
      %2603 = vst [vmem:[#allocation2 + $0x3a8] sm:$0xff] %v2587
      %2604 = vst [vmem:[#allocation2 + $0x3b0] sm:$0xff] %v2588
      %2605 = vst [vmem:[#allocation2 + $0x3b8] sm:$0xff] %v2589
      %2606 = vrot.lane.b32.xlu0 %v1991, 119
      %v2607 = vpop.permute.xlu0 %2606
      %2608 = vrot.lane.b32.xlu0 %v1992, 119
      %v2609 = vpop.permute.xlu0 %2608
      %2610 = vrot.lane.b32.xlu0 %v1993, 119
      %v2611 = vpop.permute.xlu0 %2610
      %2612 = vrot.lane.b32.xlu0 %v1994, 119
      %v2613 = vpop.permute.xlu0 %2612
      %2614 = vrot.lane.b32.xlu0 %v1995, 119
      %v2615 = vpop.permute.xlu0 %2614
      %2616 = vrot.lane.b32.xlu0 %v1996, 119
      %v2617 = vpop.permute.xlu0 %2616
      %2618 = vrot.lane.b32.xlu0 %v1997, 119
      %v2619 = vpop.permute.xlu0 %2618
      %2620 = vrot.lane.b32.xlu0 %v1998, 119
      %v2621 = vpop.permute.xlu0 %2620
      %2622 = vrot.lane.b32.xlu0 %v1999, 119
      %v2623 = vpop.permute.xlu0 %2622
      %v2624 = vsel %vm902, %v2607, %v2609
      %v2625 = vsel %vm902, %v2609, %v2611
      %v2626 = vsel %vm902, %v2611, %v2613
      %v2627 = vsel %vm902, %v2613, %v2615
      %v2628 = vsel %vm902, %v2615, %v2617
      %v2629 = vsel %vm902, %v2617, %v2619
      %v2630 = vsel %vm902, %v2619, %v2621
      %v2631 = vsel %vm902, %v2621, %v2623
      %2640 = vst [vmem:[#allocation2 + $0x3c0] sm:$0xff] %v2624
      %2641 = vst [vmem:[#allocation2 + $0x3c8] sm:$0xff] %v2625
      %2642 = vst [vmem:[#allocation2 + $0x3d0] sm:$0xff] %v2626
      %2643 = vst [vmem:[#allocation2 + $0x3d8] sm:$0xff] %v2627
      %2644 = vst [vmem:[#allocation2 + $0x3e0] sm:$0xff] %v2628
      %2645 = vst [vmem:[#allocation2 + $0x3e8] sm:$0xff] %v2629
      %2646 = vst [vmem:[#allocation2 + $0x3f0] sm:$0xff] %v2630
      %2647 = vst [vmem:[#allocation2 + $0x3f8] sm:$0xff] %v2631
      %2648 = vrot.lane.b32.xlu0 %v1991, 118
      %v2649 = vpop.permute.xlu0 %2648
      %2650 = vrot.lane.b32.xlu0 %v1992, 118
      %v2651 = vpop.permute.xlu0 %2650
      %2652 = vrot.lane.b32.xlu0 %v1993, 118
      %v2653 = vpop.permute.xlu0 %2652
      %2654 = vrot.lane.b32.xlu0 %v1994, 118
      %v2655 = vpop.permute.xlu0 %2654
      %2656 = vrot.lane.b32.xlu0 %v1995, 118
      %v2657 = vpop.permute.xlu0 %2656
      %2658 = vrot.lane.b32.xlu0 %v1996, 118
      %v2659 = vpop.permute.xlu0 %2658
      %2660 = vrot.lane.b32.xlu0 %v1997, 118
      %v2661 = vpop.permute.xlu0 %2660
      %2662 = vrot.lane.b32.xlu0 %v1998, 118
      %v2663 = vpop.permute.xlu0 %2662
      %2664 = vrot.lane.b32.xlu0 %v1999, 118
      %v2665 = vpop.permute.xlu0 %2664
      %v2666 = vsel %vm945, %v2649, %v2651
      %v2667 = vsel %vm945, %v2651, %v2653
      %v2668 = vsel %vm945, %v2653, %v2655
      %v2669 = vsel %vm945, %v2655, %v2657
      %v2670 = vsel %vm945, %v2657, %v2659
      %v2671 = vsel %vm945, %v2659, %v2661
      %v2672 = vsel %vm945, %v2661, %v2663
      %v2673 = vsel %vm945, %v2663, %v2665
      %2682 = vst [vmem:[#allocation2 + $0x400] sm:$0xff] %v2666
      %2683 = vst [vmem:[#allocation2 + $0x408] sm:$0xff] %v2667
      %2684 = vst [vmem:[#allocation2 + $0x410] sm:$0xff] %v2668
      %2685 = vst [vmem:[#allocation2 + $0x418] sm:$0xff] %v2669
      %2686 = vst [vmem:[#allocation2 + $0x420] sm:$0xff] %v2670
      %2687 = vst [vmem:[#allocation2 + $0x428] sm:$0xff] %v2671
      %2688 = vst [vmem:[#allocation2 + $0x430] sm:$0xff] %v2672
      %2689 = vst [vmem:[#allocation2 + $0x438] sm:$0xff] %v2673
      %2690 = vrot.lane.b32.xlu0 %v1991, 117
      %v2691 = vpop.permute.xlu0 %2690
      %2692 = vrot.lane.b32.xlu0 %v1992, 117
      %v2693 = vpop.permute.xlu0 %2692
      %2694 = vrot.lane.b32.xlu0 %v1993, 117
      %v2695 = vpop.permute.xlu0 %2694
      %2696 = vrot.lane.b32.xlu0 %v1994, 117
      %v2697 = vpop.permute.xlu0 %2696
      %2698 = vrot.lane.b32.xlu0 %v1995, 117
      %v2699 = vpop.permute.xlu0 %2698
      %2700 = vrot.lane.b32.xlu0 %v1996, 117
      %v2701 = vpop.permute.xlu0 %2700
      %2702 = vrot.lane.b32.xlu0 %v1997, 117
      %v2703 = vpop.permute.xlu0 %2702
      %2704 = vrot.lane.b32.xlu0 %v1998, 117
      %v2705 = vpop.permute.xlu0 %2704
      %2706 = vrot.lane.b32.xlu0 %v1999, 117
      %v2707 = vpop.permute.xlu0 %2706
      %v2708 = vsel %vm988, %v2691, %v2693
      %v2709 = vsel %vm988, %v2693, %v2695
      %v2710 = vsel %vm988, %v2695, %v2697
      %v2711 = vsel %vm988, %v2697, %v2699
      %v2712 = vsel %vm988, %v2699, %v2701
      %v2713 = vsel %vm988, %v2701, %v2703
      %v2714 = vsel %vm988, %v2703, %v2705
      %v2715 = vsel %vm988, %v2705, %v2707
      %2724 = vst [vmem:[#allocation2 + $0x440] sm:$0xff] %v2708
      %2725 = vst [vmem:[#allocation2 + $0x448] sm:$0xff] %v2709
      %2726 = vst [vmem:[#allocation2 + $0x450] sm:$0xff] %v2710
      %2727 = vst [vmem:[#allocation2 + $0x458] sm:$0xff] %v2711
      %2728 = vst [vmem:[#allocation2 + $0x460] sm:$0xff] %v2712
      %2729 = vst [vmem:[#allocation2 + $0x468] sm:$0xff] %v2713
      %2730 = vst [vmem:[#allocation2 + $0x470] sm:$0xff] %v2714
      %2731 = vst [vmem:[#allocation2 + $0x478] sm:$0xff] %v2715
      %2732 = vrot.lane.b32.xlu0 %v1991, 39
      %v2733 = vpop.permute.xlu0 %2732
      %2734 = vrot.lane.b32.xlu0 %v1992, 39
      %v2735 = vpop.permute.xlu0 %2734
      %2736 = vrot.lane.b32.xlu0 %v1993, 39
      %v2737 = vpop.permute.xlu0 %2736
      %2738 = vrot.lane.b32.xlu0 %v1994, 39
      %v2739 = vpop.permute.xlu0 %2738
      %2740 = vrot.lane.b32.xlu0 %v1995, 39
      %v2741 = vpop.permute.xlu0 %2740
      %2742 = vrot.lane.b32.xlu0 %v1996, 39
      %v2743 = vpop.permute.xlu0 %2742
      %2744 = vrot.lane.b32.xlu0 %v1997, 39
      %v2745 = vpop.permute.xlu0 %2744
      %2746 = vrot.lane.b32.xlu0 %v1998, 39
      %v2747 = vpop.permute.xlu0 %2746
      %2748 = vrot.lane.b32.xlu0 %v1999, 39
      %v2749 = vpop.permute.xlu0 %2748
      %v2750 = vsel %vm1031, %v2733, %v2735
      %v2751 = vsel %vm1031, %v2735, %v2737
      %v2752 = vsel %vm1031, %v2737, %v2739
      %v2753 = vsel %vm1031, %v2739, %v2741
      %v2754 = vsel %vm1031, %v2741, %v2743
      %v2755 = vsel %vm1031, %v2743, %v2745
      %v2756 = vsel %vm1031, %v2745, %v2747
      %v2757 = vsel %vm1031, %v2747, %v2749
      %2766 = vst [vmem:[#allocation2 + $0x480] sm:$0xff] %v2750
      %2767 = vst [vmem:[#allocation2 + $0x488] sm:$0xff] %v2751
      %2768 = vst [vmem:[#allocation2 + $0x490] sm:$0xff] %v2752
      %2769 = vst [vmem:[#allocation2 + $0x498] sm:$0xff] %v2753
      %2770 = vst [vmem:[#allocation2 + $0x4a0] sm:$0xff] %v2754
      %2771 = vst [vmem:[#allocation2 + $0x4a8] sm:$0xff] %v2755
      %2772 = vst [vmem:[#allocation2 + $0x4b0] sm:$0xff] %v2756
      %2773 = vst [vmem:[#allocation2 + $0x4b8] sm:$0xff] %v2757
      %2774 = vrot.lane.b32.xlu0 %v1991, 38
      %v2775 = vpop.permute.xlu0 %2774
      %2776 = vrot.lane.b32.xlu0 %v1992, 38
      %v2777 = vpop.permute.xlu0 %2776
      %2778 = vrot.lane.b32.xlu0 %v1993, 38
      %v2779 = vpop.permute.xlu0 %2778
      %2780 = vrot.lane.b32.xlu0 %v1994, 38
      %v2781 = vpop.permute.xlu0 %2780
      %2782 = vrot.lane.b32.xlu0 %v1995, 38
      %v2783 = vpop.permute.xlu0 %2782
      %2784 = vrot.lane.b32.xlu0 %v1996, 38
      %v2785 = vpop.permute.xlu0 %2784
      %2786 = vrot.lane.b32.xlu0 %v1997, 38
      %v2787 = vpop.permute.xlu0 %2786
      %2788 = vrot.lane.b32.xlu0 %v1998, 38
      %v2789 = vpop.permute.xlu0 %2788
      %2790 = vrot.lane.b32.xlu0 %v1999, 38
      %v2791 = vpop.permute.xlu0 %2790
      %v2792 = vsel %vm1074, %v2775, %v2777
      %v2793 = vsel %vm1074, %v2777, %v2779
      %v2794 = vsel %vm1074, %v2779, %v2781
      %v2795 = vsel %vm1074, %v2781, %v2783
      %v2796 = vsel %vm1074, %v2783, %v2785
      %v2797 = vsel %vm1074, %v2785, %v2787
      %v2798 = vsel %vm1074, %v2787, %v2789
      %v2799 = vsel %vm1074, %v2789, %v2791
      %2808 = vst [vmem:[#allocation2 + $0x4c0] sm:$0xff] %v2792
      %2809 = vst [vmem:[#allocation2 + $0x4c8] sm:$0xff] %v2793
      %2810 = vst [vmem:[#allocation2 + $0x4d0] sm:$0xff] %v2794
      %2811 = vst [vmem:[#allocation2 + $0x4d8] sm:$0xff] %v2795
      %2812 = vst [vmem:[#allocation2 + $0x4e0] sm:$0xff] %v2796
      %2813 = vst [vmem:[#allocation2 + $0x4e8] sm:$0xff] %v2797
      %2814 = vst [vmem:[#allocation2 + $0x4f0] sm:$0xff] %v2798
      %2815 = vst [vmem:[#allocation2 + $0x4f8] sm:$0xff] %v2799
      %2816 = vrot.lane.b32.xlu0 %v1991, 37
      %v2817 = vpop.permute.xlu0 %2816
      %2818 = vrot.lane.b32.xlu0 %v1992, 37
      %v2819 = vpop.permute.xlu0 %2818
      %2820 = vrot.lane.b32.xlu0 %v1993, 37
      %v2821 = vpop.permute.xlu0 %2820
      %2822 = vrot.lane.b32.xlu0 %v1994, 37
      %v2823 = vpop.permute.xlu0 %2822
      %2824 = vrot.lane.b32.xlu0 %v1995, 37
      %v2825 = vpop.permute.xlu0 %2824
      %2826 = vrot.lane.b32.xlu0 %v1996, 37
      %v2827 = vpop.permute.xlu0 %2826
      %2828 = vrot.lane.b32.xlu0 %v1997, 37
      %v2829 = vpop.permute.xlu0 %2828
      %2830 = vrot.lane.b32.xlu0 %v1998, 37
      %v2831 = vpop.permute.xlu0 %2830
      %2832 = vrot.lane.b32.xlu0 %v1999, 37
      %v2833 = vpop.permute.xlu0 %2832
      %v2834 = vsel %vm1117, %v2817, %v2819
      %v2835 = vsel %vm1117, %v2819, %v2821
      %v2836 = vsel %vm1117, %v2821, %v2823
      %v2837 = vsel %vm1117, %v2823, %v2825
      %v2838 = vsel %vm1117, %v2825, %v2827
      %v2839 = vsel %vm1117, %v2827, %v2829
      %v2840 = vsel %vm1117, %v2829, %v2831
      %v2841 = vsel %vm1117, %v2831, %v2833
      %2850 = vst [vmem:[#allocation2 + $0x500] sm:$0xff] %v2834
      %2851 = vst [vmem:[#allocation2 + $0x508] sm:$0xff] %v2835
      %2852 = vst [vmem:[#allocation2 + $0x510] sm:$0xff] %v2836
      %2853 = vst [vmem:[#allocation2 + $0x518] sm:$0xff] %v2837
      %2854 = vst [vmem:[#allocation2 + $0x520] sm:$0xff] %v2838
      %2855 = vst [vmem:[#allocation2 + $0x528] sm:$0xff] %v2839
      %2856 = vst [vmem:[#allocation2 + $0x530] sm:$0xff] %v2840
      %2857 = vst [vmem:[#allocation2 + $0x538] sm:$0xff] %v2841
      %2858 = vrot.lane.b32.xlu0 %v1991, 29
      %v2859 = vpop.permute.xlu0 %2858
      %2860 = vrot.lane.b32.xlu0 %v1992, 29
      %v2861 = vpop.permute.xlu0 %2860
      %2862 = vrot.lane.b32.xlu0 %v1993, 29
      %v2863 = vpop.permute.xlu0 %2862
      %2864 = vrot.lane.b32.xlu0 %v1994, 29
      %v2865 = vpop.permute.xlu0 %2864
      %2866 = vrot.lane.b32.xlu0 %v1995, 29
      %v2867 = vpop.permute.xlu0 %2866
      %2868 = vrot.lane.b32.xlu0 %v1996, 29
      %v2869 = vpop.permute.xlu0 %2868
      %2870 = vrot.lane.b32.xlu0 %v1997, 29
      %v2871 = vpop.permute.xlu0 %2870
      %2872 = vrot.lane.b32.xlu0 %v1998, 29
      %v2873 = vpop.permute.xlu0 %2872
      %2874 = vrot.lane.b32.xlu0 %v1999, 29
      %v2875 = vpop.permute.xlu0 %2874
      %v2876 = vsel %vm1160, %v2859, %v2861
      %v2877 = vsel %vm1160, %v2861, %v2863
      %v2878 = vsel %vm1160, %v2863, %v2865
      %v2879 = vsel %vm1160, %v2865, %v2867
      %v2880 = vsel %vm1160, %v2867, %v2869
      %v2881 = vsel %vm1160, %v2869, %v2871
      %v2882 = vsel %vm1160, %v2871, %v2873
      %v2883 = vsel %vm1160, %v2873, %v2875
      %2892 = vst [vmem:[#allocation2 + $0x540] sm:$0xff] %v2876
      %2893 = vst [vmem:[#allocation2 + $0x548] sm:$0xff] %v2877
      %2894 = vst [vmem:[#allocation2 + $0x550] sm:$0xff] %v2878
      %2895 = vst [vmem:[#allocation2 + $0x558] sm:$0xff] %v2879
      %2896 = vst [vmem:[#allocation2 + $0x560] sm:$0xff] %v2880
      %2897 = vst [vmem:[#allocation2 + $0x568] sm:$0xff] %v2881
      %2898 = vst [vmem:[#allocation2 + $0x570] sm:$0xff] %v2882
      %2899 = vst [vmem:[#allocation2 + $0x578] sm:$0xff] %v2883
      %2900 = vrot.lane.b32.xlu0 %v1991, 28
      %v2901 = vpop.permute.xlu0 %2900
      %2902 = vrot.lane.b32.xlu0 %v1992, 28
      %v2903 = vpop.permute.xlu0 %2902
      %2904 = vrot.lane.b32.xlu0 %v1993, 28
      %v2905 = vpop.permute.xlu0 %2904
      %2906 = vrot.lane.b32.xlu0 %v1994, 28
      %v2907 = vpop.permute.xlu0 %2906
      %2908 = vrot.lane.b32.xlu0 %v1995, 28
      %v2909 = vpop.permute.xlu0 %2908
      %2910 = vrot.lane.b32.xlu0 %v1996, 28
      %v2911 = vpop.permute.xlu0 %2910
      %2912 = vrot.lane.b32.xlu0 %v1997, 28
      %v2913 = vpop.permute.xlu0 %2912
      %2914 = vrot.lane.b32.xlu0 %v1998, 28
      %v2915 = vpop.permute.xlu0 %2914
      %2916 = vrot.lane.b32.xlu0 %v1999, 28
      %v2917 = vpop.permute.xlu0 %2916
      %v2918 = vsel %vm1203, %v2901, %v2903
      %v2919 = vsel %vm1203, %v2903, %v2905
      %v2920 = vsel %vm1203, %v2905, %v2907
      %v2921 = vsel %vm1203, %v2907, %v2909
      %v2922 = vsel %vm1203, %v2909, %v2911
      %v2923 = vsel %vm1203, %v2911, %v2913
      %v2924 = vsel %vm1203, %v2913, %v2915
      %v2925 = vsel %vm1203, %v2915, %v2917
      %2934 = vst [vmem:[#allocation2 + $0x580] sm:$0xff] %v2918
      %2935 = vst [vmem:[#allocation2 + $0x588] sm:$0xff] %v2919
      %2936 = vst [vmem:[#allocation2 + $0x590] sm:$0xff] %v2920
      %2937 = vst [vmem:[#allocation2 + $0x598] sm:$0xff] %v2921
      %2938 = vst [vmem:[#allocation2 + $0x5a0] sm:$0xff] %v2922
      %2939 = vst [vmem:[#allocation2 + $0x5a8] sm:$0xff] %v2923
      %2940 = vst [vmem:[#allocation2 + $0x5b0] sm:$0xff] %v2924
      %2941 = vst [vmem:[#allocation2 + $0x5b8] sm:$0xff] %v2925
      %2942 = vrot.lane.b32.xlu0 %v1991, 27
      %v2943 = vpop.permute.xlu0 %2942
      %2944 = vrot.lane.b32.xlu0 %v1992, 27
      %v2945 = vpop.permute.xlu0 %2944
      %2946 = vrot.lane.b32.xlu0 %v1993, 27
      %v2947 = vpop.permute.xlu0 %2946
      %2948 = vrot.lane.b32.xlu0 %v1994, 27
      %v2949 = vpop.permute.xlu0 %2948
      %2950 = vrot.lane.b32.xlu0 %v1995, 27
      %v2951 = vpop.permute.xlu0 %2950
      %2952 = vrot.lane.b32.xlu0 %v1996, 27
      %v2953 = vpop.permute.xlu0 %2952
      %2954 = vrot.lane.b32.xlu0 %v1997, 27
      %v2955 = vpop.permute.xlu0 %2954
      %2956 = vrot.lane.b32.xlu0 %v1998, 27
      %v2957 = vpop.permute.xlu0 %2956
      %2958 = vrot.lane.b32.xlu0 %v1999, 27
      %v2959 = vpop.permute.xlu0 %2958
      %v2960 = vsel %vm1246, %v2943, %v2945
      %v2961 = vsel %vm1246, %v2945, %v2947
      %v2962 = vsel %vm1246, %v2947, %v2949
      %v2963 = vsel %vm1246, %v2949, %v2951
      %v2964 = vsel %vm1246, %v2951, %v2953
      %v2965 = vsel %vm1246, %v2953, %v2955
      %v2966 = vsel %vm1246, %v2955, %v2957
      %v2967 = vsel %vm1246, %v2957, %v2959
      %2976 = vst [vmem:[#allocation2 + $0x5c0] sm:$0xff] %v2960
      %2977 = vst [vmem:[#allocation2 + $0x5c8] sm:$0xff] %v2961
      %2978 = vst [vmem:[#allocation2 + $0x5d0] sm:$0xff] %v2962
      %2979 = vst [vmem:[#allocation2 + $0x5d8] sm:$0xff] %v2963
      %2980 = vst [vmem:[#allocation2 + $0x5e0] sm:$0xff] %v2964
      %2981 = vst [vmem:[#allocation2 + $0x5e8] sm:$0xff] %v2965
      %2982 = vst [vmem:[#allocation2 + $0x5f0] sm:$0xff] %v2966
      %2983 = vst [vmem:[#allocation2 + $0x5f8] sm:$0xff] %v2967
      %2984 = vrot.lane.b32.xlu0 %v1991, 19
      %v2985 = vpop.permute.xlu0 %2984
      %2986 = vrot.lane.b32.xlu0 %v1992, 19
      %v2987 = vpop.permute.xlu0 %2986
      %2988 = vrot.lane.b32.xlu0 %v1993, 19
      %v2989 = vpop.permute.xlu0 %2988
      %2990 = vrot.lane.b32.xlu0 %v1994, 19
      %v2991 = vpop.permute.xlu0 %2990
      %2992 = vrot.lane.b32.xlu0 %v1995, 19
      %v2993 = vpop.permute.xlu0 %2992
      %2994 = vrot.lane.b32.xlu0 %v1996, 19
      %v2995 = vpop.permute.xlu0 %2994
      %2996 = vrot.lane.b32.xlu0 %v1997, 19
      %v2997 = vpop.permute.xlu0 %2996
      %2998 = vrot.lane.b32.xlu0 %v1998, 19
      %v2999 = vpop.permute.xlu0 %2998
      %3000 = vrot.lane.b32.xlu0 %v1999, 19
      %v3001 = vpop.permute.xlu0 %3000
      %v3002 = vsel %vm1289, %v2985, %v2987
      %v3003 = vsel %vm1289, %v2987, %v2989
      %v3004 = vsel %vm1289, %v2989, %v2991
      %v3005 = vsel %vm1289, %v2991, %v2993
      %v3006 = vsel %vm1289, %v2993, %v2995
      %v3007 = vsel %vm1289, %v2995, %v2997
      %v3008 = vsel %vm1289, %v2997, %v2999
      %v3009 = vsel %vm1289, %v2999, %v3001
      %3018 = vst [vmem:[#allocation2 + $0x600] sm:$0xff] %v3002
      %3019 = vst [vmem:[#allocation2 + $0x608] sm:$0xff] %v3003
      %3020 = vst [vmem:[#allocation2 + $0x610] sm:$0xff] %v3004
      %3021 = vst [vmem:[#allocation2 + $0x618] sm:$0xff] %v3005
      %3022 = vst [vmem:[#allocation2 + $0x620] sm:$0xff] %v3006
      %3023 = vst [vmem:[#allocation2 + $0x628] sm:$0xff] %v3007
      %3024 = vst [vmem:[#allocation2 + $0x630] sm:$0xff] %v3008
      %3025 = vst [vmem:[#allocation2 + $0x638] sm:$0xff] %v3009
      %3026 = vrot.lane.b32.xlu0 %v1991, 18
      %v3027 = vpop.permute.xlu0 %3026
      %3028 = vrot.lane.b32.xlu0 %v1992, 18
      %v3029 = vpop.permute.xlu0 %3028
      %3030 = vrot.lane.b32.xlu0 %v1993, 18
      %v3031 = vpop.permute.xlu0 %3030
      %3032 = vrot.lane.b32.xlu0 %v1994, 18
      %v3033 = vpop.permute.xlu0 %3032
      %3034 = vrot.lane.b32.xlu0 %v1995, 18
      %v3035 = vpop.permute.xlu0 %3034
      %3036 = vrot.lane.b32.xlu0 %v1996, 18
      %v3037 = vpop.permute.xlu0 %3036
      %3038 = vrot.lane.b32.xlu0 %v1997, 18
      %v3039 = vpop.permute.xlu0 %3038
      %3040 = vrot.lane.b32.xlu0 %v1998, 18
      %v3041 = vpop.permute.xlu0 %3040
      %3042 = vrot.lane.b32.xlu0 %v1999, 18
      %v3043 = vpop.permute.xlu0 %3042
      %v3044 = vsel %vm1332, %v3027, %v3029
      %v3045 = vsel %vm1332, %v3029, %v3031
      %v3046 = vsel %vm1332, %v3031, %v3033
      %v3047 = vsel %vm1332, %v3033, %v3035
      %v3048 = vsel %vm1332, %v3035, %v3037
      %v3049 = vsel %vm1332, %v3037, %v3039
      %v3050 = vsel %vm1332, %v3039, %v3041
      %v3051 = vsel %vm1332, %v3041, %v3043
      %3060 = vst [vmem:[#allocation2 + $0x640] sm:$0xff] %v3044
      %3061 = vst [vmem:[#allocation2 + $0x648] sm:$0xff] %v3045
      %3062 = vst [vmem:[#allocation2 + $0x650] sm:$0xff] %v3046
      %3063 = vst [vmem:[#allocation2 + $0x658] sm:$0xff] %v3047
      %3064 = vst [vmem:[#allocation2 + $0x660] sm:$0xff] %v3048
      %3065 = vst [vmem:[#allocation2 + $0x668] sm:$0xff] %v3049
      %3066 = vst [vmem:[#allocation2 + $0x670] sm:$0xff] %v3050
      %3067 = vst [vmem:[#allocation2 + $0x678] sm:$0xff] %v3051
      %3068 = vrot.lane.b32.xlu0 %v1991, 17
      %v3069 = vpop.permute.xlu0 %3068
      %3070 = vrot.lane.b32.xlu0 %v1992, 17
      %v3071 = vpop.permute.xlu0 %3070
      %3072 = vrot.lane.b32.xlu0 %v1993, 17
      %v3073 = vpop.permute.xlu0 %3072
      %3074 = vrot.lane.b32.xlu0 %v1994, 17
      %v3075 = vpop.permute.xlu0 %3074
      %3076 = vrot.lane.b32.xlu0 %v1995, 17
      %v3077 = vpop.permute.xlu0 %3076
      %3078 = vrot.lane.b32.xlu0 %v1996, 17
      %v3079 = vpop.permute.xlu0 %3078
      %3080 = vrot.lane.b32.xlu0 %v1997, 17
      %v3081 = vpop.permute.xlu0 %3080
      %3082 = vrot.lane.b32.xlu0 %v1998, 17
      %v3083 = vpop.permute.xlu0 %3082
      %3084 = vrot.lane.b32.xlu0 %v1999, 17
      %v3085 = vpop.permute.xlu0 %3084
      %v3086 = vsel %vm1375, %v3069, %v3071
      %v3087 = vsel %vm1375, %v3071, %v3073
      %v3088 = vsel %vm1375, %v3073, %v3075
      %v3089 = vsel %vm1375, %v3075, %v3077
      %v3090 = vsel %vm1375, %v3077, %v3079
      %v3091 = vsel %vm1375, %v3079, %v3081
      %v3092 = vsel %vm1375, %v3081, %v3083
      %v3093 = vsel %vm1375, %v3083, %v3085
      %3102 = vst [vmem:[#allocation2 + $0x680] sm:$0xff] %v3086
      %3103 = vst [vmem:[#allocation2 + $0x688] sm:$0xff] %v3087
      %3104 = vst [vmem:[#allocation2 + $0x690] sm:$0xff] %v3088
      %3105 = vst [vmem:[#allocation2 + $0x698] sm:$0xff] %v3089
      %3106 = vst [vmem:[#allocation2 + $0x6a0] sm:$0xff] %v3090
      %3107 = vst [vmem:[#allocation2 + $0x6a8] sm:$0xff] %v3091
      %3108 = vst [vmem:[#allocation2 + $0x6b0] sm:$0xff] %v3092
      %3109 = vst [vmem:[#allocation2 + $0x6b8] sm:$0xff] %v3093
      %v3110 = vld [vmem:[%s3] sm:$0xff]
      %v3111 = vld [vmem:[%s3 + $0x8] sm:$0xff]
      %v3112 = vld [vmem:[#allocation2] sm:$0xff]
      %v3113 = vld [vmem:[#allocation2 + $0x8] sm:$0xff]
      %v3114 = vld [vmem:[#allocation2 + $0x10] sm:$0xff]
      %v3115 = vld [vmem:[#allocation2 + $0x18] sm:$0xff]
      %v3116 = vld [vmem:[#allocation2 + $0x20] sm:$0xff]
      %v3117 = vld [vmem:[#allocation2 + $0x28] sm:$0xff]
      %v3118 = vld [vmem:[#allocation2 + $0x30] sm:$0xff]
      %v3119 = vld [vmem:[#allocation2 + $0x38] sm:$0xff]
      %v3120 = vld [vmem:[#allocation2 + $0x40] sm:$0xff]
      %v3121 = vld [vmem:[#allocation2 + $0x48] sm:$0xff]
      %v3122 = vld [vmem:[#allocation2 + $0x50] sm:$0xff]
      %v3123 = vld [vmem:[#allocation2 + $0x58] sm:$0xff]
      %v3124 = vld [vmem:[#allocation2 + $0x60] sm:$0xff]
      %v3125 = vld [vmem:[#allocation2 + $0x68] sm:$0xff]
      %v3126 = vld [vmem:[#allocation2 + $0x70] sm:$0xff]
      %v3127 = vld [vmem:[#allocation2 + $0x78] sm:$0xff]
      %v3128 = vld [vmem:[#allocation2 + $0x80] sm:$0xff]
      %v3129 = vld [vmem:[#allocation2 + $0x88] sm:$0xff]
      %v3130 = vld [vmem:[#allocation2 + $0x90] sm:$0xff]
      %v3131 = vld [vmem:[#allocation2 + $0x98] sm:$0xff]
      %v3132 = vld [vmem:[#allocation2 + $0xa0] sm:$0xff]
      %v3133 = vld [vmem:[#allocation2 + $0xa8] sm:$0xff]
      %v3134 = vld [vmem:[#allocation2 + $0xb0] sm:$0xff]
      %v3135 = vld [vmem:[#allocation2 + $0xb8] sm:$0xff]
      %v3136 = vld [vmem:[#allocation2 + $0xc0] sm:$0xff]
      %v3137 = vld [vmem:[#allocation2 + $0xc8] sm:$0xff]
      %v3138 = vld [vmem:[#allocation2 + $0xd0] sm:$0xff]
      %v3139 = vld [vmem:[#allocation2 + $0xd8] sm:$0xff]
      %v3140 = vld [vmem:[#allocation2 + $0xe0] sm:$0xff]
      %v3141 = vld [vmem:[#allocation2 + $0xe8] sm:$0xff]
      %v3142 = vld [vmem:[#allocation2 + $0xf0] sm:$0xff]
      %v3143 = vld [vmem:[#allocation2 + $0xf8] sm:$0xff]
      %v3144 = vld [vmem:[#allocation2 + $0x100] sm:$0xff]
      %v3145 = vld [vmem:[#allocation2 + $0x108] sm:$0xff]
      %v3146 = vld [vmem:[#allocation2 + $0x110] sm:$0xff]
      %v3147 = vld [vmem:[#allocation2 + $0x118] sm:$0xff]
      %v3148 = vld [vmem:[#allocation2 + $0x120] sm:$0xff]
      %v3149 = vld [vmem:[#allocation2 + $0x128] sm:$0xff]
      %v3150 = vld [vmem:[#allocation2 + $0x130] sm:$0xff]
      %v3151 = vld [vmem:[#allocation2 + $0x138] sm:$0xff]
      %v3152 = vld [vmem:[#allocation2 + $0x140] sm:$0xff]
      %v3153 = vld [vmem:[#allocation2 + $0x148] sm:$0xff]
      %v3154 = vld [vmem:[#allocation2 + $0x150] sm:$0xff]
      %v3155 = vld [vmem:[#allocation2 + $0x158] sm:$0xff]
      %v3156 = vld [vmem:[#allocation2 + $0x160] sm:$0xff]
      %v3157 = vld [vmem:[#allocation2 + $0x168] sm:$0xff]
      %v3158 = vld [vmem:[#allocation2 + $0x170] sm:$0xff]
      %v3159 = vld [vmem:[#allocation2 + $0x178] sm:$0xff]
      %v3160 = vld [vmem:[#allocation2 + $0x180] sm:$0xff]
      %v3161 = vld [vmem:[#allocation2 + $0x188] sm:$0xff]
      %v3162 = vld [vmem:[#allocation2 + $0x190] sm:$0xff]
      %v3163 = vld [vmem:[#allocation2 + $0x198] sm:$0xff]
      %v3164 = vld [vmem:[#allocation2 + $0x1a0] sm:$0xff]
      %v3165 = vld [vmem:[#allocation2 + $0x1a8] sm:$0xff]
      %v3166 = vld [vmem:[#allocation2 + $0x1b0] sm:$0xff]
      %v3167 = vld [vmem:[#allocation2 + $0x1b8] sm:$0xff]
      %v3168 = vld [vmem:[#allocation2 + $0x1c0] sm:$0xff]
      %v3169 = vld [vmem:[#allocation2 + $0x1c8] sm:$0xff]
      %v3170 = vld [vmem:[#allocation2 + $0x1d0] sm:$0xff]
      %v3171 = vld [vmem:[#allocation2 + $0x1d8] sm:$0xff]
      %v3172 = vld [vmem:[#allocation2 + $0x1e0] sm:$0xff]
      %v3173 = vld [vmem:[#allocation2 + $0x1e8] sm:$0xff]
      %v3174 = vld [vmem:[#allocation2 + $0x1f0] sm:$0xff]
      %v3175 = vld [vmem:[#allocation2 + $0x1f8] sm:$0xff]
      %v3176 = vld [vmem:[#allocation2 + $0x200] sm:$0xff]
      %v3177 = vld [vmem:[#allocation2 + $0x208] sm:$0xff]
      %v3178 = vld [vmem:[#allocation2 + $0x210] sm:$0xff]
      %v3179 = vld [vmem:[#allocation2 + $0x218] sm:$0xff]
      %v3180 = vld [vmem:[#allocation2 + $0x220] sm:$0xff]
      %v3181 = vld [vmem:[#allocation2 + $0x228] sm:$0xff]
      %v3182 = vld [vmem:[#allocation2 + $0x230] sm:$0xff]
      %v3183 = vld [vmem:[#allocation2 + $0x238] sm:$0xff]
      %v3184 = vld [vmem:[#allocation2 + $0x240] sm:$0xff]
      %v3185 = vld [vmem:[#allocation2 + $0x248] sm:$0xff]
      %v3186 = vld [vmem:[#allocation2 + $0x250] sm:$0xff]
      %v3187 = vld [vmem:[#allocation2 + $0x258] sm:$0xff]
      %v3188 = vld [vmem:[#allocation2 + $0x260] sm:$0xff]
      %v3189 = vld [vmem:[#allocation2 + $0x268] sm:$0xff]
      %v3190 = vld [vmem:[#allocation2 + $0x270] sm:$0xff]
      %v3191 = vld [vmem:[#allocation2 + $0x278] sm:$0xff]
      %v3192 = vld [vmem:[#allocation2 + $0x280] sm:$0xff]
      %v3193 = vld [vmem:[#allocation2 + $0x288] sm:$0xff]
      %v3194 = vld [vmem:[#allocation2 + $0x290] sm:$0xff]
      %v3195 = vld [vmem:[#allocation2 + $0x298] sm:$0xff]
      %v3196 = vld [vmem:[#allocation2 + $0x2a0] sm:$0xff]
      %v3197 = vld [vmem:[#allocation2 + $0x2a8] sm:$0xff]
      %v3198 = vld [vmem:[#allocation2 + $0x2b0] sm:$0xff]
      %v3199 = vld [vmem:[#allocation2 + $0x2b8] sm:$0xff]
      %v3200 = vld [vmem:[#allocation2 + $0x2c0] sm:$0xff]
      %v3201 = vld [vmem:[#allocation2 + $0x2c8] sm:$0xff]
      %v3202 = vld [vmem:[#allocation2 + $0x2d0] sm:$0xff]
      %v3203 = vld [vmem:[#allocation2 + $0x2d8] sm:$0xff]
      %v3204 = vld [vmem:[#allocation2 + $0x2e0] sm:$0xff]
      %v3205 = vld [vmem:[#allocation2 + $0x2e8] sm:$0xff]
      %v3206 = vld [vmem:[#allocation2 + $0x2f0] sm:$0xff]
      %v3207 = vld [vmem:[#allocation2 + $0x2f8] sm:$0xff]
      %v3208 = vld [vmem:[#allocation2 + $0x300] sm:$0xff]
      %v3209 = vld [vmem:[#allocation2 + $0x308] sm:$0xff]
      %v3210 = vld [vmem:[#allocation2 + $0x310] sm:$0xff]
      %v3211 = vld [vmem:[#allocation2 + $0x318] sm:$0xff]
      %v3212 = vld [vmem:[#allocation2 + $0x320] sm:$0xff]
      %v3213 = vld [vmem:[#allocation2 + $0x328] sm:$0xff]
      %v3214 = vld [vmem:[#allocation2 + $0x330] sm:$0xff]
      %v3215 = vld [vmem:[#allocation2 + $0x338] sm:$0xff]
      %v3216 = vld [vmem:[#allocation2 + $0x340] sm:$0xff]
      %v3217 = vld [vmem:[#allocation2 + $0x348] sm:$0xff]
      %v3218 = vld [vmem:[#allocation2 + $0x350] sm:$0xff]
      %v3219 = vld [vmem:[#allocation2 + $0x358] sm:$0xff]
      %v3220 = vld [vmem:[#allocation2 + $0x360] sm:$0xff]
      %v3221 = vld [vmem:[#allocation2 + $0x368] sm:$0xff]
      %v3222 = vld [vmem:[#allocation2 + $0x370] sm:$0xff]
      %v3223 = vld [vmem:[#allocation2 + $0x378] sm:$0xff]
      %v3224 = vld [vmem:[#allocation2 + $0x380] sm:$0xff]
      %v3225 = vld [vmem:[#allocation2 + $0x388] sm:$0xff]
      %v3226 = vld [vmem:[#allocation2 + $0x390] sm:$0xff]
      %v3227 = vld [vmem:[#allocation2 + $0x398] sm:$0xff]
      %v3228 = vld [vmem:[#allocation2 + $0x3a0] sm:$0xff]
      %v3229 = vld [vmem:[#allocation2 + $0x3a8] sm:$0xff]
      %v3230 = vld [vmem:[#allocation2 + $0x3b0] sm:$0xff]
      %v3231 = vld [vmem:[#allocation2 + $0x3b8] sm:$0xff]
      %v3232 = vld [vmem:[#allocation2 + $0x3c0] sm:$0xff]
      %v3233 = vld [vmem:[#allocation2 + $0x3c8] sm:$0xff]
      %v3234 = vld [vmem:[#allocation2 + $0x3d0] sm:$0xff]
      %v3235 = vld [vmem:[#allocation2 + $0x3d8] sm:$0xff]
      %v3236 = vld [vmem:[#allocation2 + $0x3e0] sm:$0xff]
      %v3237 = vld [vmem:[#allocation2 + $0x3e8] sm:$0xff]
      %v3238 = vld [vmem:[#allocation2 + $0x3f0] sm:$0xff]
      %v3239 = vld [vmem:[#allocation2 + $0x3f8] sm:$0xff]
      %v3240 = vld [vmem:[#allocation2 + $0x400] sm:$0xff]
      %v3241 = vld [vmem:[#allocation2 + $0x408] sm:$0xff]
      %v3242 = vld [vmem:[#allocation2 + $0x410] sm:$0xff]
      %v3243 = vld [vmem:[#allocation2 + $0x418] sm:$0xff]
      %v3244 = vld [vmem:[#allocation2 + $0x420] sm:$0xff]
      %v3245 = vld [vmem:[#allocation2 + $0x428] sm:$0xff]
      %v3246 = vld [vmem:[#allocation2 + $0x430] sm:$0xff]
      %v3247 = vld [vmem:[#allocation2 + $0x438] sm:$0xff]
      %v3248 = vld [vmem:[#allocation2 + $0x440] sm:$0xff]
      %v3249 = vld [vmem:[#allocation2 + $0x448] sm:$0xff]
      %v3250 = vld [vmem:[#allocation2 + $0x450] sm:$0xff]
      %v3251 = vld [vmem:[#allocation2 + $0x458] sm:$0xff]
      %v3252 = vld [vmem:[#allocation2 + $0x460] sm:$0xff]
      %v3253 = vld [vmem:[#allocation2 + $0x468] sm:$0xff]
      %v3254 = vld [vmem:[#allocation2 + $0x470] sm:$0xff]
      %v3255 = vld [vmem:[#allocation2 + $0x478] sm:$0xff]
      %v3256 = vld [vmem:[#allocation2 + $0x480] sm:$0xff]
      %v3257 = vld [vmem:[#allocation2 + $0x488] sm:$0xff]
      %v3258 = vld [vmem:[#allocation2 + $0x490] sm:$0xff]
      %v3259 = vld [vmem:[#allocation2 + $0x498] sm:$0xff]
      %v3260 = vld [vmem:[#allocation2 + $0x4a0] sm:$0xff]
      %v3261 = vld [vmem:[#allocation2 + $0x4a8] sm:$0xff]
      %v3262 = vld [vmem:[#allocation2 + $0x4b0] sm:$0xff]
      %v3263 = vld [vmem:[#allocation2 + $0x4b8] sm:$0xff]
      %v3264 = vld [vmem:[#allocation2 + $0x4c0] sm:$0xff]
      %v3265 = vld [vmem:[#allocation2 + $0x4c8] sm:$0xff]
      %v3266 = vld [vmem:[#allocation2 + $0x4d0] sm:$0xff]
      %v3267 = vld [vmem:[#allocation2 + $0x4d8] sm:$0xff]
      %v3268 = vld [vmem:[#allocation2 + $0x4e0] sm:$0xff]
      %v3269 = vld [vmem:[#allocation2 + $0x4e8] sm:$0xff]
      %v3270 = vld [vmem:[#allocation2 + $0x4f0] sm:$0xff]
      %v3271 = vld [vmem:[#allocation2 + $0x4f8] sm:$0xff]
      %v3272 = vld [vmem:[#allocation2 + $0x500] sm:$0xff]
      %v3273 = vld [vmem:[#allocation2 + $0x508] sm:$0xff]
      %v3274 = vld [vmem:[#allocation2 + $0x510] sm:$0xff]
      %v3275 = vld [vmem:[#allocation2 + $0x518] sm:$0xff]
      %v3276 = vld [vmem:[#allocation2 + $0x520] sm:$0xff]
      %v3277 = vld [vmem:[#allocation2 + $0x528] sm:$0xff]
      %v3278 = vld [vmem:[#allocation2 + $0x530] sm:$0xff]
      %v3279 = vld [vmem:[#allocation2 + $0x538] sm:$0xff]
      %v3280 = vld [vmem:[#allocation2 + $0x540] sm:$0xff]
      %v3281 = vld [vmem:[#allocation2 + $0x548] sm:$0xff]
      %v3282 = vld [vmem:[#allocation2 + $0x550] sm:$0xff]
      %v3283 = vld [vmem:[#allocation2 + $0x558] sm:$0xff]
      %v3284 = vld [vmem:[#allocation2 + $0x560] sm:$0xff]
      %v3285 = vld [vmem:[#allocation2 + $0x568] sm:$0xff]
      %v3286 = vld [vmem:[#allocation2 + $0x570] sm:$0xff]
      %v3287 = vld [vmem:[#allocation2 + $0x578] sm:$0xff]
      %v3288 = vld [vmem:[#allocation2 + $0x580] sm:$0xff]
      %v3289 = vld [vmem:[#allocation2 + $0x588] sm:$0xff]
      %v3290 = vld [vmem:[#allocation2 + $0x590] sm:$0xff]
      %v3291 = vld [vmem:[#allocation2 + $0x598] sm:$0xff]
      %v3292 = vld [vmem:[#allocation2 + $0x5a0] sm:$0xff]
      %v3293 = vld [vmem:[#allocation2 + $0x5a8] sm:$0xff]
      %v3294 = vld [vmem:[#allocation2 + $0x5b0] sm:$0xff]
      %v3295 = vld [vmem:[#allocation2 + $0x5b8] sm:$0xff]
      %v3296 = vld [vmem:[#allocation2 + $0x5c0] sm:$0xff]
      %v3297 = vld [vmem:[#allocation2 + $0x5c8] sm:$0xff]
      %v3298 = vld [vmem:[#allocation2 + $0x5d0] sm:$0xff]
      %v3299 = vld [vmem:[#allocation2 + $0x5d8] sm:$0xff]
      %v3300 = vld [vmem:[#allocation2 + $0x5e0] sm:$0xff]
      %v3301 = vld [vmem:[#allocation2 + $0x5e8] sm:$0xff]
      %v3302 = vld [vmem:[#allocation2 + $0x5f0] sm:$0xff]
      %v3303 = vld [vmem:[#allocation2 + $0x5f8] sm:$0xff]
      %v3304 = vld [vmem:[#allocation2 + $0x600] sm:$0xff]
      %v3305 = vld [vmem:[#allocation2 + $0x608] sm:$0xff]
      %v3306 = vld [vmem:[#allocation2 + $0x610] sm:$0xff]
      %v3307 = vld [vmem:[#allocation2 + $0x618] sm:$0xff]
      %v3308 = vld [vmem:[#allocation2 + $0x620] sm:$0xff]
      %v3309 = vld [vmem:[#allocation2 + $0x628] sm:$0xff]
      %v3310 = vld [vmem:[#allocation2 + $0x630] sm:$0xff]
      %v3311 = vld [vmem:[#allocation2 + $0x638] sm:$0xff]
      %v3312 = vld [vmem:[#allocation2 + $0x640] sm:$0xff]
      %v3313 = vld [vmem:[#allocation2 + $0x648] sm:$0xff]
      %v3314 = vld [vmem:[#allocation2 + $0x650] sm:$0xff]
      %v3315 = vld [vmem:[#allocation2 + $0x658] sm:$0xff]
      %v3316 = vld [vmem:[#allocation2 + $0x660] sm:$0xff]
      %v3317 = vld [vmem:[#allocation2 + $0x668] sm:$0xff]
      %v3318 = vld [vmem:[#allocation2 + $0x670] sm:$0xff]
      %v3319 = vld [vmem:[#allocation2 + $0x678] sm:$0xff]
      %v3320 = vld [vmem:[#allocation2 + $0x680] sm:$0xff]
      %v3321 = vld [vmem:[#allocation2 + $0x688] sm:$0xff]
      %v3322 = vld [vmem:[#allocation2 + $0x690] sm:$0xff]
      %v3323 = vld [vmem:[#allocation2 + $0x698] sm:$0xff]
      %v3324 = vld [vmem:[#allocation2 + $0x6a0] sm:$0xff]
      %v3325 = vld [vmem:[#allocation2 + $0x6a8] sm:$0xff]
      %v3326 = vld [vmem:[#allocation2 + $0x6b0] sm:$0xff]
      %v3327 = vld [vmem:[#allocation2 + $0x6b8] sm:$0xff]
      %v3328 = vld [vmem:[%s4] sm:$0xff]
      %3330 = vset.pattern.permute.xlu0 0
      %3331 = vperm.xlu0 %3330, %v3328
      %v3332 = vpop.permute.xlu0 %3331
      %v3335 = vsel %vm1624, %v3111, 0
      %3337 = vmatpush.msra.mxu0 %v3232
      %3338 = vmatpush.msra.mxu0 %v3224
      %3339 = vmatpush.msra.mxu0 %v3216
      %3340 = vmatpush.msra.mxu0 %v3208
      %3341 = vmatpush.msra.mxu0 %v3200
      %3342 = vmatpush.msra.mxu0 %v3192
      %3343 = vmatpush.msra.mxu0 %v3184
      %3344 = vmatpush.msra.mxu0 %v3176
      %3345 = vmatpush.msra.mxu0 %v3168
      %3346 = vmatpush.msra.mxu0 %v3160
      %3347 = vmatpush.msra.mxu0 %v3152
      %3348 = vmatpush.msra.mxu0 %v3144
      %3349 = vmatpush.msra.mxu0 %v3136
      %3350 = vmatpush.msra.mxu0 %v3128
      %3351 = vmatpush.msra.mxu0 %v3120
      %3352 = vmatpush.msra.mxu0 %v3112
      %3353 = vmatmul.f32.gmra.mxu0 %v3110
      %v3354 = vpop.f32.mrf.mxu0
      %v3355 = vadd.f32 %v3332, %v3354
      %3356 = vdwg.mxu0
      %3357 = vmatpush.msra.mxu0 0.0
      %3358 = vmatpush.msra.mxu0 0.0
      %3359 = vmatpush.msra.mxu0 0.0
      %3360 = vmatpush.msra.mxu0 0.0
      %3361 = vmatpush.msra.mxu0 0.0
      %3362 = vmatpush.msra.mxu0 %v3320
      %3363 = vmatpush.msra.mxu0 %v3312
      %3364 = vmatpush.msra.mxu0 %v3304
      %3365 = vmatpush.msra.mxu0 %v3296
      %3366 = vmatpush.msra.mxu0 %v3288
      %3367 = vmatpush.msra.mxu0 %v3280
      %3368 = vmatpush.msra.mxu0 %v3272
      %3369 = vmatpush.msra.mxu0 %v3264
      %3370 = vmatpush.msra.mxu0 %v3256
      %3371 = vmatpush.msra.mxu0 %v3248
      %3372 = vmatpush.msra.mxu0 %v3240
      %3373 = vmatmul.f32.gmra.mxu0 %v3335
      %v3374 = vpop.f32.mrf.mxu0
      %v3375 = vadd.f32 %v3355, %v3374
      %3376 = vdwg.mxu0
      %3377 = vmatpush.msra.mxu0 %v3233
      %3378 = vmatpush.msra.mxu0 %v3225
      %3379 = vmatpush.msra.mxu0 %v3217
      %3380 = vmatpush.msra.mxu0 %v3209
      %3381 = vmatpush.msra.mxu0 %v3201
      %3382 = vmatpush.msra.mxu0 %v3193
      %3383 = vmatpush.msra.mxu0 %v3185
      %3384 = vmatpush.msra.mxu0 %v3177
      %3385 = vmatpush.msra.mxu0 %v3169
      %3386 = vmatpush.msra.mxu0 %v3161
      %3387 = vmatpush.msra.mxu0 %v3153
      %3388 = vmatpush.msra.mxu0 %v3145
      %3389 = vmatpush.msra.mxu0 %v3137
      %3390 = vmatpush.msra.mxu0 %v3129
      %3391 = vmatpush.msra.mxu0 %v3121
      %3392 = vmatpush.msra.mxu0 %v3113
      %3393 = vmatmul.f32.gmra.mxu0 %v3110
      %v3394 = vpop.f32.mrf.mxu0
      %v3395 = vadd.f32 %v3332, %v3394
      %3396 = vdwg.mxu0
      %3397 = vmatpush.msra.mxu0 0.0
      %3398 = vmatpush.msra.mxu0 0.0
      %3399 = vmatpush.msra.mxu0 0.0
      %3400 = vmatpush.msra.mxu0 0.0
      %3401 = vmatpush.msra.mxu0 0.0
      %3402 = vmatpush.msra.mxu0 %v3321
      %3403 = vmatpush.msra.mxu0 %v3313
      %3404 = vmatpush.msra.mxu0 %v3305
      %3405 = vmatpush.msra.mxu0 %v3297
      %3406 = vmatpush.msra.mxu0 %v3289
      %3407 = vmatpush.msra.mxu0 %v3281
      %3408 = vmatpush.msra.mxu0 %v3273
      %3409 = vmatpush.msra.mxu0 %v3265
      %3410 = vmatpush.msra.mxu0 %v3257
      %3411 = vmatpush.msra.mxu0 %v3249
      %3412 = vmatpush.msra.mxu0 %v3241
      %3413 = vmatmul.f32.gmra.mxu0 %v3335
      %v3414 = vpop.f32.mrf.mxu0
      %v3415 = vadd.f32 %v3395, %v3414
      %3416 = vdwg.mxu0
      %3417 = vmatpush.msra.mxu0 %v3234
      %3418 = vmatpush.msra.mxu0 %v3226
      %3419 = vmatpush.msra.mxu0 %v3218
      %3420 = vmatpush.msra.mxu0 %v3210
      %3421 = vmatpush.msra.mxu0 %v3202
      %3422 = vmatpush.msra.mxu0 %v3194
      %3423 = vmatpush.msra.mxu0 %v3186
      %3424 = vmatpush.msra.mxu0 %v3178
      %3425 = vmatpush.msra.mxu0 %v3170
      %3426 = vmatpush.msra.mxu0 %v3162
      %3427 = vmatpush.msra.mxu0 %v3154
      %3428 = vmatpush.msra.mxu0 %v3146
      %3429 = vmatpush.msra.mxu0 %v3138
      %3430 = vmatpush.msra.mxu0 %v3130
      %3431 = vmatpush.msra.mxu0 %v3122
      %3432 = vmatpush.msra.mxu0 %v3114
      %3433 = vmatmul.f32.gmra.mxu0 %v3110
      %v3434 = vpop.f32.mrf.mxu0
      %v3435 = vadd.f32 %v3332, %v3434
      %3436 = vdwg.mxu0
      %3437 = vmatpush.msra.mxu0 0.0
      %3438 = vmatpush.msra.mxu0 0.0
      %3439 = vmatpush.msra.mxu0 0.0
      %3440 = vmatpush.msra.mxu0 0.0
      %3441 = vmatpush.msra.mxu0 0.0
      %3442 = vmatpush.msra.mxu0 %v3322
      %3443 = vmatpush.msra.mxu0 %v3314
      %3444 = vmatpush.msra.mxu0 %v3306
      %3445 = vmatpush.msra.mxu0 %v3298
      %3446 = vmatpush.msra.mxu0 %v3290
      %3447 = vmatpush.msra.mxu0 %v3282
      %3448 = vmatpush.msra.mxu0 %v3274
      %3449 = vmatpush.msra.mxu0 %v3266
      %3450 = vmatpush.msra.mxu0 %v3258
      %3451 = vmatpush.msra.mxu0 %v3250
      %3452 = vmatpush.msra.mxu0 %v3242
      %3453 = vmatmul.f32.gmra.mxu0 %v3335
      %v3454 = vpop.f32.mrf.mxu0
      %v3455 = vadd.f32 %v3435, %v3454
      %3456 = vdwg.mxu0
      %3457 = vmatpush.msra.mxu0 %v3235
      %3458 = vmatpush.msra.mxu0 %v3227
      %3459 = vmatpush.msra.mxu0 %v3219
      %3460 = vmatpush.msra.mxu0 %v3211
      %3461 = vmatpush.msra.mxu0 %v3203
      %3462 = vmatpush.msra.mxu0 %v3195
      %3463 = vmatpush.msra.mxu0 %v3187
      %3464 = vmatpush.msra.mxu0 %v3179
      %3465 = vmatpush.msra.mxu0 %v3171
      %3466 = vmatpush.msra.mxu0 %v3163
      %3467 = vmatpush.msra.mxu0 %v3155
      %3468 = vmatpush.msra.mxu0 %v3147
      %3469 = vmatpush.msra.mxu0 %v3139
      %3470 = vmatpush.msra.mxu0 %v3131
      %3471 = vmatpush.msra.mxu0 %v3123
      %3472 = vmatpush.msra.mxu0 %v3115
      %3473 = vmatmul.f32.gmra.mxu0 %v3110
      %v3474 = vpop.f32.mrf.mxu0
      %v3475 = vadd.f32 %v3332, %v3474
      %3476 = vdwg.mxu0
      %3477 = vmatpush.msra.mxu0 0.0
      %3478 = vmatpush.msra.mxu0 0.0
      %3479 = vmatpush.msra.mxu0 0.0
      %3480 = vmatpush.msra.mxu0 0.0
      %3481 = vmatpush.msra.mxu0 0.0
      %3482 = vmatpush.msra.mxu0 %v3323
      %3483 = vmatpush.msra.mxu0 %v3315
      %3484 = vmatpush.msra.mxu0 %v3307
      %3485 = vmatpush.msra.mxu0 %v3299
      %3486 = vmatpush.msra.mxu0 %v3291
      %3487 = vmatpush.msra.mxu0 %v3283
      %3488 = vmatpush.msra.mxu0 %v3275
      %3489 = vmatpush.msra.mxu0 %v3267
      %3490 = vmatpush.msra.mxu0 %v3259
      %3491 = vmatpush.msra.mxu0 %v3251
      %3492 = vmatpush.msra.mxu0 %v3243
      %3493 = vmatmul.f32.gmra.mxu0 %v3335
      %v3494 = vpop.f32.mrf.mxu0
      %v3495 = vadd.f32 %v3475, %v3494
      %3496 = vdwg.mxu0
      %3497 = vmatpush.msra.mxu0 %v3236
      %3498 = vmatpush.msra.mxu0 %v3228
      %3499 = vmatpush.msra.mxu0 %v3220
      %3500 = vmatpush.msra.mxu0 %v3212
      %3501 = vmatpush.msra.mxu0 %v3204
      %3502 = vmatpush.msra.mxu0 %v3196
      %3503 = vmatpush.msra.mxu0 %v3188
      %3504 = vmatpush.msra.mxu0 %v3180
      %3505 = vmatpush.msra.mxu0 %v3172
      %3506 = vmatpush.msra.mxu0 %v3164
      %3507 = vmatpush.msra.mxu0 %v3156
      %3508 = vmatpush.msra.mxu0 %v3148
      %3509 = vmatpush.msra.mxu0 %v3140
      %3510 = vmatpush.msra.mxu0 %v3132
      %3511 = vmatpush.msra.mxu0 %v3124
      %3512 = vmatpush.msra.mxu0 %v3116
      %3513 = vmatmul.f32.gmra.mxu0 %v3110
      %v3514 = vpop.f32.mrf.mxu0
      %v3515 = vadd.f32 %v3332, %v3514
      %3516 = vdwg.mxu0
      %3517 = vmatpush.msra.mxu0 0.0
      %3518 = vmatpush.msra.mxu0 0.0
      %3519 = vmatpush.msra.mxu0 0.0
      %3520 = vmatpush.msra.mxu0 0.0
      %3521 = vmatpush.msra.mxu0 0.0
      %3522 = vmatpush.msra.mxu0 %v3324
      %3523 = vmatpush.msra.mxu0 %v3316
      %3524 = vmatpush.msra.mxu0 %v3308
      %3525 = vmatpush.msra.mxu0 %v3300
      %3526 = vmatpush.msra.mxu0 %v3292
      %3527 = vmatpush.msra.mxu0 %v3284
      %3528 = vmatpush.msra.mxu0 %v3276
      %3529 = vmatpush.msra.mxu0 %v3268
      %3530 = vmatpush.msra.mxu0 %v3260
      %3531 = vmatpush.msra.mxu0 %v3252
      %3532 = vmatpush.msra.mxu0 %v3244
      %3533 = vmatmul.f32.gmra.mxu0 %v3335
      %v3534 = vpop.f32.mrf.mxu0
      %v3535 = vadd.f32 %v3515, %v3534
      %3536 = vdwg.mxu0
      %3537 = vmatpush.msra.mxu0 %v3237
      %3538 = vmatpush.msra.mxu0 %v3229
      %3539 = vmatpush.msra.mxu0 %v3221
      %3540 = vmatpush.msra.mxu0 %v3213
      %3541 = vmatpush.msra.mxu0 %v3205
      %3542 = vmatpush.msra.mxu0 %v3197
      %3543 = vmatpush.msra.mxu0 %v3189
      %3544 = vmatpush.msra.mxu0 %v3181
      %3545 = vmatpush.msra.mxu0 %v3173
      %3546 = vmatpush.msra.mxu0 %v3165
      %3547 = vmatpush.msra.mxu0 %v3157
      %3548 = vmatpush.msra.mxu0 %v3149
      %3549 = vmatpush.msra.mxu0 %v3141
      %3550 = vmatpush.msra.mxu0 %v3133
      %3551 = vmatpush.msra.mxu0 %v3125
      %3552 = vmatpush.msra.mxu0 %v3117
      %3553 = vmatmul.f32.gmra.mxu0 %v3110
      %v3554 = vpop.f32.mrf.mxu0
      %v3555 = vadd.f32 %v3332, %v3554
      %3556 = vdwg.mxu0
      %3557 = vmatpush.msra.mxu0 0.0
      %3558 = vmatpush.msra.mxu0 0.0
      %3559 = vmatpush.msra.mxu0 0.0
      %3560 = vmatpush.msra.mxu0 0.0
      %3561 = vmatpush.msra.mxu0 0.0
      %3562 = vmatpush.msra.mxu0 %v3325
      %3563 = vmatpush.msra.mxu0 %v3317
      %3564 = vmatpush.msra.mxu0 %v3309
      %3565 = vmatpush.msra.mxu0 %v3301
      %3566 = vmatpush.msra.mxu0 %v3293
      %3567 = vmatpush.msra.mxu0 %v3285
      %3568 = vmatpush.msra.mxu0 %v3277
      %3569 = vmatpush.msra.mxu0 %v3269
      %3570 = vmatpush.msra.mxu0 %v3261
      %3571 = vmatpush.msra.mxu0 %v3253
      %3572 = vmatpush.msra.mxu0 %v3245
      %3573 = vmatmul.f32.gmra.mxu0 %v3335
      %v3574 = vpop.f32.mrf.mxu0
      %v3575 = vadd.f32 %v3555, %v3574
      %3576 = vdwg.mxu0
      %3577 = vmatpush.msra.mxu0 %v3238
      %3578 = vmatpush.msra.mxu0 %v3230
      %3579 = vmatpush.msra.mxu0 %v3222
      %3580 = vmatpush.msra.mxu0 %v3214
      %3581 = vmatpush.msra.mxu0 %v3206
      %3582 = vmatpush.msra.mxu0 %v3198
      %3583 = vmatpush.msra.mxu0 %v3190
      %3584 = vmatpush.msra.mxu0 %v3182
      %3585 = vmatpush.msra.mxu0 %v3174
      %3586 = vmatpush.msra.mxu0 %v3166
      %3587 = vmatpush.msra.mxu0 %v3158
      %3588 = vmatpush.msra.mxu0 %v3150
      %3589 = vmatpush.msra.mxu0 %v3142
      %3590 = vmatpush.msra.mxu0 %v3134
      %3591 = vmatpush.msra.mxu0 %v3126
      %3592 = vmatpush.msra.mxu0 %v3118
      %3593 = vmatmul.f32.gmra.mxu0 %v3110
      %v3594 = vpop.f32.mrf.mxu0
      %v3595 = vadd.f32 %v3332, %v3594
      %3596 = vdwg.mxu0
      %3597 = vmatpush.msra.mxu0 0.0
      %3598 = vmatpush.msra.mxu0 0.0
      %3599 = vmatpush.msra.mxu0 0.0
      %3600 = vmatpush.msra.mxu0 0.0
      %3601 = vmatpush.msra.mxu0 0.0
      %3602 = vmatpush.msra.mxu0 %v3326
      %3603 = vmatpush.msra.mxu0 %v3318
      %3604 = vmatpush.msra.mxu0 %v3310
      %3605 = vmatpush.msra.mxu0 %v3302
      %3606 = vmatpush.msra.mxu0 %v3294
      %3607 = vmatpush.msra.mxu0 %v3286
      %3608 = vmatpush.msra.mxu0 %v3278
      %3609 = vmatpush.msra.mxu0 %v3270
      %3610 = vmatpush.msra.mxu0 %v3262
      %3611 = vmatpush.msra.mxu0 %v3254
      %3612 = vmatpush.msra.mxu0 %v3246
      %3613 = vmatmul.f32.gmra.mxu0 %v3335
      %v3614 = vpop.f32.mrf.mxu0
      %v3615 = vadd.f32 %v3595, %v3614
      %3616 = vdwg.mxu0
      %3617 = vmatpush.msra.mxu0 %v3239
      %3618 = vmatpush.msra.mxu0 %v3231
      %3619 = vmatpush.msra.mxu0 %v3223
      %3620 = vmatpush.msra.mxu0 %v3215
      %3621 = vmatpush.msra.mxu0 %v3207
      %3622 = vmatpush.msra.mxu0 %v3199
      %3623 = vmatpush.msra.mxu0 %v3191
      %3624 = vmatpush.msra.mxu0 %v3183
      %3625 = vmatpush.msra.mxu0 %v3175
      %3626 = vmatpush.msra.mxu0 %v3167
      %3627 = vmatpush.msra.mxu0 %v3159
      %3628 = vmatpush.msra.mxu0 %v3151
      %3629 = vmatpush.msra.mxu0 %v3143
      %3630 = vmatpush.msra.mxu0 %v3135
      %3631 = vmatpush.msra.mxu0 %v3127
      %3632 = vmatpush.msra.mxu0 %v3119
      %3633 = vmatmul.f32.gmra.mxu0 %v3110
      %v3634 = vpop.f32.mrf.mxu0
      %v3635 = vadd.f32 %v3332, %v3634
      %3636 = vdwg.mxu0
      %3637 = vmatpush.msra.mxu0 0.0
      %3638 = vmatpush.msra.mxu0 0.0
      %3639 = vmatpush.msra.mxu0 0.0
      %3640 = vmatpush.msra.mxu0 0.0
      %3641 = vmatpush.msra.mxu0 0.0
      %3642 = vmatpush.msra.mxu0 %v3327
      %3643 = vmatpush.msra.mxu0 %v3319
      %3644 = vmatpush.msra.mxu0 %v3311
      %3645 = vmatpush.msra.mxu0 %v3303
      %3646 = vmatpush.msra.mxu0 %v3295
      %3647 = vmatpush.msra.mxu0 %v3287
      %3648 = vmatpush.msra.mxu0 %v3279
      %3649 = vmatpush.msra.mxu0 %v3271
      %3650 = vmatpush.msra.mxu0 %v3263
      %3651 = vmatpush.msra.mxu0 %v3255
      %3652 = vmatpush.msra.mxu0 %v3247
      %3653 = vmatmul.f32.gmra.mxu0 %v3335
      %v3654 = vpop.f32.mrf.mxu0
      %v3655 = vadd.f32 %v3635, %v3654
      %3656 = vdwg.mxu0
      %v3657 = vmax.f32 %v3375, 0.0
      %v3658 = vmax.f32 %v3415, 0.0
      %v3659 = vmax.f32 %v3455, 0.0
      %v3660 = vmax.f32 %v3495, 0.0
      %v3661 = vmax.f32 %v3535, 0.0
      %v3662 = vmax.f32 %v3575, 0.0
      %v3663 = vmax.f32 %v3615, 0.0
      %v3664 = vmax.f32 %v3655, 0.0
      %3665 = vst [vmem:[%s251] sm:$0xff] %v3657
      %3666 = vst [vmem:[%s251 + $0x8] sm:$0xff] %v3658
      %3667 = vst [vmem:[%s251 + $0x10] sm:$0xff] %v3659
      %3668 = vst [vmem:[%s251 + $0x18] sm:$0xff] %v3660
      %3669 = vst [vmem:[%s251 + $0x20] sm:$0xff] %v3661
      %3670 = vst [vmem:[%s251 + $0x28] sm:$0xff] %v3662
      %3671 = vst [vmem:[%s251 + $0x30] sm:$0xff] %v3663
      %3672 = vst [vmem:[%s251 + $0x38] sm:$0xff] %v3664
      %p3673 = scmp.lt.s32.totalorder %s17, 1
      %s3674 = scalar_select %p3673, %s17, 1
      %s3675 = smul.addr %s3674, 8
      %s3676 = smul.addr %s3675, 8
      %s3677 = scalar_lea.vmem %s6, %s3676
      // Predicated region
      $region45: #{double_conv_block.1} parent=43 // pred_check
        %p3678 = pneg %p166
      $region46: #{double_conv_block.1} parent=43 // pred_check_branch
        %3680 = sbr.rel (%p3678) target = $region48
      $region47: #{double_conv_block.1} parent=43 // pred_region
        _
      $region48: #{double_conv_block.1} parent=43 // pred_fallthru
        _
    $region44: #{double_conv_block.1} parent=5 // pred_fallthru
      _
    %p3681 = scmp.le.s32.totalorder 2, %s12
    // Predicated region
    $region49: #{double_conv_block.1} parent=5 // pred_check
      %p3682 = pneg %p3681
    $region50: #{double_conv_block.1} parent=5 // pred_check_branch
      %3684 = sbr.rel (%p3682) target = $region52
    $region51: #{double_conv_block.1} parent=5 // pred_region
      %s3685 = ssub.s32 %s12, 2
      // Predicated region
      $region53: #{double_conv_block.1} parent=51 // pred_check
        %p3686 = pneg %p172
      $region54: #{double_conv_block.1} parent=51 // pred_check_branch
        %3688 = sbr.rel (%p3686) target = $region56
      $region55: #{double_conv_block.1} parent=51 // pred_region
        %p3689 = scmp.lt.s32.totalorder %s18, 1
        %s3690 = scalar_select %p3689, %s18, 1
        %s3691 = smul.addr %s3690, 8
        %s3692 = smul.addr %s3691, 8
        %s3693 = scalar_lea.vmem %s6, %s3692
      $region56: #{double_conv_block.1} parent=51 // pred_fallthru
        _
    $region52: #{double_conv_block.1} parent=5 // pred_fallthru
      _
  $region6: #{double_conv_block.1} parent=0 // loop_footer
    %s16 = sadd.s32 1, %s12
  $region7: #{double_conv_block.1} parent=0 // loop_footer_branch
    %11 = sbr.rel target = $region3
  $region8: #{double_conv_block.1} parent=0 // loop_exit
    _

</llo_original>
